<compile_context>
chip_gen: v6e
topology: v6e:2x2x1
jax: 0.10.0
libtpu: 0.0.40
codegen_flags: <defaults>
</compile_context>

<pallas_src>
import math

import numpy as np
import jax
import jax.numpy as jnp
from jax import lax
from jax.experimental import pallas as pl
from jax.experimental.pallas import tpu as pltpu


# --------------------------------------------------------------------------
# small constant matrices (built once, in numpy)
# --------------------------------------------------------------------------

def _stride2_subsample(s_in, s_out):
    """(p_out^2, p_in^2): picks stride-2 sample points out of a stride-1 conv
    computed on the padded flat layout and places them into the padded flat
    layout of the stride-2 output (pad rows stay exactly zero)."""
    p_in, p_out = s_in + 2, s_out + 2
    m = np.zeros((p_out * p_out, p_in * p_in), np.float32)
    for ho in range(s_out):
        for wo in range(s_out):
            m[(ho + 1) * p_out + (wo + 1),
              (2 * ho + 1) * p_in + (2 * wo + 1)] = 1.0
    return m


def _interior_mask(s):
    """((s+2)^2, 1): 1 at valid interior rows of a padded flat block, 0 at pads."""
    p = s + 2
    m = np.zeros((p * p, 1), np.float32)
    for h in range(s):
        for w in range(s):
            m[(h + 1) * p + (w + 1), 0] = 1.0
    return m


def _gn_group_matrix(C, G, hw):
    """(C, C): maps per-channel sums to per-channel *group* means (the true
    element count hw*Cg is folded in)."""
    Cg = C // G
    m = np.zeros((C, C), np.float32)
    for g in range(G):
        m[g * Cg:(g + 1) * Cg, g * Cg:(g + 1) * Cg] = 1.0 / (hw * Cg)
    return m


# --------------------------------------------------------------------------
# the fused encoder kernel (one grid step == one image)
# --------------------------------------------------------------------------

def _make_encoder_kernel(c1, c2, c3, s_mid, s_out, eps=1e-5):
    p2, p3 = s_mid + 2, s_out + 2          # padded spatial sizes
    r2, r3 = p2 * p2, p3 * p3              # padded flat block rows
    m2, m3 = p2 + 1, p3 + 1                # shift margins
    f32, bf16 = jnp.float32, jnp.bfloat16

    def write9(dst, y, m, p, C):
        """Scatter layer output y (padded-flat rows, pad-ring rows == 0) into
        the next layer's K-packed conv operand: 9 statically shifted copies,
        one per 3x3 tap, concatenated along lanes.  Only the 2*m margin rows
        are zeroed (every other row is overwritten below)."""
        r = y.shape[0]
        zeros = jnp.zeros((2 * m, dst.shape[1]), f32)
        dst[0:2 * m, :] = zeros
        dst[r:r + 2 * m, :] = zeros
        for dy in range(3):
            for dx in range(3):
                t = dy * 3 + dx
                sft = (dy - 1) * p + (dx - 1)
                dst[m - sft:m - sft + r, t * C:(t + 1) * C] = y

    def gn_scale_shift(z, gm_ref, gamma, beta):
        """GroupNorm as per-channel scale/shift.  z must have zero pad rows so
        plain column sums equal interior sums (count folded into gm)."""
        ssum = jnp.sum(z, axis=0, keepdims=True)                  # (1, C)
        ssq = jnp.sum(z * z, axis=0, keepdims=True)               # (1, C)
        mean = jnp.dot(ssum, gm_ref[...], preferred_element_type=f32)
        ex2 = jnp.dot(ssq, gm_ref[...], preferred_element_type=f32)
        var = jnp.maximum(ex2 - mean * mean, 0.0)
        scale = lax.rsqrt(var + eps) * gamma
        shift = beta - mean * scale
        return scale, shift

    def kernel(x_ref, prm_ref, w1_ref, wa_ref, wb_ref, w2_ref, wc_ref,
               gm16_ref, gm32_ref, sub2_ref, msk2_ref, msk3_ref,
               out_ref, pka, pkb, pk2, pkc):
        msk2 = msk2_ref[...]                                      # (r2, 1)
        msk3 = msk3_ref[...]                                      # (r3, 1)

        # ---- backbone conv1 (3x3, stride 2) + GN + ReLU -------------------
        # x_ref already holds the K-packed stride-2 patches (pad rows zero),
        # so the conv is one bf16 matmul with K = 9*cin.
        acc1 = jnp.dot(x_ref[0], w1_ref[...], preferred_element_type=f32)
        scale, shift = gn_scale_shift(acc1, gm16_ref,
                                      prm_ref[0:1, 0:c1], prm_ref[1:2, 0:c1])
        y1 = jnp.maximum(acc1 * scale + shift, 0.0) * msk2        # (r2, c1)
        write9(pka, y1, m2, p2, c1)

        # ---- residual block, conv a: 3x3 + GN + ReLU ----------------------
        acca = jnp.dot(pka[m2:m2 + r2, :].astype(bf16), wa_ref[...],
                       preferred_element_type=f32)                # (r2, c1)
        za = acca * msk2
        scale, shift = gn_scale_shift(za, gm16_ref,
                                      prm_ref[2:3, 0:c1], prm_ref[3:4, 0:c1])
        ya = jnp.maximum(za * scale + shift, 0.0) * msk2
        write9(pkb, ya, m2, p2, c1)

        # ---- residual block, conv b: 3x3 + GN, add skip, ReLU -------------
        accb = jnp.dot(pkb[m2:m2 + r2, :].astype(bf16), wb_ref[...],
                       preferred_element_type=f32)
        zb = accb * msk2
        scale, shift = gn_scale_shift(zb, gm16_ref,
                                      prm_ref[4:5, 0:c1], prm_ref[5:6, 0:c1])
        skip = pka[m2:m2 + r2, 4 * c1:5 * c1]                     # centre tap == y1 (f32)
        yb = jnp.maximum(zb * scale + shift + skip, 0.0) * msk2
        write9(pk2, yb, m2, p2, c1)

        # ---- backbone conv2 (3x3, stride 2) + GN + ReLU --------------------
        acc2 = jnp.dot(pk2[m2:m2 + r2, :].astype(bf16), w2_ref[...],
                       preferred_element_type=f32)                # (r2, c2)
        z2 = jnp.dot(sub2_ref[...], acc2.astype(bf16),
                     preferred_element_type=f32)                  # (r3, c2), pads 0
        scale, shift = gn_scale_shift(z2, gm32_ref,
                                      prm_ref[6:7, 0:c2], prm_ref[7:8, 0:c2])
        y2 = jnp.maximum(z2 * scale + shift, 0.0) * msk3
        write9(pkc, y2, m3, p3, c2)

        # ---- compression: 3x3 conv + GN(1 group, scalar stats) + ReLU ------
        accc = jnp.dot(pkc[m3:m3 + r3, :].astype(bf16), wc_ref[...],
                       preferred_element_type=f32)                # (r3, c3)
        zc = accc * msk3
        cnt = float(s_out * s_out * c3)
        tot = jnp.sum(jnp.sum(zc, axis=0, keepdims=True), axis=1, keepdims=True)
        tsq = jnp.sum(jnp.sum(zc * zc, axis=0, keepdims=True), axis=1, keepdims=True)
        mean = tot / cnt
        var = jnp.maximum(tsq / cnt - mean * mean, 0.0)
        rstd = lax.rsqrt(var + eps)
        yc = jnp.maximum((zc - mean) * rstd * prm_ref[8:9, 0:c3]
                         + prm_ref[9:10, 0:c3], 0.0)              # (r3, c3)
        # interior rows -> lane-dense (s_out^2, c3) output block
        for h in range(s_out):
            out_ref[h * s_out:(h + 1) * s_out, :] = (
                yc[(h + 1) * p3 + 1:(h + 1) * p3 + 1 + s_out, :])

    return kernel


# --------------------------------------------------------------------------
# the encoder module
# --------------------------------------------------------------------------

class ResNetEncoderPallas:
    """Pallas/JAX port of ResNetEncoder (eval-mode forward), fused into one
    TPU kernel per forward pass.

    # TODO(synk): the original takes an injected `make_backbone`; a fixed small
    # GroupNorm-ResNet backbone (conv s2 -> basic residual block -> conv s2,
    # final_spatial_compress = 1/4) is substituted here.
    # TODO(synk): training-mode RunningMeanAndVar running-buffer updates and
    # the torch.distributed all_reduce are not implemented (eval-mode only).
    """

    def __init__(self, key, *, rgb_channels=3, depth_channels=1, obs_size=32,
                 baseplanes=16, ngroups=4, normalize_visual_inputs=True):
        self._n_input_rgb = rgb_channels
        self._n_input_depth = depth_channels
        self._normalize = normalize_visual_inputs
        cin = rgb_channels + depth_channels

        spatial_size = obs_size // 2            # after the 2x2 avg pool
        s_mid = spatial_size // 2               # after conv1 (stride 2)
        s_out = spatial_size // 4               # after conv2 (stride 2)
        c1 = baseplanes
        c2 = 2 * baseplanes
        c3 = int(round(2048 / s_out ** 2))      # after_compression_flat_size = 2048
        self.output_shape = (c3, s_out, s_out)
        self._dims = (cin, c1, c2, c3, spatial_size, s_mid, s_out, obs_size)

        ks = jax.random.split(key, 5)

        def conv_w(k, cout, cin_):
            fan_in = cin_ * 9
            std = math.sqrt(2.0 / fan_in)       # kaiming-style init
            w = std * jax.random.normal(k, (cout, cin_, 3, 3), dtype=jnp.float32)
            # (cout,cin,ky,kx) -> (ky,kx,cin,cout) -> K-packed (9*cin, cout), bf16
            return jnp.transpose(w, (2, 3, 1, 0)).reshape(9 * cin_, cout).astype(
                jnp.bfloat16)

        p = {}
        p['w1'] = conv_w(ks[0], c1, cin)
        p['wa'] = conv_w(ks[1], c1, c1)
        p['wb'] = conv_w(ks[2], c1, c1)
        p['w2'] = conv_w(ks[3], c2, c1)
        p['wc'] = conv_w(ks[4], c3, c2)

        # all GroupNorm gamma/beta rows packed into ONE (10, 128) table
        # rows: [g1,b1, ga,ba, gb,bb, g2,b2, gc,bc]
        gn = np.zeros((10, 128), np.float32)
        for i, c in enumerate((c1, c1, c1, c2, c3)):
            gn[2 * i, :c] = 1.0
        p['gn'] = jnp.asarray(gn)
        # RunningMeanAndVar buffers (fresh / zero-initialized, as in the module)
        p['rmv_mean'] = jnp.zeros((cin,), jnp.float32)
        p['rmv_var'] = jnp.zeros((cin,), jnp.float32)
        self.params = p

        c = {}
        c['sub2'] = jnp.asarray(_stride2_subsample(s_mid, s_out)).astype(jnp.bfloat16)
        c['msk2'] = jnp.asarray(_interior_mask(s_mid))
        c['msk3'] = jnp.asarray(_interior_mask(s_out))
        c['gm16'] = jnp.asarray(_gn_group_matrix(c1, ngroups, s_mid ** 2))
        c['gm32'] = jnp.asarray(_gn_group_matrix(c2, ngroups, s_out ** 2))
        self.consts = c

        self._fwd = jax.jit(self._forward)

    @property
    def is_blind(self):
        return self._n_input_rgb + self._n_input_depth == 0

    def _forward(self, params, consts, rgb, depth):
        cin, c1, c2, c3, sp, s_mid, s_out, obs = self._dims
        p2, p3 = s_mid + 2, s_out + 2
        r2, r3 = p2 * p2, p3 * p3
        m2, m3 = p2 + 1, p3 + 1

        parts = []
        if self._n_input_rgb > 0:
            parts.append(rgb.astype(jnp.float32) / 255.0)
        if self._n_input_depth > 0:
            parts.append(depth.astype(jnp.float32))
        x = jnp.concatenate(parts, axis=-1)                     # (N, obs, obs, cin)
        N = x.shape[0]

        # F.avg_pool2d(x, 2)
        x = x.reshape(N, sp, 2, sp, 2, cin).mean(axis=(2, 4))   # (N, sp, sp, cin)

        # RunningMeanAndVar (eval): (x - mean) * rsqrt(max(var, 0.01))
        if self._normalize:
            inv = lax.rsqrt(jnp.maximum(params['rmv_var'], 0.01))
            x = (x - params['rmv_mean']) * inv

        # layer-1 stride-2 im2col patches (pure layout plumbing, ~7 KB/image),
        # placed into the padded flat layout so conv1 is one K=9*cin matmul.
        xp = jnp.pad(x, ((0, 0), (1, 1), (1, 1), (0, 0)))        # (N, sp+2, sp+2, cin)
        slabs = [xp[:, dy:dy + 2 * s_mid:2, dx:dx + 2 * s_mid:2, :]
                 for dy in range(3) for dx in range(3)]
        patches = jnp.concatenate(slabs, axis=-1)                # (N, s_mid, s_mid, 9*cin)
        patches = jnp.pad(patches, ((0, 0), (1, 1), (1, 1), (0, 0)))
        x_in = patches.reshape(N, r2, 9 * cin).astype(jnp.bfloat16)

        kernel = _make_encoder_kernel(c1, c2, c3, s_mid, s_out)

        def resident(a):
            nd = a.ndim
            return pl.BlockSpec(a.shape, lambda n, _nd=nd: (0,) * _nd)

        args = (x_in, params['gn'], params['w1'], params['wa'], params['wb'],
                params['w2'], params['wc'], consts['gm16'], consts['gm32'],
                consts['sub2'], consts['msk2'], consts['msk3'])

        in_specs = [pl.BlockSpec((1, r2, 9 * cin), lambda n: (n, 0, 0))]
        in_specs += [resident(a) for a in args[1:]]

        out2d = pl.pallas_call(
            kernel,
            out_shape=jax.ShapeDtypeStruct((N * s_out * s_out, c3), jnp.float32),
            grid=(N,),
            in_specs=in_specs,
            out_specs=pl.BlockSpec((s_out * s_out, c3), lambda n: (n, 0)),
            scratch_shapes=[
                pltpu.VMEM((2 * m2 + r2, 9 * c1), jnp.float32),   # conv a operand
                pltpu.VMEM((2 * m2 + r2, 9 * c1), jnp.float32),   # conv b operand
                pltpu.VMEM((2 * m2 + r2, 9 * c1), jnp.float32),   # conv2 operand
                pltpu.VMEM((2 * m3 + r3, 9 * c2), jnp.float32),   # compression operand
            ],
            compiler_params=pltpu.CompilerParams(
                dimension_semantics=("parallel",)),
        )(*args)

        # lane-dense (rows, 128) kernel output -> NCHW like the torch module
        out = out2d.reshape(N, s_out, s_out, c3).transpose(0, 3, 1, 2)
        return out

    def __call__(self, observations):
        if self.is_blind:
            return None
        return self._fwd(self.params, self.consts,
                         observations.get('rgb'), observations.get('depth'))


if __name__ == "__main__":
    key = jax.random.PRNGKey(0)
    k_enc, k_rgb, k_depth = jax.random.split(key, 3)

    enc = ResNetEncoderPallas(k_enc, rgb_channels=3, depth_channels=1,
                              obs_size=32, baseplanes=16, ngroups=4,
                              normalize_visual_inputs=True)

    rgb = jax.random.randint(k_rgb, (2, 32, 32, 3), 0, 256,
                             dtype=jnp.int32).astype(jnp.uint8)
    depth = jax.random.uniform(k_depth, (2, 32, 32, 1), dtype=jnp.float32)

    out = enc({'rgb': rgb, 'depth': depth})
    out = jax.block_until_ready(out)

    assert out.shape == (2,) + enc.output_shape, out.shape
    assert bool(jnp.all(jnp.isfinite(out)))
    print("KERNEL_OK")
</pallas_src>

<mosaic_0001>
module attributes {stable_mosaic.version = 11 : i64} {
  func.func @kernel(%arg0: i32, %arg1: memref<1x100x36xbf16, #tpu.memory_space<vmem>>, %arg2: memref<10x128xf32, #tpu.memory_space<vmem>>, %arg3: memref<36x16xbf16, #tpu.memory_space<vmem>>, %arg4: memref<144x16xbf16, #tpu.memory_space<vmem>>, %arg5: memref<144x16xbf16, #tpu.memory_space<vmem>>, %arg6: memref<144x32xbf16, #tpu.memory_space<vmem>>, %arg7: memref<288x128xbf16, #tpu.memory_space<vmem>>, %arg8: memref<16x16xf32, #tpu.memory_space<vmem>>, %arg9: memref<32x32xf32, #tpu.memory_space<vmem>>, %arg10: memref<36x100xbf16, #tpu.memory_space<vmem>>, %arg11: memref<100x1xf32, #tpu.memory_space<vmem>>, %arg12: memref<36x1xf32, #tpu.memory_space<vmem>>, %arg13: memref<16x128xf32, #tpu.memory_space<vmem>>, %arg14: memref<122x144xf32, #tpu.memory_space<vmem>>, %arg15: memref<122x144xf32, #tpu.memory_space<vmem>>, %arg16: memref<122x144xf32, #tpu.memory_space<vmem>>, %arg17: memref<50x288xf32, #tpu.memory_space<vmem>>) attributes {dimension_semantics = [#tpu.dimension_semantics<parallel>], iteration_bounds = array<i64: 2>, scalar_prefetch = 0 : i64, scratch_operands = 4 : i64, tpu.core_type = #tpu.core_type<tc>, window_params = [{transform_indices = @transform_0, window_bounds = array<i64: 1, 100, 36>}, {pipeline_mode = #tpu.pipeline_mode<synchronous>, transform_indices = @transform_1, window_bounds = array<i64: 10, 128>}, {pipeline_mode = #tpu.pipeline_mode<synchronous>, transform_indices = @transform_2, window_bounds = array<i64: 36, 16>}, {pipeline_mode = #tpu.pipeline_mode<synchronous>, transform_indices = @transform_3, window_bounds = array<i64: 144, 16>}, {pipeline_mode = #tpu.pipeline_mode<synchronous>, transform_indices = @transform_4, window_bounds = array<i64: 144, 16>}, {pipeline_mode = #tpu.pipeline_mode<synchronous>, transform_indices = @transform_5, window_bounds = array<i64: 144, 32>}, {pipeline_mode = #tpu.pipeline_mode<synchronous>, transform_indices = @transform_6, window_bounds = array<i64: 288, 128>}, {pipeline_mode = #tpu.pipeline_mode<synchronous>, transform_indices = @transform_7, window_bounds = array<i64: 16, 16>}, {pipeline_mode = #tpu.pipeline_mode<synchronous>, transform_indices = @transform_8, window_bounds = array<i64: 32, 32>}, {pipeline_mode = #tpu.pipeline_mode<synchronous>, transform_indices = @transform_9, window_bounds = array<i64: 36, 100>}, {pipeline_mode = #tpu.pipeline_mode<synchronous>, transform_indices = @transform_10, window_bounds = array<i64: 100, 1>}, {pipeline_mode = #tpu.pipeline_mode<synchronous>, transform_indices = @transform_11, window_bounds = array<i64: 36, 1>}, {transform_indices = @transform_12, window_bounds = array<i64: 16, 128>}]} {
    %c0 = arith.constant 0 : index
    %c0_0 = arith.constant 0 : index
    %0 = vector.load %arg11[%c0, %c0_0] : memref<100x1xf32, #tpu.memory_space<vmem>>, vector<100x1xf32>
    %c0_1 = arith.constant 0 : index
    %c0_2 = arith.constant 0 : index
    %1 = vector.load %arg12[%c0_1, %c0_2] : memref<36x1xf32, #tpu.memory_space<vmem>>, vector<36x1xf32>
    %c0_3 = arith.constant 0 : index
    %c0_4 = arith.constant 0 : index
    %c0_5 = arith.constant 0 : index
    %2 = vector.load %arg1[%c0_3, %c0_4, %c0_5] : memref<1x100x36xbf16, #tpu.memory_space<vmem>>, vector<1x100x36xbf16>
    %3 = vector.shape_cast %2 : vector<1x100x36xbf16> to vector<100x36xbf16>
    %c0_6 = arith.constant 0 : index
    %c0_7 = arith.constant 0 : index
    %4 = vector.load %arg3[%c0_6, %c0_7] : memref<36x16xbf16, #tpu.memory_space<vmem>>, vector<36x16xbf16>
    %cst = arith.constant dense<0.000000e+00> : vector<100x16xf32>
    %5 = tpu.matmul %3, %4, %cst {dimension_numbers = #tpu.dot_dimension_numbers<[1], [0], [0], [1], [0, 0, 1, 1], [], []>} : vector<100x36xbf16>, vector<36x16xbf16>, vector<100x16xf32> -> vector<100x16xf32>
    %c0_8 = arith.constant 0 : index
    %c0_9 = arith.constant 0 : index
    %6 = vector.load %arg2[%c0_8, %c0_9] : memref<10x128xf32, #tpu.memory_space<vmem>>, vector<1x16xf32>
    %c1 = arith.constant 1 : index
    %c0_10 = arith.constant 0 : index
    %7 = vector.load %arg2[%c1, %c0_10] : memref<10x128xf32, #tpu.memory_space<vmem>>, vector<1x16xf32>
    %cst_11 = arith.constant dense<0.000000e+00> : vector<16xf32>
    %8 = vector.multi_reduction <add>, %5, %cst_11 [0] : vector<100x16xf32> to vector<16xf32>
    %9 = vector.shape_cast %8 : vector<16xf32> to vector<1x16xf32>
    %10 = arith.mulf %5, %5 : vector<100x16xf32>
    %cst_12 = arith.constant dense<0.000000e+00> : vector<16xf32>
    %11 = vector.multi_reduction <add>, %10, %cst_12 [0] : vector<100x16xf32> to vector<16xf32>
    %12 = vector.shape_cast %11 : vector<16xf32> to vector<1x16xf32>
    %c0_13 = arith.constant 0 : index
    %c0_14 = arith.constant 0 : index
    %13 = vector.load %arg8[%c0_13, %c0_14] : memref<16x16xf32, #tpu.memory_space<vmem>>, vector<16x16xf32>
    %cst_15 = arith.constant dense<0.000000e+00> : vector<1x16xf32>
    %14 = tpu.matmul %9, %13, %cst_15 {dimension_numbers = #tpu.dot_dimension_numbers<[1], [0], [0], [1], [0, 0, 1, 1], [], []>} : vector<1x16xf32>, vector<16x16xf32>, vector<1x16xf32> -> vector<1x16xf32>
    %c0_16 = arith.constant 0 : index
    %c0_17 = arith.constant 0 : index
    %15 = vector.load %arg8[%c0_16, %c0_17] : memref<16x16xf32, #tpu.memory_space<vmem>>, vector<16x16xf32>
    %cst_18 = arith.constant dense<0.000000e+00> : vector<1x16xf32>
    %16 = tpu.matmul %12, %15, %cst_18 {dimension_numbers = #tpu.dot_dimension_numbers<[1], [0], [0], [1], [0, 0, 1, 1], [], []>} : vector<1x16xf32>, vector<16x16xf32>, vector<1x16xf32> -> vector<1x16xf32>
    %17 = arith.mulf %14, %14 : vector<1x16xf32>
    %18 = arith.subf %16, %17 : vector<1x16xf32>
    %cst_19 = arith.constant 0.000000e+00 : f32
    %19 = vector.broadcast %cst_19 : f32 to vector<1x16xf32>
    %20 = arith.maximumf %18, %19 : vector<1x16xf32>
    %cst_20 = arith.constant 9.99999974E-6 : f32
    %21 = vector.broadcast %cst_20 : f32 to vector<1x16xf32>
    %22 = arith.addf %20, %21 : vector<1x16xf32>
    %23 = math.rsqrt %22 : vector<1x16xf32>
    %24 = arith.mulf %23, %6 : vector<1x16xf32>
    %25 = arith.mulf %14, %24 : vector<1x16xf32>
    %26 = arith.subf %7, %25 : vector<1x16xf32>
    %27 = vector.broadcast %24 : vector<1x16xf32> to vector<100x16xf32>
    %28 = arith.mulf %5, %27 : vector<100x16xf32>
    %29 = vector.broadcast %26 : vector<1x16xf32> to vector<100x16xf32>
    %30 = arith.addf %28, %29 : vector<100x16xf32>
    %cst_21 = arith.constant 0.000000e+00 : f32
    %31 = vector.broadcast %cst_21 : f32 to vector<100x16xf32>
    %32 = arith.maximumf %30, %31 : vector<100x16xf32>
    %33 = vector.broadcast %0 : vector<100x1xf32> to vector<100x16xf32>
    %34 = arith.mulf %32, %33 : vector<100x16xf32>
    %cst_22 = arith.constant 0.000000e+00 : f32
    %35 = vector.broadcast %cst_22 : f32 to vector<22x144xf32>
    %c0_23 = arith.constant 0 : index
    %c0_24 = arith.constant 0 : index
    %36 = vector.load %arg14[%c0_23, %c0_24] : memref<122x144xf32, #tpu.memory_space<vmem>>, vector<22x144xf32>
    tpu.vector_store %arg14[%c0_23, %c0_24], %35 {strides = array<i32>} : memref<122x144xf32, #tpu.memory_space<vmem>>, vector<22x144xf32>,
    %c100 = arith.constant 100 : index
    %c0_25 = arith.constant 0 : index
    %37 = vector.load %arg14[%c100, %c0_25] : memref<122x144xf32, #tpu.memory_space<vmem>>, vector<22x144xf32>
    tpu.vector_store %arg14[%c100, %c0_25], %35 {strides = array<i32>} : memref<122x144xf32, #tpu.memory_space<vmem>>, vector<22x144xf32>,
    %c22 = arith.constant 22 : index
    %c0_26 = arith.constant 0 : index
    %38 = vector.load %arg14[%c22, %c0_26] : memref<122x144xf32, #tpu.memory_space<vmem>>, vector<100x16xf32>
    tpu.vector_store %arg14[%c22, %c0_26], %34 {strides = array<i32>} : memref<122x144xf32, #tpu.memory_space<vmem>>, vector<100x16xf32>,
    %c21 = arith.constant 21 : index
    %c16 = arith.constant 16 : index
    %39 = vector.load %arg14[%c21, %c16] : memref<122x144xf32, #tpu.memory_space<vmem>>, vector<100x16xf32>
    tpu.vector_store %arg14[%c21, %c16], %34 {strides = array<i32>} : memref<122x144xf32, #tpu.memory_space<vmem>>, vector<100x16xf32>,
    %c20 = arith.constant 20 : index
    %c32 = arith.constant 32 : index
    %40 = vector.load %arg14[%c20, %c32] : memref<122x144xf32, #tpu.memory_space<vmem>>, vector<100x16xf32>
    tpu.vector_store %arg14[%c20, %c32], %34 {strides = array<i32>} : memref<122x144xf32, #tpu.memory_space<vmem>>, vector<100x16xf32>,
    %c12 = arith.constant 12 : index
    %c48 = arith.constant 48 : index
    %41 = vector.load %arg14[%c12, %c48] : memref<122x144xf32, #tpu.memory_space<vmem>>, vector<100x16xf32>
    tpu.vector_store %arg14[%c12, %c48], %34 {strides = array<i32>} : memref<122x144xf32, #tpu.memory_space<vmem>>, vector<100x16xf32>,
    %c11 = arith.constant 11 : index
    %c64 = arith.constant 64 : index
    %42 = vector.load %arg14[%c11, %c64] : memref<122x144xf32, #tpu.memory_space<vmem>>, vector<100x16xf32>
    tpu.vector_store %arg14[%c11, %c64], %34 {strides = array<i32>} : memref<122x144xf32, #tpu.memory_space<vmem>>, vector<100x16xf32>,
    %c10 = arith.constant 10 : index
    %c80 = arith.constant 80 : index
    %43 = vector.load %arg14[%c10, %c80] : memref<122x144xf32, #tpu.memory_space<vmem>>, vector<100x16xf32>
    tpu.vector_store %arg14[%c10, %c80], %34 {strides = array<i32>} : memref<122x144xf32, #tpu.memory_space<vmem>>, vector<100x16xf32>,
    %c2 = arith.constant 2 : index
    %c96 = arith.constant 96 : index
    %44 = vector.load %arg14[%c2, %c96] : memref<122x144xf32, #tpu.memory_space<vmem>>, vector<100x16xf32>
    tpu.vector_store %arg14[%c2, %c96], %34 {strides = array<i32>} : memref<122x144xf32, #tpu.memory_space<vmem>>, vector<100x16xf32>,
    %c1_27 = arith.constant 1 : index
    %c112 = arith.constant 112 : index
    %45 = vector.load %arg14[%c1_27, %c112] : memref<122x144xf32, #tpu.memory_space<vmem>>, vector<100x16xf32>
    tpu.vector_store %arg14[%c1_27, %c112], %34 {strides = array<i32>} : memref<122x144xf32, #tpu.memory_space<vmem>>, vector<100x16xf32>,
    %c0_28 = arith.constant 0 : index
    %c128 = arith.constant 128 : index
    %46 = vector.load %arg14[%c0_28, %c128] : memref<122x144xf32, #tpu.memory_space<vmem>>, vector<100x16xf32>
    tpu.vector_store %arg14[%c0_28, %c128], %34 {strides = array<i32>} : memref<122x144xf32, #tpu.memory_space<vmem>>, vector<100x16xf32>,
    %c11_29 = arith.constant 11 : index
    %c0_30 = arith.constant 0 : index
    %47 = vector.load %arg14[%c11_29, %c0_30] : memref<122x144xf32, #tpu.memory_space<vmem>>, vector<100x144xf32>
    %48 = arith.truncf %47 : vector<100x144xf32> to vector<100x144xbf16>
    %c0_31 = arith.constant 0 : index
    %c0_32 = arith.constant 0 : index
    %49 = vector.load %arg4[%c0_31, %c0_32] : memref<144x16xbf16, #tpu.memory_space<vmem>>, vector<144x16xbf16>
    %cst_33 = arith.constant dense<0.000000e+00> : vector<100x16xf32>
    %50 = tpu.matmul %48, %49, %cst_33 {dimension_numbers = #tpu.dot_dimension_numbers<[1], [0], [0], [1], [0, 0, 1, 1], [], []>} : vector<100x144xbf16>, vector<144x16xbf16>, vector<100x16xf32> -> vector<100x16xf32>
    %51 = vector.broadcast %0 : vector<100x1xf32> to vector<100x16xf32>
    %52 = arith.mulf %50, %51 : vector<100x16xf32>
    %c2_34 = arith.constant 2 : index
    %c0_35 = arith.constant 0 : index
    %53 = vector.load %arg2[%c2_34, %c0_35] : memref<10x128xf32, #tpu.memory_space<vmem>>, vector<1x16xf32>
    %c3 = arith.constant 3 : index
    %c0_36 = arith.constant 0 : index
    %54 = vector.load %arg2[%c3, %c0_36] : memref<10x128xf32, #tpu.memory_space<vmem>>, vector<1x16xf32>
    %cst_37 = arith.constant dense<0.000000e+00> : vector<16xf32>
    %55 = vector.multi_reduction <add>, %52, %cst_37 [0] : vector<100x16xf32> to vector<16xf32>
    %56 = vector.shape_cast %55 : vector<16xf32> to vector<1x16xf32>
    %57 = arith.mulf %52, %52 : vector<100x16xf32>
    %cst_38 = arith.constant dense<0.000000e+00> : vector<16xf32>
    %58 = vector.multi_reduction <add>, %57, %cst_38 [0] : vector<100x16xf32> to vector<16xf32>
    %59 = vector.shape_cast %58 : vector<16xf32> to vector<1x16xf32>
    %c0_39 = arith.constant 0 : index
    %c0_40 = arith.constant 0 : index
    %60 = vector.load %arg8[%c0_39, %c0_40] : memref<16x16xf32, #tpu.memory_space<vmem>>, vector<16x16xf32>
    %cst_41 = arith.constant dense<0.000000e+00> : vector<1x16xf32>
    %61 = tpu.matmul %56, %60, %cst_41 {dimension_numbers = #tpu.dot_dimension_numbers<[1], [0], [0], [1], [0, 0, 1, 1], [], []>} : vector<1x16xf32>, vector<16x16xf32>, vector<1x16xf32> -> vector<1x16xf32>
    %c0_42 = arith.constant 0 : index
    %c0_43 = arith.constant 0 : index
    %62 = vector.load %arg8[%c0_42, %c0_43] : memref<16x16xf32, #tpu.memory_space<vmem>>, vector<16x16xf32>
    %cst_44 = arith.constant dense<0.000000e+00> : vector<1x16xf32>
    %63 = tpu.matmul %59, %62, %cst_44 {dimension_numbers = #tpu.dot_dimension_numbers<[1], [0], [0], [1], [0, 0, 1, 1], [], []>} : vector<1x16xf32>, vector<16x16xf32>, vector<1x16xf32> -> vector<1x16xf32>
    %64 = arith.mulf %61, %61 : vector<1x16xf32>
    %65 = arith.subf %63, %64 : vector<1x16xf32>
    %cst_45 = arith.constant 0.000000e+00 : f32
    %66 = vector.broadcast %cst_45 : f32 to vector<1x16xf32>
    %67 = arith.maximumf %65, %66 : vector<1x16xf32>
    %cst_46 = arith.constant 9.99999974E-6 : f32
    %68 = vector.broadcast %cst_46 : f32 to vector<1x16xf32>
    %69 = arith.addf %67, %68 : vector<1x16xf32>
    %70 = math.rsqrt %69 : vector<1x16xf32>
    %71 = arith.mulf %70, %53 : vector<1x16xf32>
    %72 = arith.mulf %61, %71 : vector<1x16xf32>
    %73 = arith.subf %54, %72 : vector<1x16xf32>
    %74 = vector.broadcast %71 : vector<1x16xf32> to vector<100x16xf32>
    %75 = arith.mulf %52, %74 : vector<100x16xf32>
    %76 = vector.broadcast %73 : vector<1x16xf32> to vector<100x16xf32>
    %77 = arith.addf %75, %76 : vector<100x16xf32>
    %cst_47 = arith.constant 0.000000e+00 : f32
    %78 = vector.broadcast %cst_47 : f32 to vector<100x16xf32>
    %79 = arith.maximumf %77, %78 : vector<100x16xf32>
    %80 = vector.broadcast %0 : vector<100x1xf32> to vector<100x16xf32>
    %81 = arith.mulf %79, %80 : vector<100x16xf32>
    %cst_48 = arith.constant 0.000000e+00 : f32
    %82 = vector.broadcast %cst_48 : f32 to vector<22x144xf32>
    %c0_49 = arith.constant 0 : index
    %c0_50 = arith.constant 0 : index
    %83 = vector.load %arg15[%c0_49, %c0_50] : memref<122x144xf32, #tpu.memory_space<vmem>>, vector<22x144xf32>
    tpu.vector_store %arg15[%c0_49, %c0_50], %82 {strides = array<i32>} : memref<122x144xf32, #tpu.memory_space<vmem>>, vector<22x144xf32>,
    %c100_51 = arith.constant 100 : index
    %c0_52 = arith.constant 0 : index
    %84 = vector.load %arg15[%c100_51, %c0_52] : memref<122x144xf32, #tpu.memory_space<vmem>>, vector<22x144xf32>
    tpu.vector_store %arg15[%c100_51, %c0_52], %82 {strides = array<i32>} : memref<122x144xf32, #tpu.memory_space<vmem>>, vector<22x144xf32>,
    %c22_53 = arith.constant 22 : index
    %c0_54 = arith.constant 0 : index
    %85 = vector.load %arg15[%c22_53, %c0_54] : memref<122x144xf32, #tpu.memory_space<vmem>>, vector<100x16xf32>
    tpu.vector_store %arg15[%c22_53, %c0_54], %81 {strides = array<i32>} : memref<122x144xf32, #tpu.memory_space<vmem>>, vector<100x16xf32>,
    %c21_55 = arith.constant 21 : index
    %c16_56 = arith.constant 16 : index
    %86 = vector.load %arg15[%c21_55, %c16_56] : memref<122x144xf32, #tpu.memory_space<vmem>>, vector<100x16xf32>
    tpu.vector_store %arg15[%c21_55, %c16_56], %81 {strides = array<i32>} : memref<122x144xf32, #tpu.memory_space<vmem>>, vector<100x16xf32>,
    %c20_57 = arith.constant 20 : index
    %c32_58 = arith.constant 32 : index
    %87 = vector.load %arg15[%c20_57, %c32_58] : memref<122x144xf32, #tpu.memory_space<vmem>>, vector<100x16xf32>
    tpu.vector_store %arg15[%c20_57, %c32_58], %81 {strides = array<i32>} : memref<122x144xf32, #tpu.memory_space<vmem>>, vector<100x16xf32>,
    %c12_59 = arith.constant 12 : index
    %c48_60 = arith.constant 48 : index
    %88 = vector.load %arg15[%c12_59, %c48_60] : memref<122x144xf32, #tpu.memory_space<vmem>>, vector<100x16xf32>
    tpu.vector_store %arg15[%c12_59, %c48_60], %81 {strides = array<i32>} : memref<122x144xf32, #tpu.memory_space<vmem>>, vector<100x16xf32>,
    %c11_61 = arith.constant 11 : index
    %c64_62 = arith.constant 64 : index
    %89 = vector.load %arg15[%c11_61, %c64_62] : memref<122x144xf32, #tpu.memory_space<vmem>>, vector<100x16xf32>
    tpu.vector_store %arg15[%c11_61, %c64_62], %81 {strides = array<i32>} : memref<122x144xf32, #tpu.memory_space<vmem>>, vector<100x16xf32>,
    %c10_63 = arith.constant 10 : index
    %c80_64 = arith.constant 80 : index
    %90 = vector.load %arg15[%c10_63, %c80_64] : memref<122x144xf32, #tpu.memory_space<vmem>>, vector<100x16xf32>
    tpu.vector_store %arg15[%c10_63, %c80_64], %81 {strides = array<i32>} : memref<122x144xf32, #tpu.memory_space<vmem>>, vector<100x16xf32>,
    %c2_65 = arith.constant 2 : index
    %c96_66 = arith.constant 96 : index
    %91 = vector.load %arg15[%c2_65, %c96_66] : memref<122x144xf32, #tpu.memory_space<vmem>>, vector<100x16xf32>
    tpu.vector_store %arg15[%c2_65, %c96_66], %81 {strides = array<i32>} : memref<122x144xf32, #tpu.memory_space<vmem>>, vector<100x16xf32>,
    %c1_67 = arith.constant 1 : index
    %c112_68 = arith.constant 112 : index
    %92 = vector.load %arg15[%c1_67, %c112_68] : memref<122x144xf32, #tpu.memory_space<vmem>>, vector<100x16xf32>
    tpu.vector_store %arg15[%c1_67, %c112_68], %81 {strides = array<i32>} : memref<122x144xf32, #tpu.memory_space<vmem>>, vector<100x16xf32>,
    %c0_69 = arith.constant 0 : index
    %c128_70 = arith.constant 128 : index
    %93 = vector.load %arg15[%c0_69, %c128_70] : memref<122x144xf32, #tpu.memory_space<vmem>>, vector<100x16xf32>
    tpu.vector_store %arg15[%c0_69, %c128_70], %81 {strides = array<i32>} : memref<122x144xf32, #tpu.memory_space<vmem>>, vector<100x16xf32>,
    %c11_71 = arith.constant 11 : index
    %c0_72 = arith.constant 0 : index
    %94 = vector.load %arg15[%c11_71, %c0_72] : memref<122x144xf32, #tpu.memory_space<vmem>>, vector<100x144xf32>
    %95 = arith.truncf %94 : vector<100x144xf32> to vector<100x144xbf16>
    %c0_73 = arith.constant 0 : index
    %c0_74 = arith.constant 0 : index
    %96 = vector.load %arg5[%c0_73, %c0_74] : memref<144x16xbf16, #tpu.memory_space<vmem>>, vector<144x16xbf16>
    %cst_75 = arith.constant dense<0.000000e+00> : vector<100x16xf32>
    %97 = tpu.matmul %95, %96, %cst_75 {dimension_numbers = #tpu.dot_dimension_numbers<[1], [0], [0], [1], [0, 0, 1, 1], [], []>} : vector<100x144xbf16>, vector<144x16xbf16>, vector<100x16xf32> -> vector<100x16xf32>
    %98 = vector.broadcast %0 : vector<100x1xf32> to vector<100x16xf32>
    %99 = arith.mulf %97, %98 : vector<100x16xf32>
    %c4 = arith.constant 4 : index
    %c0_76 = arith.constant 0 : index
    %100 = vector.load %arg2[%c4, %c0_76] : memref<10x128xf32, #tpu.memory_space<vmem>>, vector<1x16xf32>
    %c5 = arith.constant 5 : index
    %c0_77 = arith.constant 0 : index
    %101 = vector.load %arg2[%c5, %c0_77] : memref<10x128xf32, #tpu.memory_space<vmem>>, vector<1x16xf32>
    %cst_78 = arith.constant dense<0.000000e+00> : vector<16xf32>
    %102 = vector.multi_reduction <add>, %99, %cst_78 [0] : vector<100x16xf32> to vector<16xf32>
    %103 = vector.shape_cast %102 : vector<16xf32> to vector<1x16xf32>
    %104 = arith.mulf %99, %99 : vector<100x16xf32>
    %cst_79 = arith.constant dense<0.000000e+00> : vector<16xf32>
    %105 = vector.multi_reduction <add>, %104, %cst_79 [0] : vector<100x16xf32> to vector<16xf32>
    %106 = vector.shape_cast %105 : vector<16xf32> to vector<1x16xf32>
    %c0_80 = arith.constant 0 : index
    %c0_81 = arith.constant 0 : index
    %107 = vector.load %arg8[%c0_80, %c0_81] : memref<16x16xf32, #tpu.memory_space<vmem>>, vector<16x16xf32>
    %cst_82 = arith.constant dense<0.000000e+00> : vector<1x16xf32>
    %108 = tpu.matmul %103, %107, %cst_82 {dimension_numbers = #tpu.dot_dimension_numbers<[1], [0], [0], [1], [0, 0, 1, 1], [], []>} : vector<1x16xf32>, vector<16x16xf32>, vector<1x16xf32> -> vector<1x16xf32>
    %c0_83 = arith.constant 0 : index
    %c0_84 = arith.constant 0 : index
    %109 = vector.load %arg8[%c0_83, %c0_84] : memref<16x16xf32, #tpu.memory_space<vmem>>, vector<16x16xf32>
    %cst_85 = arith.constant dense<0.000000e+00> : vector<1x16xf32>
    %110 = tpu.matmul %106, %109, %cst_85 {dimension_numbers = #tpu.dot_dimension_numbers<[1], [0], [0], [1], [0, 0, 1, 1], [], []>} : vector<1x16xf32>, vector<16x16xf32>, vector<1x16xf32> -> vector<1x16xf32>
    %111 = arith.mulf %108, %108 : vector<1x16xf32>
    %112 = arith.subf %110, %111 : vector<1x16xf32>
    %cst_86 = arith.constant 0.000000e+00 : f32
    %113 = vector.broadcast %cst_86 : f32 to vector<1x16xf32>
    %114 = arith.maximumf %112, %113 : vector<1x16xf32>
    %cst_87 = arith.constant 9.99999974E-6 : f32
    %115 = vector.broadcast %cst_87 : f32 to vector<1x16xf32>
    %116 = arith.addf %114, %115 : vector<1x16xf32>
    %117 = math.rsqrt %116 : vector<1x16xf32>
    %118 = arith.mulf %117, %100 : vector<1x16xf32>
    %119 = arith.mulf %108, %118 : vector<1x16xf32>
    %120 = arith.subf %101, %119 : vector<1x16xf32>
    %c11_88 = arith.constant 11 : index
    %c64_89 = arith.constant 64 : index
    %121 = vector.load %arg14[%c11_88, %c64_89] : memref<122x144xf32, #tpu.memory_space<vmem>>, vector<100x16xf32>
    %122 = vector.broadcast %118 : vector<1x16xf32> to vector<100x16xf32>
    %123 = arith.mulf %99, %122 : vector<100x16xf32>
    %124 = vector.broadcast %120 : vector<1x16xf32> to vector<100x16xf32>
    %125 = arith.addf %123, %124 : vector<100x16xf32>
    %126 = arith.addf %125, %121 : vector<100x16xf32>
    %cst_90 = arith.constant 0.000000e+00 : f32
    %127 = vector.broadcast %cst_90 : f32 to vector<100x16xf32>
    %128 = arith.maximumf %126, %127 : vector<100x16xf32>
    %129 = vector.broadcast %0 : vector<100x1xf32> to vector<100x16xf32>
    %130 = arith.mulf %128, %129 : vector<100x16xf32>
    %cst_91 = arith.constant 0.000000e+00 : f32
    %131 = vector.broadcast %cst_91 : f32 to vector<22x144xf32>
    %c0_92 = arith.constant 0 : index
    %c0_93 = arith.constant 0 : index
    %132 = vector.load %arg16[%c0_92, %c0_93] : memref<122x144xf32, #tpu.memory_space<vmem>>, vector<22x144xf32>
    tpu.vector_store %arg16[%c0_92, %c0_93], %131 {strides = array<i32>} : memref<122x144xf32, #tpu.memory_space<vmem>>, vector<22x144xf32>,
    %c100_94 = arith.constant 100 : index
    %c0_95 = arith.constant 0 : index
    %133 = vector.load %arg16[%c100_94, %c0_95] : memref<122x144xf32, #tpu.memory_space<vmem>>, vector<22x144xf32>
    tpu.vector_store %arg16[%c100_94, %c0_95], %131 {strides = array<i32>} : memref<122x144xf32, #tpu.memory_space<vmem>>, vector<22x144xf32>,
    %c22_96 = arith.constant 22 : index
    %c0_97 = arith.constant 0 : index
    %134 = vector.load %arg16[%c22_96, %c0_97] : memref<122x144xf32, #tpu.memory_space<vmem>>, vector<100x16xf32>
    tpu.vector_store %arg16[%c22_96, %c0_97], %130 {strides = array<i32>} : memref<122x144xf32, #tpu.memory_space<vmem>>, vector<100x16xf32>,
    %c21_98 = arith.constant 21 : index
    %c16_99 = arith.constant 16 : index
    %135 = vector.load %arg16[%c21_98, %c16_99] : memref<122x144xf32, #tpu.memory_space<vmem>>, vector<100x16xf32>
    tpu.vector_store %arg16[%c21_98, %c16_99], %130 {strides = array<i32>} : memref<122x144xf32, #tpu.memory_space<vmem>>, vector<100x16xf32>,
    %c20_100 = arith.constant 20 : index
    %c32_101 = arith.constant 32 : index
    %136 = vector.load %arg16[%c20_100, %c32_101] : memref<122x144xf32, #tpu.memory_space<vmem>>, vector<100x16xf32>
    tpu.vector_store %arg16[%c20_100, %c32_101], %130 {strides = array<i32>} : memref<122x144xf32, #tpu.memory_space<vmem>>, vector<100x16xf32>,
    %c12_102 = arith.constant 12 : index
    %c48_103 = arith.constant 48 : index
    %137 = vector.load %arg16[%c12_102, %c48_103] : memref<122x144xf32, #tpu.memory_space<vmem>>, vector<100x16xf32>
    tpu.vector_store %arg16[%c12_102, %c48_103], %130 {strides = array<i32>} : memref<122x144xf32, #tpu.memory_space<vmem>>, vector<100x16xf32>,
    %c11_104 = arith.constant 11 : index
    %c64_105 = arith.constant 64 : index
    %138 = vector.load %arg16[%c11_104, %c64_105] : memref<122x144xf32, #tpu.memory_space<vmem>>, vector<100x16xf32>
    tpu.vector_store %arg16[%c11_104, %c64_105], %130 {strides = array<i32>} : memref<122x144xf32, #tpu.memory_space<vmem>>, vector<100x16xf32>,
    %c10_106 = arith.constant 10 : index
    %c80_107 = arith.constant 80 : index
    %139 = vector.load %arg16[%c10_106, %c80_107] : memref<122x144xf32, #tpu.memory_space<vmem>>, vector<100x16xf32>
    tpu.vector_store %arg16[%c10_106, %c80_107], %130 {strides = array<i32>} : memref<122x144xf32, #tpu.memory_space<vmem>>, vector<100x16xf32>,
    %c2_108 = arith.constant 2 : index
    %c96_109 = arith.constant 96 : index
    %140 = vector.load %arg16[%c2_108, %c96_109] : memref<122x144xf32, #tpu.memory_space<vmem>>, vector<100x16xf32>
    tpu.vector_store %arg16[%c2_108, %c96_109], %130 {strides = array<i32>} : memref<122x144xf32, #tpu.memory_space<vmem>>, vector<100x16xf32>,
    %c1_110 = arith.constant 1 : index
    %c112_111 = arith.constant 112 : index
    %141 = vector.load %arg16[%c1_110, %c112_111] : memref<122x144xf32, #tpu.memory_space<vmem>>, vector<100x16xf32>
    tpu.vector_store %arg16[%c1_110, %c112_111], %130 {strides = array<i32>} : memref<122x144xf32, #tpu.memory_space<vmem>>, vector<100x16xf32>,
    %c0_112 = arith.constant 0 : index
    %c128_113 = arith.constant 128 : index
    %142 = vector.load %arg16[%c0_112, %c128_113] : memref<122x144xf32, #tpu.memory_space<vmem>>, vector<100x16xf32>
    tpu.vector_store %arg16[%c0_112, %c128_113], %130 {strides = array<i32>} : memref<122x144xf32, #tpu.memory_space<vmem>>, vector<100x16xf32>,
    %c11_114 = arith.constant 11 : index
    %c0_115 = arith.constant 0 : index
    %143 = vector.load %arg16[%c11_114, %c0_115] : memref<122x144xf32, #tpu.memory_space<vmem>>, vector<100x144xf32>
    %144 = arith.truncf %143 : vector<100x144xf32> to vector<100x144xbf16>
    %c0_116 = arith.constant 0 : index
    %c0_117 = arith.constant 0 : index
    %145 = vector.load %arg6[%c0_116, %c0_117] : memref<144x32xbf16, #tpu.memory_space<vmem>>, vector<144x32xbf16>
    %cst_118 = arith.constant dense<0.000000e+00> : vector<100x32xf32>
    %146 = tpu.matmul %144, %145, %cst_118 {dimension_numbers = #tpu.dot_dimension_numbers<[1], [0], [0], [1], [0, 0, 1, 1], [], []>} : vector<100x144xbf16>, vector<144x32xbf16>, vector<100x32xf32> -> vector<100x32xf32>
    %c0_119 = arith.constant 0 : index
    %c0_120 = arith.constant 0 : index
    %147 = vector.load %arg10[%c0_119, %c0_120] : memref<36x100xbf16, #tpu.memory_space<vmem>>, vector<36x100xbf16>
    %148 = arith.truncf %146 : vector<100x32xf32> to vector<100x32xbf16>
    %cst_121 = arith.constant dense<0.000000e+00> : vector<36x32xf32>
    %149 = tpu.matmul %147, %148, %cst_121 {dimension_numbers = #tpu.dot_dimension_numbers<[1], [0], [0], [1], [0, 0, 1, 1], [], []>} : vector<36x100xbf16>, vector<100x32xbf16>, vector<36x32xf32> -> vector<36x32xf32>
    %c6 = arith.constant 6 : index
    %c0_122 = arith.constant 0 : index
    %150 = vector.load %arg2[%c6, %c0_122] : memref<10x128xf32, #tpu.memory_space<vmem>>, vector<1x32xf32>
    %c7 = arith.constant 7 : index
    %c0_123 = arith.constant 0 : index
    %151 = vector.load %arg2[%c7, %c0_123] : memref<10x128xf32, #tpu.memory_space<vmem>>, vector<1x32xf32>
    %cst_124 = arith.constant dense<0.000000e+00> : vector<32xf32>
    %152 = vector.multi_reduction <add>, %149, %cst_124 [0] : vector<36x32xf32> to vector<32xf32>
    %153 = vector.shape_cast %152 : vector<32xf32> to vector<1x32xf32>
    %154 = arith.mulf %149, %149 : vector<36x32xf32>
    %cst_125 = arith.constant dense<0.000000e+00> : vector<32xf32>
    %155 = vector.multi_reduction <add>, %154, %cst_125 [0] : vector<36x32xf32> to vector<32xf32>
    %156 = vector.shape_cast %155 : vector<32xf32> to vector<1x32xf32>
    %c0_126 = arith.constant 0 : index
    %c0_127 = arith.constant 0 : index
    %157 = vector.load %arg9[%c0_126, %c0_127] : memref<32x32xf32, #tpu.memory_space<vmem>>, vector<32x32xf32>
    %cst_128 = arith.constant dense<0.000000e+00> : vector<1x32xf32>
    %158 = tpu.matmul %153, %157, %cst_128 {dimension_numbers = #tpu.dot_dimension_numbers<[1], [0], [0], [1], [0, 0, 1, 1], [], []>} : vector<1x32xf32>, vector<32x32xf32>, vector<1x32xf32> -> vector<1x32xf32>
    %c0_129 = arith.constant 0 : index
    %c0_130 = arith.constant 0 : index
    %159 = vector.load %arg9[%c0_129, %c0_130] : memref<32x32xf32, #tpu.memory_space<vmem>>, vector<32x32xf32>
    %cst_131 = arith.constant dense<0.000000e+00> : vector<1x32xf32>
    %160 = tpu.matmul %156, %159, %cst_131 {dimension_numbers = #tpu.dot_dimension_numbers<[1], [0], [0], [1], [0, 0, 1, 1], [], []>} : vector<1x32xf32>, vector<32x32xf32>, vector<1x32xf32> -> vector<1x32xf32>
    %161 = arith.mulf %158, %158 : vector<1x32xf32>
    %162 = arith.subf %160, %161 : vector<1x32xf32>
    %cst_132 = arith.constant 0.000000e+00 : f32
    %163 = vector.broadcast %cst_132 : f32 to vector<1x32xf32>
    %164 = arith.maximumf %162, %163 : vector<1x32xf32>
    %cst_133 = arith.constant 9.99999974E-6 : f32
    %165 = vector.broadcast %cst_133 : f32 to vector<1x32xf32>
    %166 = arith.addf %164, %165 : vector<1x32xf32>
    %167 = math.rsqrt %166 : vector<1x32xf32>
    %168 = arith.mulf %167, %150 : vector<1x32xf32>
    %169 = arith.mulf %158, %168 : vector<1x32xf32>
    %170 = arith.subf %151, %169 : vector<1x32xf32>
    %171 = vector.broadcast %168 : vector<1x32xf32> to vector<36x32xf32>
    %172 = arith.mulf %149, %171 : vector<36x32xf32>
    %173 = vector.broadcast %170 : vector<1x32xf32> to vector<36x32xf32>
    %174 = arith.addf %172, %173 : vector<36x32xf32>
    %cst_134 = arith.constant 0.000000e+00 : f32
    %175 = vector.broadcast %cst_134 : f32 to vector<36x32xf32>
    %176 = arith.maximumf %174, %175 : vector<36x32xf32>
    %177 = vector.broadcast %1 : vector<36x1xf32> to vector<36x32xf32>
    %178 = arith.mulf %176, %177 : vector<36x32xf32>
    %cst_135 = arith.constant 0.000000e+00 : f32
    %179 = vector.broadcast %cst_135 : f32 to vector<14x288xf32>
    %c0_136 = arith.constant 0 : index
    %c0_137 = arith.constant 0 : index
    %180 = vector.load %arg17[%c0_136, %c0_137] : memref<50x288xf32, #tpu.memory_space<vmem>>, vector<14x288xf32>
    tpu.vector_store %arg17[%c0_136, %c0_137], %179 {strides = array<i32>} : memref<50x288xf32, #tpu.memory_space<vmem>>, vector<14x288xf32>,
    %c36 = arith.constant 36 : index
    %c0_138 = arith.constant 0 : index
    %181 = vector.load %arg17[%c36, %c0_138] : memref<50x288xf32, #tpu.memory_space<vmem>>, vector<14x288xf32>
    tpu.vector_store %arg17[%c36, %c0_138], %179 {strides = array<i32>} : memref<50x288xf32, #tpu.memory_space<vmem>>, vector<14x288xf32>,
    %c14 = arith.constant 14 : index
    %c0_139 = arith.constant 0 : index
    %182 = vector.load %arg17[%c14, %c0_139] : memref<50x288xf32, #tpu.memory_space<vmem>>, vector<36x32xf32>
    tpu.vector_store %arg17[%c14, %c0_139], %178 {strides = array<i32>} : memref<50x288xf32, #tpu.memory_space<vmem>>, vector<36x32xf32>,
    %c13 = arith.constant 13 : index
    %c32_140 = arith.constant 32 : index
    %183 = vector.load %arg17[%c13, %c32_140] : memref<50x288xf32, #tpu.memory_space<vmem>>, vector<36x32xf32>
    tpu.vector_store %arg17[%c13, %c32_140], %178 {strides = array<i32>} : memref<50x288xf32, #tpu.memory_space<vmem>>, vector<36x32xf32>,
    %c12_141 = arith.constant 12 : index
    %c64_142 = arith.constant 64 : index
    %184 = vector.load %arg17[%c12_141, %c64_142] : memref<50x288xf32, #tpu.memory_space<vmem>>, vector<36x32xf32>
    tpu.vector_store %arg17[%c12_141, %c64_142], %178 {strides = array<i32>} : memref<50x288xf32, #tpu.memory_space<vmem>>, vector<36x32xf32>,
    %c8 = arith.constant 8 : index
    %c96_143 = arith.constant 96 : index
    %185 = vector.load %arg17[%c8, %c96_143] : memref<50x288xf32, #tpu.memory_space<vmem>>, vector<36x32xf32>
    tpu.vector_store %arg17[%c8, %c96_143], %178 {strides = array<i32>} : memref<50x288xf32, #tpu.memory_space<vmem>>, vector<36x32xf32>,
    %c7_144 = arith.constant 7 : index
    %c128_145 = arith.constant 128 : index
    %186 = vector.load %arg17[%c7_144, %c128_145] : memref<50x288xf32, #tpu.memory_space<vmem>>, vector<36x32xf32>
    tpu.vector_store %arg17[%c7_144, %c128_145], %178 {strides = array<i32>} : memref<50x288xf32, #tpu.memory_space<vmem>>, vector<36x32xf32>,
    %c6_146 = arith.constant 6 : index
    %c160 = arith.constant 160 : index
    %187 = vector.load %arg17[%c6_146, %c160] : memref<50x288xf32, #tpu.memory_space<vmem>>, vector<36x32xf32>
    tpu.vector_store %arg17[%c6_146, %c160], %178 {strides = array<i32>} : memref<50x288xf32, #tpu.memory_space<vmem>>, vector<36x32xf32>,
    %c2_147 = arith.constant 2 : index
    %c192 = arith.constant 192 : index
    %188 = vector.load %arg17[%c2_147, %c192] : memref<50x288xf32, #tpu.memory_space<vmem>>, vector<36x32xf32>
    tpu.vector_store %arg17[%c2_147, %c192], %178 {strides = array<i32>} : memref<50x288xf32, #tpu.memory_space<vmem>>, vector<36x32xf32>,
    %c1_148 = arith.constant 1 : index
    %c224 = arith.constant 224 : index
    %189 = vector.load %arg17[%c1_148, %c224] : memref<50x288xf32, #tpu.memory_space<vmem>>, vector<36x32xf32>
    tpu.vector_store %arg17[%c1_148, %c224], %178 {strides = array<i32>} : memref<50x288xf32, #tpu.memory_space<vmem>>, vector<36x32xf32>,
    %c0_149 = arith.constant 0 : index
    %c256 = arith.constant 256 : index
    %190 = vector.load %arg17[%c0_149, %c256] : memref<50x288xf32, #tpu.memory_space<vmem>>, vector<36x32xf32>
    tpu.vector_store %arg17[%c0_149, %c256], %178 {strides = array<i32>} : memref<50x288xf32, #tpu.memory_space<vmem>>, vector<36x32xf32>,
    %c7_150 = arith.constant 7 : index
    %c0_151 = arith.constant 0 : index
    %191 = vector.load %arg17[%c7_150, %c0_151] : memref<50x288xf32, #tpu.memory_space<vmem>>, vector<36x288xf32>
    %192 = arith.truncf %191 : vector<36x288xf32> to vector<36x288xbf16>
    %c0_152 = arith.constant 0 : index
    %c0_153 = arith.constant 0 : index
    %193 = vector.load %arg7[%c0_152, %c0_153] : memref<288x128xbf16, #tpu.memory_space<vmem>>, vector<288x128xbf16>
    %cst_154 = arith.constant dense<0.000000e+00> : vector<36x128xf32>
    %194 = tpu.matmul %192, %193, %cst_154 {dimension_numbers = #tpu.dot_dimension_numbers<[1], [0], [0], [1], [0, 0, 1, 1], [], []>} : vector<36x288xbf16>, vector<288x128xbf16>, vector<36x128xf32> -> vector<36x128xf32>
    %195 = vector.broadcast %1 : vector<36x1xf32> to vector<36x128xf32>
    %196 = arith.mulf %194, %195 : vector<36x128xf32>
    %cst_155 = arith.constant dense<0.000000e+00> : vector<128xf32>
    %197 = vector.multi_reduction <add>, %196, %cst_155 [0] : vector<36x128xf32> to vector<128xf32>
    %198 = vector.shape_cast %197 : vector<128xf32> to vector<1x128xf32>
    %cst_156 = arith.constant dense<0.000000e+00> : vector<1xf32>
    %199 = vector.multi_reduction <add>, %198, %cst_156 [1] : vector<1x128xf32> to vector<1xf32>
    %200 = vector.shape_cast %199 : vector<1xf32> to vector<1x1xf32>
    %201 = arith.mulf %196, %196 : vector<36x128xf32>
    %cst_157 = arith.constant dense<0.000000e+00> : vector<128xf32>
    %202 = vector.multi_reduction <add>, %201, %cst_157 [0] : vector<36x128xf32> to vector<128xf32>
    %203 = vector.shape_cast %202 : vector<128xf32> to vector<1x128xf32>
    %cst_158 = arith.constant dense<0.000000e+00> : vector<1xf32>
    %204 = vector.multi_reduction <add>, %203, %cst_158 [1] : vector<1x128xf32> to vector<1xf32>
    %205 = vector.shape_cast %204 : vector<1xf32> to vector<1x1xf32>
    %cst_159 = arith.constant 2.048000e+03 : f32
    %206 = vector.broadcast %cst_159 : f32 to vector<1x1xf32>
    %207 = arith.divf %200, %206 : vector<1x1xf32>
    %cst_160 = arith.constant 2.048000e+03 : f32
    %208 = vector.broadcast %cst_160 : f32 to vector<1x1xf32>
    %209 = arith.divf %205, %208 : vector<1x1xf32>
    %210 = arith.mulf %207, %207 : vector<1x1xf32>
    %211 = arith.subf %209, %210 : vector<1x1xf32>
    %cst_161 = arith.constant 0.000000e+00 : f32
    %212 = vector.broadcast %cst_161 : f32 to vector<1x1xf32>
    %213 = arith.maximumf %211, %212 : vector<1x1xf32>
    %cst_162 = arith.constant 9.99999974E-6 : f32
    %214 = vector.broadcast %cst_162 : f32 to vector<1x1xf32>
    %215 = arith.addf %213, %214 : vector<1x1xf32>
    %216 = math.rsqrt %215 : vector<1x1xf32>
    %217 = vector.broadcast %207 : vector<1x1xf32> to vector<36x128xf32>
    %218 = arith.subf %196, %217 : vector<36x128xf32>
    %219 = vector.broadcast %216 : vector<1x1xf32> to vector<36x128xf32>
    %220 = arith.mulf %218, %219 : vector<36x128xf32>
    %c8_163 = arith.constant 8 : index
    %c0_164 = arith.constant 0 : index
    %221 = vector.load %arg2[%c8_163, %c0_164] : memref<10x128xf32, #tpu.memory_space<vmem>>, vector<1x128xf32>
    %222 = vector.broadcast %221 : vector<1x128xf32> to vector<36x128xf32>
    %223 = arith.mulf %220, %222 : vector<36x128xf32>
    %c9 = arith.constant 9 : index
    %c0_165 = arith.constant 0 : index
    %224 = vector.load %arg2[%c9, %c0_165] : memref<10x128xf32, #tpu.memory_space<vmem>>, vector<1x128xf32>
    %225 = vector.broadcast %224 : vector<1x128xf32> to vector<36x128xf32>
    %226 = arith.addf %223, %225 : vector<36x128xf32>
    %cst_166 = arith.constant 0.000000e+00 : f32
    %227 = vector.broadcast %cst_166 : f32 to vector<36x128xf32>
    %228 = arith.maximumf %226, %227 : vector<36x128xf32>
    %229 = vector.extract_strided_slice %228 {offsets = [7, 0], sizes = [4, 128], strides = [1, 1]} : vector<36x128xf32> to vector<4x128xf32>
    %c0_167 = arith.constant 0 : index
    %c0_168 = arith.constant 0 : index
    %230 = vector.load %arg13[%c0_167, %c0_168] : memref<16x128xf32, #tpu.memory_space<vmem>>, vector<4x128xf32>
    tpu.vector_store %arg13[%c0_167, %c0_168], %229 {strides = array<i32>} : memref<16x128xf32, #tpu.memory_space<vmem>>, vector<4x128xf32>,
    %231 = vector.extract_strided_slice %228 {offsets = [13, 0], sizes = [4, 128], strides = [1, 1]} : vector<36x128xf32> to vector<4x128xf32>
    %c4_169 = arith.constant 4 : index
    %c0_170 = arith.constant 0 : index
    %232 = vector.load %arg13[%c4_169, %c0_170] : memref<16x128xf32, #tpu.memory_space<vmem>>, vector<4x128xf32>
    tpu.vector_store %arg13[%c4_169, %c0_170], %231 {strides = array<i32>} : memref<16x128xf32, #tpu.memory_space<vmem>>, vector<4x128xf32>,
    %233 = vector.extract_strided_slice %228 {offsets = [19, 0], sizes = [4, 128], strides = [1, 1]} : vector<36x128xf32> to vector<4x128xf32>
    %c8_171 = arith.constant 8 : index
    %c0_172 = arith.constant 0 : index
    %234 = vector.load %arg13[%c8_171, %c0_172] : memref<16x128xf32, #tpu.memory_space<vmem>>, vector<4x128xf32>
    tpu.vector_store %arg13[%c8_171, %c0_172], %233 {strides = array<i32>} : memref<16x128xf32, #tpu.memory_space<vmem>>, vector<4x128xf32>,
    %235 = vector.extract_strided_slice %228 {offsets = [25, 0], sizes = [4, 128], strides = [1, 1]} : vector<36x128xf32> to vector<4x128xf32>
    %c12_173 = arith.constant 12 : index
    %c0_174 = arith.constant 0 : index
    %236 = vector.load %arg13[%c12_173, %c0_174] : memref<16x128xf32, #tpu.memory_space<vmem>>, vector<4x128xf32>
    tpu.vector_store %arg13[%c12_173, %c0_174], %235 {strides = array<i32>} : memref<16x128xf32, #tpu.memory_space<vmem>>, vector<4x128xf32>,
    return
  }
  func.func @transform_0(%arg0: i32) -> (i32, i32, i32) {
    %c0_i32 = arith.constant 0 : i32
    %c0_i32_0 = arith.constant 0 : i32
    %c0_i32_1 = arith.constant 0 : i32
    return %arg0, %c0_i32, %c0_i32_0 : i32, i32, i32
  }
  func.func @transform_1(%arg0: i32) -> (i32, i32) {
    %c0_i32 = arith.constant 0 : i32
    %c0_i32_0 = arith.constant 0 : i32
    %c0_i32_1 = arith.constant 0 : i32
    return %c0_i32, %c0_i32_0 : i32, i32
  }
  func.func @transform_2(%arg0: i32) -> (i32, i32) {
    %c0_i32 = arith.constant 0 : i32
    %c0_i32_0 = arith.constant 0 : i32
    %c0_i32_1 = arith.constant 0 : i32
    return %c0_i32, %c0_i32_0 : i32, i32
  }
  func.func @transform_3(%arg0: i32) -> (i32, i32) {
    %c0_i32 = arith.constant 0 : i32
    %c0_i32_0 = arith.constant 0 : i32
    %c0_i32_1 = arith.constant 0 : i32
    return %c0_i32, %c0_i32_0 : i32, i32
  }
  func.func @transform_4(%arg0: i32) -> (i32, i32) {
    %c0_i32 = arith.constant 0 : i32
    %c0_i32_0 = arith.constant 0 : i32
    %c0_i32_1 = arith.constant 0 : i32
    return %c0_i32, %c0_i32_0 : i32, i32
  }
  func.func @transform_5(%arg0: i32) -> (i32, i32) {
    %c0_i32 = arith.constant 0 : i32
    %c0_i32_0 = arith.constant 0 : i32
    %c0_i32_1 = arith.constant 0 : i32
    return %c0_i32, %c0_i32_0 : i32, i32
  }
  func.func @transform_6(%arg0: i32) -> (i32, i32) {
    %c0_i32 = arith.constant 0 : i32
    %c0_i32_0 = arith.constant 0 : i32
    %c0_i32_1 = arith.constant 0 : i32
    return %c0_i32, %c0_i32_0 : i32, i32
  }
  func.func @transform_7(%arg0: i32) -> (i32, i32) {
    %c0_i32 = arith.constant 0 : i32
    %c0_i32_0 = arith.constant 0 : i32
    %c0_i32_1 = arith.constant 0 : i32
    return %c0_i32, %c0_i32_0 : i32, i32
  }
  func.func @transform_8(%arg0: i32) -> (i32, i32) {
    %c0_i32 = arith.constant 0 : i32
    %c0_i32_0 = arith.constant 0 : i32
    %c0_i32_1 = arith.constant 0 : i32
    return %c0_i32, %c0_i32_0 : i32, i32
  }
  func.func @transform_9(%arg0: i32) -> (i32, i32) {
    %c0_i32 = arith.constant 0 : i32
    %c0_i32_0 = arith.constant 0 : i32
    %c0_i32_1 = arith.constant 0 : i32
    return %c0_i32, %c0_i32_0 : i32, i32
  }
  func.func @transform_10(%arg0: i32) -> (i32, i32) {
    %c0_i32 = arith.constant 0 : i32
    %c0_i32_0 = arith.constant 0 : i32
    %c0_i32_1 = arith.constant 0 : i32
    return %c0_i32, %c0_i32_0 : i32, i32
  }
  func.func @transform_11(%arg0: i32) -> (i32, i32) {
    %c0_i32 = arith.constant 0 : i32
    %c0_i32_0 = arith.constant 0 : i32
    %c0_i32_1 = arith.constant 0 : i32
    return %c0_i32, %c0_i32_0 : i32, i32
  }
  func.func @transform_12(%arg0: i32) -> (i32, i32) {
    %c0_i32 = arith.constant 0 : i32
    %c0_i32_0 = arith.constant 0 : i32
    return %arg0, %c0_i32 : i32, i32
  }
}

</mosaic_0001>

<llo_original>
// kernel: _forward.1
$region0: #{_forward.1}
  #allocation0 [shape = 'u32[]', space=smem, size = 0x4, offset = 0x4, fixed_abs, tag = 'smem constant byte address 0x4 - core index']
  #allocation1 [shape = 'u32[144,128]{1,0:T(1,128)}', space=vmem, size = 0x12000, scoped, tag = 'internal scratch']
  #allocation2 [shape = 'f32[122,144]{1,0:T(8,128)}', space=vmem, size = 0x20000, scoped, tag = 'scratch operand']
  #allocation3 [shape = 'f32[122,144]{1,0:T(8,128)}', space=vmem, size = 0x20000, scoped, tag = 'scratch operand']
  #allocation4 [shape = 'f32[122,144]{1,0:T(8,128)}', space=vmem, size = 0x20000, scoped, tag = 'scratch operand']
  #allocation5 [shape = 'f32[50,288]{1,0:T(8,128)}', space=vmem, size = 0x15000, scoped, tag = 'scratch operand']
  %s0 = inlined_call_operand.vmem [shape: bf16[2,100,36], index: 0, kind: input, shape index: {}]
  %s1 = inlined_call_operand.vmem [shape: f32[10,128], index: 1, kind: input, shape index: {}]
  %s2 = inlined_call_operand.vmem [shape: bf16[36,16], index: 2, kind: input, shape index: {}]
  %s3 = inlined_call_operand.vmem [shape: bf16[144,16], index: 3, kind: input, shape index: {}]
  %s4 = inlined_call_operand.vmem [shape: bf16[144,16], index: 4, kind: input, shape index: {}]
  %s5 = inlined_call_operand.vmem [shape: bf16[144,32], index: 5, kind: input, shape index: {}]
  %s6 = inlined_call_operand.vmem [shape: bf16[288,128], index: 6, kind: input, shape index: {}]
  %s7 = inlined_call_operand.vmem [shape: f32[16,16], index: 7, kind: input, shape index: {}]
  %s8 = inlined_call_operand.vmem [shape: f32[32,32], index: 8, kind: input, shape index: {}]
  %s9 = inlined_call_operand.vmem [shape: bf16[36,100], index: 9, kind: input, shape index: {}]
  %s10 = inlined_call_operand.vmem [shape: f32[100,1], index: 10, kind: input, shape index: {}]
  %s11 = inlined_call_operand.vmem [shape: f32[36,1], index: 11, kind: input, shape index: {}]
  %s12 = inlined_call_operand.hbm [shape: f32[32,128], index: 12, kind: output, shape index: {}]
  %s13 = sld [smem:[#allocation0]]
  $region81: #{_forward.1} parent=0
    _
  %s15 = ssub.s32 1, %s13
  %s16 = scalar_select 0, %s15, %s13
  $region1: #{_forward.1} parent=0
    #allocation6 [shape = 'u8[16384]{0}', space=vmem, size = 0x4000, scoped, tag = 'output window, operand 0']
    #allocation7 [shape = 's32[2]{0}', space=sflag, size = 0x8, scoped, tag = 'scoped memory for _forward.1']
    %17 = vsyncpa [#allocation7], 0
    %s18 = scalar_lea.sflag [#allocation7], 1
    %19 = vsyncpa %s18, 0
    loop: start=0, step=1, limit=4
    $region2: #{_forward.1} parent=1 // loop_pre_header
      _
    $region3: #{_forward.1} parent=1 // loop_header
      %s21 = sphi 0, %s25
      %p22 = scmp.ge.s32.totalorder %s21, 4
      %s31 = sphi 0, %s33
      %s34 = sphi 0, %s31
      %s35 = sphi 0, %s34
      %s51 = sphi 0, %s35
      %s55 = sphi 0, %s55
      %s57 = sphi 0, %s55
      %s58 = sphi 0, %s57
      %s72 = sphi 0, %s58
      %s76 = sphi 0, %s76
      %s78 = sphi 0, %s76
      %s79 = sphi 0, %s78
      %s93 = sphi 0, %s79
      %s97 = sphi 0, %s97
      %s99 = sphi 0, %s97
      %s100 = sphi 0, %s99
      %s114 = sphi 0, %s100
      %s118 = sphi 0, %s118
      %s120 = sphi 0, %s118
      %s121 = sphi 0, %s120
      %s135 = sphi 0, %s121
      %s139 = sphi 0, %s139
      %s141 = sphi 0, %s139
      %s142 = sphi 0, %s141
      %s156 = sphi 0, %s142
      %s160 = sphi 0, %s160
      %s162 = sphi 0, %s160
      %s163 = sphi 0, %s162
      %s177 = sphi 0, %s163
      %s181 = sphi 0, %s181
      %s183 = sphi 0, %s181
      %s184 = sphi 0, %s183
      %s198 = sphi 0, %s184
      %s202 = sphi 0, %s202
      %s204 = sphi 0, %s202
      %s205 = sphi 0, %s204
      %s219 = sphi 0, %s205
      %s223 = sphi 0, %s223
      %s225 = sphi 0, %s223
      %s226 = sphi 0, %s225
      %s240 = sphi 0, %s226
      %s244 = sphi 0, %s244
      %s246 = sphi 0, %s244
      %s247 = sphi 0, %s246
      %s261 = sphi 0, %s247
      %s265 = sphi 0, %s265
      %s267 = sphi 0, %s265
      %s268 = sphi 0, %s267
      %s282 = sphi 0, %s268
      %s288 = sphi 0, %s290
      %s291 = sphi 0, %s288
      %s292 = sphi 0, %s291
      %s308 = sphi 0, %s292
    $region4: #{_forward.1} parent=1 // loop_header_branch
      %24 = sbr.rel (%p22) target = $region8
    $region5: #{_forward.1} parent=1 // loop_body
      %s26 = ssub.s32 %s21, 1
      %s27 = ssub.s32 %s21, 2
      %s28 = sadd.s32 %s21, 1
      %s29 = ssub.s32 %s21, %s28
      %p30 = scmp.eq.s32.totalorder %s29, 0
      %s32 = sadd.s32 %s31, 1
      %s33 = scalar_select %p30, %s31, %s32
      %p36 = pneg %p30
      %p37 = scmp.eq.s32.totalorder %s21, 1
      %p38 = por %p36, %p37
      %p39 = scmp.ne.s32.totalorder %s31, %s34
      %p40 = scmp.eq.s32.totalorder %s21, 0
      %p41 = por %p39, %p40
      %p42 = scmp.ne.s32.totalorder %s31, %s34
      %p43 = scmp.eq.s32.totalorder %s26, 1
      %p44 = por %p42, %p43
      %p45 = scmp.ne.s32.totalorder %s34, %s35
      %p46 = scmp.eq.s32.totalorder %s26, 0
      %p47 = por %p45, %p46
      %p48 = scmp.ne.s32.totalorder %s34, %s35
      %p49 = scmp.eq.s32.totalorder %s27, 1
      %p50 = por %p48, %p49
      %p52 = scmp.ne.s32.totalorder %s35, %s51
      %p53 = scmp.eq.s32.totalorder %s27, 0
      %p54 = por %p52, %p53
      %s56 = sadd.s32 %s55, 1
      %p59 = scmp.eq.s32.totalorder %s21, 1
      %p60 = scmp.ne.s32.totalorder %s55, %s57
      %p61 = scmp.eq.s32.totalorder %s21, 0
      %p62 = por %p60, %p61
      %p63 = scmp.ne.s32.totalorder %s55, %s57
      %p64 = scmp.eq.s32.totalorder %s26, 1
      %p65 = por %p63, %p64
      %p66 = scmp.ne.s32.totalorder %s57, %s58
      %p67 = scmp.eq.s32.totalorder %s26, 0
      %p68 = por %p66, %p67
      %p69 = scmp.ne.s32.totalorder %s57, %s58
      %p70 = scmp.eq.s32.totalorder %s27, 1
      %p71 = por %p69, %p70
      %p73 = scmp.ne.s32.totalorder %s58, %s72
      %p74 = scmp.eq.s32.totalorder %s27, 0
      %p75 = por %p73, %p74
      %s77 = sadd.s32 %s76, 1
      %p80 = scmp.eq.s32.totalorder %s21, 1
      %p81 = scmp.ne.s32.totalorder %s76, %s78
      %p82 = scmp.eq.s32.totalorder %s21, 0
      %p83 = por %p81, %p82
      %p84 = scmp.ne.s32.totalorder %s76, %s78
      %p85 = scmp.eq.s32.totalorder %s26, 1
      %p86 = por %p84, %p85
      %p87 = scmp.ne.s32.totalorder %s78, %s79
      %p88 = scmp.eq.s32.totalorder %s26, 0
      %p89 = por %p87, %p88
      %p90 = scmp.ne.s32.totalorder %s78, %s79
      %p91 = scmp.eq.s32.totalorder %s27, 1
      %p92 = por %p90, %p91
      %p94 = scmp.ne.s32.totalorder %s79, %s93
      %p95 = scmp.eq.s32.totalorder %s27, 0
      %p96 = por %p94, %p95
      %s98 = sadd.s32 %s97, 1
      %p101 = scmp.eq.s32.totalorder %s21, 1
      %p102 = scmp.ne.s32.totalorder %s97, %s99
      %p103 = scmp.eq.s32.totalorder %s21, 0
      %p104 = por %p102, %p103
      %p105 = scmp.ne.s32.totalorder %s97, %s99
      %p106 = scmp.eq.s32.totalorder %s26, 1
      %p107 = por %p105, %p106
      %p108 = scmp.ne.s32.totalorder %s99, %s100
      %p109 = scmp.eq.s32.totalorder %s26, 0
      %p110 = por %p108, %p109
      %p111 = scmp.ne.s32.totalorder %s99, %s100
      %p112 = scmp.eq.s32.totalorder %s27, 1
      %p113 = por %p111, %p112
      %p115 = scmp.ne.s32.totalorder %s100, %s114
      %p116 = scmp.eq.s32.totalorder %s27, 0
      %p117 = por %p115, %p116
      %s119 = sadd.s32 %s118, 1
      %p122 = scmp.eq.s32.totalorder %s21, 1
      %p123 = scmp.ne.s32.totalorder %s118, %s120
      %p124 = scmp.eq.s32.totalorder %s21, 0
      %p125 = por %p123, %p124
      %p126 = scmp.ne.s32.totalorder %s118, %s120
      %p127 = scmp.eq.s32.totalorder %s26, 1
      %p128 = por %p126, %p127
      %p129 = scmp.ne.s32.totalorder %s120, %s121
      %p130 = scmp.eq.s32.totalorder %s26, 0
      %p131 = por %p129, %p130
      %p132 = scmp.ne.s32.totalorder %s120, %s121
      %p133 = scmp.eq.s32.totalorder %s27, 1
      %p134 = por %p132, %p133
      %p136 = scmp.ne.s32.totalorder %s121, %s135
      %p137 = scmp.eq.s32.totalorder %s27, 0
      %p138 = por %p136, %p137
      %s140 = sadd.s32 %s139, 1
      %p143 = scmp.eq.s32.totalorder %s21, 1
      %p144 = scmp.ne.s32.totalorder %s139, %s141
      %p145 = scmp.eq.s32.totalorder %s21, 0
      %p146 = por %p144, %p145
      %p147 = scmp.ne.s32.totalorder %s139, %s141
      %p148 = scmp.eq.s32.totalorder %s26, 1
      %p149 = por %p147, %p148
      %p150 = scmp.ne.s32.totalorder %s141, %s142
      %p151 = scmp.eq.s32.totalorder %s26, 0
      %p152 = por %p150, %p151
      %p153 = scmp.ne.s32.totalorder %s141, %s142
      %p154 = scmp.eq.s32.totalorder %s27, 1
      %p155 = por %p153, %p154
      %p157 = scmp.ne.s32.totalorder %s142, %s156
      %p158 = scmp.eq.s32.totalorder %s27, 0
      %p159 = por %p157, %p158
      %s161 = sadd.s32 %s160, 1
      %p164 = scmp.eq.s32.totalorder %s21, 1
      %p165 = scmp.ne.s32.totalorder %s160, %s162
      %p166 = scmp.eq.s32.totalorder %s21, 0
      %p167 = por %p165, %p166
      %p168 = scmp.ne.s32.totalorder %s160, %s162
      %p169 = scmp.eq.s32.totalorder %s26, 1
      %p170 = por %p168, %p169
      %p171 = scmp.ne.s32.totalorder %s162, %s163
      %p172 = scmp.eq.s32.totalorder %s26, 0
      %p173 = por %p171, %p172
      %p174 = scmp.ne.s32.totalorder %s162, %s163
      %p175 = scmp.eq.s32.totalorder %s27, 1
      %p176 = por %p174, %p175
      %p178 = scmp.ne.s32.totalorder %s163, %s177
      %p179 = scmp.eq.s32.totalorder %s27, 0
      %p180 = por %p178, %p179
      %s182 = sadd.s32 %s181, 1
      %p185 = scmp.eq.s32.totalorder %s21, 1
      %p186 = scmp.ne.s32.totalorder %s181, %s183
      %p187 = scmp.eq.s32.totalorder %s21, 0
      %p188 = por %p186, %p187
      %p189 = scmp.ne.s32.totalorder %s181, %s183
      %p190 = scmp.eq.s32.totalorder %s26, 1
      %p191 = por %p189, %p190
      %p192 = scmp.ne.s32.totalorder %s183, %s184
      %p193 = scmp.eq.s32.totalorder %s26, 0
      %p194 = por %p192, %p193
      %p195 = scmp.ne.s32.totalorder %s183, %s184
      %p196 = scmp.eq.s32.totalorder %s27, 1
      %p197 = por %p195, %p196
      %p199 = scmp.ne.s32.totalorder %s184, %s198
      %p200 = scmp.eq.s32.totalorder %s27, 0
      %p201 = por %p199, %p200
      %s203 = sadd.s32 %s202, 1
      %p206 = scmp.eq.s32.totalorder %s21, 1
      %p207 = scmp.ne.s32.totalorder %s202, %s204
      %p208 = scmp.eq.s32.totalorder %s21, 0
      %p209 = por %p207, %p208
      %p210 = scmp.ne.s32.totalorder %s202, %s204
      %p211 = scmp.eq.s32.totalorder %s26, 1
      %p212 = por %p210, %p211
      %p213 = scmp.ne.s32.totalorder %s204, %s205
      %p214 = scmp.eq.s32.totalorder %s26, 0
      %p215 = por %p213, %p214
      %p216 = scmp.ne.s32.totalorder %s204, %s205
      %p217 = scmp.eq.s32.totalorder %s27, 1
      %p218 = por %p216, %p217
      %p220 = scmp.ne.s32.totalorder %s205, %s219
      %p221 = scmp.eq.s32.totalorder %s27, 0
      %p222 = por %p220, %p221
      %s224 = sadd.s32 %s223, 1
      %p227 = scmp.eq.s32.totalorder %s21, 1
      %p228 = scmp.ne.s32.totalorder %s223, %s225
      %p229 = scmp.eq.s32.totalorder %s21, 0
      %p230 = por %p228, %p229
      %p231 = scmp.ne.s32.totalorder %s223, %s225
      %p232 = scmp.eq.s32.totalorder %s26, 1
      %p233 = por %p231, %p232
      %p234 = scmp.ne.s32.totalorder %s225, %s226
      %p235 = scmp.eq.s32.totalorder %s26, 0
      %p236 = por %p234, %p235
      %p237 = scmp.ne.s32.totalorder %s225, %s226
      %p238 = scmp.eq.s32.totalorder %s27, 1
      %p239 = por %p237, %p238
      %p241 = scmp.ne.s32.totalorder %s226, %s240
      %p242 = scmp.eq.s32.totalorder %s27, 0
      %p243 = por %p241, %p242
      %s245 = sadd.s32 %s244, 1
      %p248 = scmp.eq.s32.totalorder %s21, 1
      %p249 = scmp.ne.s32.totalorder %s244, %s246
      %p250 = scmp.eq.s32.totalorder %s21, 0
      %p251 = por %p249, %p250
      %p252 = scmp.ne.s32.totalorder %s244, %s246
      %p253 = scmp.eq.s32.totalorder %s26, 1
      %p254 = por %p252, %p253
      %p255 = scmp.ne.s32.totalorder %s246, %s247
      %p256 = scmp.eq.s32.totalorder %s26, 0
      %p257 = por %p255, %p256
      %p258 = scmp.ne.s32.totalorder %s246, %s247
      %p259 = scmp.eq.s32.totalorder %s27, 1
      %p260 = por %p258, %p259
      %p262 = scmp.ne.s32.totalorder %s247, %s261
      %p263 = scmp.eq.s32.totalorder %s27, 0
      %p264 = por %p262, %p263
      %s266 = sadd.s32 %s265, 1
      %p269 = scmp.eq.s32.totalorder %s21, 1
      %p270 = scmp.ne.s32.totalorder %s265, %s267
      %p271 = scmp.eq.s32.totalorder %s21, 0
      %p272 = por %p270, %p271
      %p273 = scmp.ne.s32.totalorder %s265, %s267
      %p274 = scmp.eq.s32.totalorder %s26, 1
      %p275 = por %p273, %p274
      %p276 = scmp.ne.s32.totalorder %s267, %s268
      %p277 = scmp.eq.s32.totalorder %s26, 0
      %p278 = por %p276, %p277
      %p279 = scmp.ne.s32.totalorder %s267, %s268
      %p280 = scmp.eq.s32.totalorder %s27, 1
      %p281 = por %p279, %p280
      %p283 = scmp.ne.s32.totalorder %s268, %s282
      %p284 = scmp.eq.s32.totalorder %s27, 0
      %p285 = por %p283, %p284
      %s286 = ssub.s32 %s21, %s28
      %p287 = scmp.eq.s32.totalorder %s286, 0
      %s289 = sadd.s32 %s288, 1
      %s290 = scalar_select %p287, %s288, %s289
      %p293 = pneg %p287
      %p294 = scmp.eq.s32.totalorder %s21, 1
      %p295 = por %p293, %p294
      %p296 = scmp.ne.s32.totalorder %s288, %s291
      %p297 = scmp.eq.s32.totalorder %s21, 0
      %p298 = por %p296, %p297
      %p299 = scmp.ne.s32.totalorder %s288, %s291
      %p300 = scmp.eq.s32.totalorder %s26, 1
      %p301 = por %p299, %p300
      %p302 = scmp.ne.s32.totalorder %s291, %s292
      %p303 = scmp.eq.s32.totalorder %s26, 0
      %p304 = por %p302, %p303
      %p305 = scmp.ne.s32.totalorder %s291, %s292
      %p306 = scmp.eq.s32.totalorder %s27, 1
      %p307 = por %p305, %p306
      %p309 = scmp.ne.s32.totalorder %s292, %s308
      %p310 = scmp.eq.s32.totalorder %s27, 0
      %p311 = por %p309, %p310
      %p312 = scmp.le.s32.totalorder 1, %s21
      %p313 = scmp.lt.s32.totalorder %s21, 3
      %p314 = pnand %p312, %p313
      %p315 = pneg %p314
      // Predicated region
      $region9: #{_forward.1} parent=5 // pred_check
        _
      $region10: #{_forward.1} parent=5 // pred_check_branch
        %317 = sbr.rel (%p314) target = $region12
      $region11: #{_forward.1} parent=5 // pred_region
        %s318 = ssub.s32 %s21, 1
        // Predicated region
        $region13: #{_forward.1} parent=11 // pred_check
          %p319 = pneg %p68
        $region14: #{_forward.1} parent=11 // pred_check_branch
          %321 = sbr.rel (%p319) target = $region16
        $region15: #{_forward.1} parent=11 // pred_region
          _
        $region16: #{_forward.1} parent=11 // pred_fallthru
          _
        // Predicated region
        $region17: #{_forward.1} parent=11 // pred_check
          %p322 = pneg %p89
        $region18: #{_forward.1} parent=11 // pred_check_branch
          %324 = sbr.rel (%p322) target = $region20
        $region19: #{_forward.1} parent=11 // pred_region
          _
        $region20: #{_forward.1} parent=11 // pred_fallthru
          _
        // Predicated region
        $region21: #{_forward.1} parent=11 // pred_check
          %p325 = pneg %p110
        $region22: #{_forward.1} parent=11 // pred_check_branch
          %327 = sbr.rel (%p325) target = $region24
        $region23: #{_forward.1} parent=11 // pred_region
          _
        $region24: #{_forward.1} parent=11 // pred_fallthru
          _
        // Predicated region
        $region25: #{_forward.1} parent=11 // pred_check
          %p328 = pneg %p131
        $region26: #{_forward.1} parent=11 // pred_check_branch
          %330 = sbr.rel (%p328) target = $region28
        $region27: #{_forward.1} parent=11 // pred_region
          _
        $region28: #{_forward.1} parent=11 // pred_fallthru
          _
        // Predicated region
        $region29: #{_forward.1} parent=11 // pred_check
          %p331 = pneg %p152
        $region30: #{_forward.1} parent=11 // pred_check_branch
          %333 = sbr.rel (%p331) target = $region32
        $region31: #{_forward.1} parent=11 // pred_region
          _
        $region32: #{_forward.1} parent=11 // pred_fallthru
          _
        // Predicated region
        $region33: #{_forward.1} parent=11 // pred_check
          %p334 = pneg %p173
        $region34: #{_forward.1} parent=11 // pred_check_branch
          %336 = sbr.rel (%p334) target = $region36
        $region35: #{_forward.1} parent=11 // pred_region
          _
        $region36: #{_forward.1} parent=11 // pred_fallthru
          _
        // Predicated region
        $region37: #{_forward.1} parent=11 // pred_check
          %p337 = pneg %p194
        $region38: #{_forward.1} parent=11 // pred_check_branch
          %339 = sbr.rel (%p337) target = $region40
        $region39: #{_forward.1} parent=11 // pred_region
          _
        $region40: #{_forward.1} parent=11 // pred_fallthru
          _
        // Predicated region
        $region41: #{_forward.1} parent=11 // pred_check
          %p340 = pneg %p215
        $region42: #{_forward.1} parent=11 // pred_check_branch
          %342 = sbr.rel (%p340) target = $region44
        $region43: #{_forward.1} parent=11 // pred_region
          _
        $region44: #{_forward.1} parent=11 // pred_fallthru
          _
        // Predicated region
        $region45: #{_forward.1} parent=11 // pred_check
          %p343 = pneg %p236
        $region46: #{_forward.1} parent=11 // pred_check_branch
          %345 = sbr.rel (%p343) target = $region48
        $region47: #{_forward.1} parent=11 // pred_region
          _
        $region48: #{_forward.1} parent=11 // pred_fallthru
          _
        // Predicated region
        $region49: #{_forward.1} parent=11 // pred_check
          %p346 = pneg %p257
        $region50: #{_forward.1} parent=11 // pred_check_branch
          %348 = sbr.rel (%p346) target = $region52
        $region51: #{_forward.1} parent=11 // pred_region
          _
        $region52: #{_forward.1} parent=11 // pred_fallthru
          _
        // Predicated region
        $region53: #{_forward.1} parent=11 // pred_check
          %p349 = pneg %p278
        $region54: #{_forward.1} parent=11 // pred_check_branch
          %351 = sbr.rel (%p349) target = $region56
        $region55: #{_forward.1} parent=11 // pred_region
          _
        $region56: #{_forward.1} parent=11 // pred_fallthru
          _
      $region12: #{_forward.1} parent=5 // pred_fallthru
        _
      %p352 = scmp.lt.s32.totalorder %s21, 2
      // Predicated region
      $region57: #{_forward.1} parent=5 // pred_check
        %p353 = pneg %p352
      $region58: #{_forward.1} parent=5 // pred_check_branch
        %355 = sbr.rel (%p353) target = $region60
      $region59: #{_forward.1} parent=5 // pred_region
        // Predicated region
        $region61: #{_forward.1} parent=59 // pred_check
          %p356 = pneg %p41
        $region62: #{_forward.1} parent=59 // pred_check_branch
          %358 = sbr.rel (%p356) target = $region64
        $region63: #{_forward.1} parent=59 // pred_region
          %p359 = scmp.lt.s32.totalorder %s21, 1
          %s360 = scalar_select %p359, %s21, 1
          %s361 = smul.addr %s360, 13
          %s362 = smul.addr %s361, 4
          %s363 = scalar_lea.vmem %s0, %s362
        $region64: #{_forward.1} parent=59 // pred_fallthru
          _
      $region60: #{_forward.1} parent=5 // pred_fallthru
        _
      %p364 = scmp.le.s32.totalorder 1, %s21
      %p365 = scmp.lt.s32.totalorder %s21, 3
      %p366 = pnand %p364, %p365
      %p367 = pneg %p366
      // Predicated region
      $region65: #{_forward.1} parent=5 // pred_check
        _
      $region66: #{_forward.1} parent=5 // pred_check_branch
        %369 = sbr.rel (%p366) target = $region68
      $region67: #{_forward.1} parent=5 // pred_region
        %s370 = ssub.s32 %s21, 1
        %p371 = scmp.lt.s32.totalorder %s26, 1
        %s372 = scalar_select %p371, %s26, 1
        %s373 = smul.addr %s372, 13
        %s374 = smul.addr %s373, 4
        %s375 = scalar_lea.vmem %s0, %s374
        %p376 = pneg %p47
        %p377 = pneg %p44
        %p378 = pneg %p68
        %p379 = pneg %p65
        %p380 = pneg %p89
        %p381 = pneg %p86
        %p382 = pneg %p110
        %p383 = pneg %p107
        %p384 = pneg %p131
        %p385 = pneg %p128
        %p386 = pneg %p152
        %p387 = pneg %p149
        %p388 = pneg %p173
        %p389 = pneg %p170
        %p390 = pneg %p194
        %p391 = pneg %p191
        %p392 = pneg %p215
        %p393 = pneg %p212
        %p394 = pneg %p236
        %p395 = pneg %p233
        %p396 = pneg %p257
        %p397 = pneg %p254
        %p398 = pneg %p278
        %p399 = pneg %p275
        %p400 = pneg %p304
        %p401 = pneg %p301
        %s402 = sand.u32 %s291, 1
        %s403 = scalar_lea.sflag [#allocation7], %s402
        %s404 = sand.u32 %s291, 1
        %s405 = smul.addr %s404, 16
        %s406 = scalar_lea.vmem [#allocation6], %s405
        %p407 = scmp.lt.s32.totalorder %s26, 1
        %s408 = scalar_select %p407, %s26, 1
        %s409 = smul.addr %s408, 13
        %s410 = smul.addr %s409, 4
        %s411 = scalar_lea.vmem %s0, %s410
        %s412 = smul.u32 2, %s26
        %v414 = vld [vmem:[%s10] sm:$0xff]
        %v415 = vld [vmem:[%s10 + $0x8] sm:$0xff]
        %v416 = vld [vmem:[%s10 + $0x10] sm:$0xff]
        %v417 = vld [vmem:[%s10 + $0x18] sm:$0xff]
        %v418 = vld [vmem:[%s10 + $0x20] sm:$0xff]
        %v419 = vld [vmem:[%s10 + $0x28] sm:$0xff]
        %v420 = vld [vmem:[%s10 + $0x30] sm:$0xff]
        %v421 = vld [vmem:[%s10 + $0x38] sm:$0xff]
        %v422 = vld [vmem:[%s10 + $0x40] sm:$0xff]
        %v423 = vld [vmem:[%s10 + $0x48] sm:$0xff]
        %v424 = vld [vmem:[%s10 + $0x50] sm:$0xff]
        %v425 = vld [vmem:[%s10 + $0x58] sm:$0xff]
        %v426 = vld [vmem:[%s10 + $0x60] sm:$0xf]
        %v427 = vld [vmem:[%s11] sm:$0xff]
        %v428 = vld [vmem:[%s11 + $0x8] sm:$0xff]
        %v429 = vld [vmem:[%s11 + $0x10] sm:$0xff]
        %v430 = vld [vmem:[%s11 + $0x18] sm:$0xff]
        %v431 = vld [vmem:[%s11 + $0x20] sm:$0xf]
        %v432 = vld [vmem:[%s411] sm:$0xf]
        %v433 = vld [vmem:[%s411 + $0x4] sm:$0xf]
        %v434 = vld [vmem:[%s411 + $0x8] sm:$0xf]
        %v435 = vld [vmem:[%s411 + $0xc] sm:$0xf]
        %v436 = vld [vmem:[%s411 + $0x10] sm:$0xf]
        %v437 = vld [vmem:[%s411 + $0x14] sm:$0xf]
        %v438 = vld [vmem:[%s411 + $0x18] sm:$0xf]
        %v439 = vld [vmem:[%s411 + $0x1c] sm:$0xf]
        %v440 = vld [vmem:[%s411 + $0x20] sm:$0xf]
        %v441 = vld [vmem:[%s411 + $0x24] sm:$0xf]
        %v442 = vld [vmem:[%s411 + $0x28] sm:$0xf]
        %v443 = vld [vmem:[%s411 + $0x2c] sm:$0xf]
        %v444 = vld [vmem:[%s411 + $0x30] sm:$0x3]
        %v445 = vld [vmem:[%s2] sm:$0xf]
        %v446 = vld [vmem:[%s2 + $0x4] sm:$0xf]
        %v447 = vld [vmem:[%s2 + $0x8] sm:$0xf]
        %v448 = vld [vmem:[%s2 + $0xc] sm:$0xf]
        %v449 = vld [vmem:[%s2 + $0x10] sm:$0x3]
        %v463 = vunpack.c.l.b16 %v432
        %v464 = vunpack.c.l.b16 %v433
        %v465 = vunpack.c.l.b16 %v434
        %v466 = vunpack.c.l.b16 %v435
        %v467 = vunpack.c.l.b16 %v436
        %v468 = vunpack.c.l.b16 %v437
        %v469 = vunpack.c.l.b16 %v438
        %v470 = vunpack.c.l.b16 %v439
        %v471 = vunpack.c.l.b16 %v440
        %v472 = vunpack.c.l.b16 %v441
        %v473 = vunpack.c.l.b16 %v442
        %v474 = vunpack.c.l.b16 %v443
        %v475 = vunpack.c.l.b16 %v444
        %v476 = vpack.c.b16 %v464, %v463
        %v477 = vpack.c.b16 %v466, %v465
        %v478 = vpack.c.b16 %v468, %v467
        %v479 = vpack.c.b16 %v470, %v469
        %v480 = vpack.c.b16 %v472, %v471
        %v481 = vpack.c.b16 %v474, %v473
        %v482 = vpack.c.b16 %v475, %v475
        %v488 = vunpack.c.l.b16 %v445
        %v489 = vunpack.c.l.b16 %v446
        %v490 = vunpack.c.l.b16 %v447
        %v491 = vunpack.c.l.b16 %v448
        %v492 = vunpack.c.l.b16 %v449
        %v493 = vpack.c.b16 %v489, %v488
        %v494 = vpack.c.b16 %v491, %v490
        %v495 = vpack.c.b16 %v492, %v492
        %vm498 = vcmask 293888
        %v500 = vsel %vm498, %v476, 0
        %v503 = vsel %vm498, %v477, 0
        %v506 = vsel %vm498, %v478, 0
        %v509 = vsel %vm498, %v479, 0
        %v512 = vsel %vm498, %v480, 0
        %v515 = vsel %vm498, %v481, 0
        %v518 = vsel %vm498, %v482, 0
        %vm520 = vcmask 1041408
        %v522 = vsel %vm520, %v495, 0
        %524 = vmatprep.subr.bf16.mxu0 0
        %525 = vmatpush1.bf16.msra.mxu0 0
        %526 = vmatprep.subr.bf16.mxu0 0
        %527 = vmatpush1.bf16.msra.mxu0 0
        %528 = vmatprep.subr.bf16.mxu0 0
        %529 = vmatpush1.bf16.msra.mxu0 0
        %530 = vmatprep.subr.bf16.mxu0 0
        %531 = vmatpush1.bf16.msra.mxu0 0
        %532 = vmatprep.subr.bf16.mxu0 0
        %533 = vmatpush1.bf16.msra.mxu0 0
        %534 = vmatprep.subr.bf16.mxu0 0
        %535 = vmatpush1.bf16.msra.mxu0 %v522
        %536 = vmatprep.subr.bf16.mxu0 0
        %537 = vmatpush1.bf16.msra.mxu0 %v494
        %538 = vmatprep.subr.bf16.mxu0 0
        %539 = vmatpush1.bf16.msra.mxu0 %v493
        %540 = vmatprep.subr.bf16.mxu0 0
        %541 = vmatpush2.bf16.msra.mxu0 0
        %542 = vmatprep.subr.bf16.mxu0 0
        %543 = vmatpush2.bf16.msra.mxu0 0
        %544 = vmatprep.subr.bf16.mxu0 0
        %545 = vmatpush2.bf16.msra.mxu0 0
        %546 = vmatprep.subr.bf16.mxu0 0
        %547 = vmatpush2.bf16.msra.mxu0 0
        %548 = vmatprep.subr.bf16.mxu0 0
        %549 = vmatpush2.bf16.msra.mxu0 0
        %550 = vmatprep.subr.bf16.mxu0 0
        %551 = vmatpush2.bf16.msra.mxu0 0
        %552 = vmatprep.subr.bf16.mxu0 0
        %553 = vmatpush2.bf16.msra.mxu0 0
        %554 = vmatprep.subr.bf16.mxu0 0
        %555 = vmatpush2.bf16.msra.mxu0 0
        %556 = vmatprep.mubr.bf16.mxu0 0
        %557 = vmatmul.mubr.bf16.gmra.mxu0 %v500
        %v558 = vpop.f32.mrf.mxu0
        %v559 = vadd.f32 0.0, %v558
        %v560 = vpop.f32.mrf.mxu0
        %v561 = vpop.f32.mrf.mxu0
        %v562 = vadd.f32 0.0, %v561
        %v563 = vpop.f32.mrf.mxu0
        %564 = vmatprep.mubr.bf16.mxu0 0
        %565 = vmatmul.mubr.bf16.gmra.mxu0 %v503
        %v566 = vpop.f32.mrf.mxu0
        %v567 = vadd.f32 0.0, %v566
        %v568 = vpop.f32.mrf.mxu0
        %v569 = vpop.f32.mrf.mxu0
        %v570 = vadd.f32 0.0, %v569
        %v571 = vpop.f32.mrf.mxu0
        %572 = vmatprep.mubr.bf16.mxu0 0
        %573 = vmatmul.mubr.bf16.gmra.mxu0 %v506
        %v574 = vpop.f32.mrf.mxu0
        %v575 = vadd.f32 0.0, %v574
        %v576 = vpop.f32.mrf.mxu0
        %v577 = vpop.f32.mrf.mxu0
        %v578 = vadd.f32 0.0, %v577
        %v579 = vpop.f32.mrf.mxu0
        %580 = vmatprep.mubr.bf16.mxu0 0
        %581 = vmatmul.mubr.bf16.gmra.mxu0 %v509
        %v582 = vpop.f32.mrf.mxu0
        %v583 = vadd.f32 0.0, %v582
        %v584 = vpop.f32.mrf.mxu0
        %v585 = vpop.f32.mrf.mxu0
        %v586 = vadd.f32 0.0, %v585
        %v587 = vpop.f32.mrf.mxu0
        %588 = vmatprep.mubr.bf16.mxu0 0
        %589 = vmatmul.mubr.bf16.gmra.mxu0 %v512
        %v590 = vpop.f32.mrf.mxu0
        %v591 = vadd.f32 0.0, %v590
        %v592 = vpop.f32.mrf.mxu0
        %v593 = vpop.f32.mrf.mxu0
        %v594 = vadd.f32 0.0, %v593
        %v595 = vpop.f32.mrf.mxu0
        %596 = vmatprep.mubr.bf16.mxu0 0
        %597 = vmatmul.mubr.bf16.gmra.mxu0 %v515
        %v598 = vpop.f32.mrf.mxu0
        %v599 = vadd.f32 0.0, %v598
        %v600 = vpop.f32.mrf.mxu0
        %v601 = vpop.f32.mrf.mxu0
        %v602 = vadd.f32 0.0, %v601
        %v603 = vpop.f32.mrf.mxu0
        %604 = vmatprep.mubr.bf16.mxu0 0
        %605 = vmatmul.mubr.bf16.gmra.mxu0 %v518
        %v606 = vpop.f32.mrf.mxu0
        %v607 = vadd.f32 0.0, %v606
        %v608 = vpop.f32.mrf.mxu0
        %v609 = vpop.f32.mrf.mxu0
        %v610 = vpop.f32.mrf.mxu0
        %611 = vdwg.mxu0
        %v612 = vld [vmem:[%s1] sm:$0x1]
        %v613 = vld [vmem:[%s1 + $0x1] sm:$0x1]
        %vm614 = vcmask 130048
        %v615 = vsel %vm614, %v559, 0.0
        %v616 = vsel %vm614, %v562, 0.0
        %v617 = vadd.f32 %v615, %v616
        %v618 = vsel %vm614, %v567, 0.0
        %v619 = vadd.f32 %v617, %v618
        %v620 = vsel %vm614, %v570, 0.0
        %v621 = vadd.f32 %v619, %v620
        %v622 = vsel %vm614, %v575, 0.0
        %v623 = vadd.f32 %v621, %v622
        %v624 = vsel %vm614, %v578, 0.0
        %v625 = vadd.f32 %v623, %v624
        %v626 = vsel %vm614, %v583, 0.0
        %v627 = vadd.f32 %v625, %v626
        %v628 = vsel %vm614, %v586, 0.0
        %v629 = vadd.f32 %v627, %v628
        %v630 = vsel %vm614, %v591, 0.0
        %v631 = vadd.f32 %v629, %v630
        %v632 = vsel %vm614, %v594, 0.0
        %v633 = vadd.f32 %v631, %v632
        %v634 = vsel %vm614, %v599, 0.0
        %v635 = vadd.f32 %v633, %v634
        %v636 = vsel %vm614, %v602, 0.0
        %v637 = vadd.f32 %v635, %v636
        %vm638 = vcmask 125952
        %v639 = vsel %vm638, %v607, 0.0
        %v640 = vadd.f32 %v637, %v639
        %v641 = vrot.slane %v640, 4
        %v642 = vadd.f32 %v640, %v641
        %v643 = vrot.slane %v642, 2
        %v644 = vadd.f32 %v642, %v643
        %v645 = vrot.slane %v644, 1
        %v646 = vadd.f32 %v644, %v645
        %v647 = vmul.f32 %v559, %v559
        %v648 = vmul.f32 %v562, %v562
        %v649 = vmul.f32 %v567, %v567
        %v650 = vmul.f32 %v570, %v570
        %v651 = vmul.f32 %v575, %v575
        %v652 = vmul.f32 %v578, %v578
        %v653 = vmul.f32 %v583, %v583
        %v654 = vmul.f32 %v586, %v586
        %v655 = vmul.f32 %v591, %v591
        %v656 = vmul.f32 %v594, %v594
        %v657 = vmul.f32 %v599, %v599
        %v658 = vmul.f32 %v602, %v602
        %v659 = vmul.f32 %v607, %v607
        %v660 = vsel %vm614, %v647, 0.0
        %v661 = vsel %vm614, %v648, 0.0
        %v662 = vadd.f32 %v660, %v661
        %v663 = vsel %vm614, %v649, 0.0
        %v664 = vadd.f32 %v662, %v663
        %v665 = vsel %vm614, %v650, 0.0
        %v666 = vadd.f32 %v664, %v665
        %v667 = vsel %vm614, %v651, 0.0
        %v668 = vadd.f32 %v666, %v667
        %v669 = vsel %vm614, %v652, 0.0
        %v670 = vadd.f32 %v668, %v669
        %v671 = vsel %vm614, %v653, 0.0
        %v672 = vadd.f32 %v670, %v671
        %v673 = vsel %vm614, %v654, 0.0
        %v674 = vadd.f32 %v672, %v673
        %v675 = vsel %vm614, %v655, 0.0
        %v676 = vadd.f32 %v674, %v675
        %v677 = vsel %vm614, %v656, 0.0
        %v678 = vadd.f32 %v676, %v677
        %v679 = vsel %vm614, %v657, 0.0
        %v680 = vadd.f32 %v678, %v679
        %v681 = vsel %vm614, %v658, 0.0
        %v682 = vadd.f32 %v680, %v681
        %v683 = vsel %vm638, %v659, 0.0
        %v684 = vadd.f32 %v682, %v683
        %v685 = vrot.slane %v684, 4
        %v686 = vadd.f32 %v684, %v685
        %v687 = vrot.slane %v686, 2
        %v688 = vadd.f32 %v686, %v687
        %v689 = vrot.slane %v688, 1
        %v690 = vadd.f32 %v688, %v689
        %v691 = vld [vmem:[%s7] sm:$0xff]
        %v692 = vld [vmem:[%s7 + $0x8] sm:$0xff]
        %v694 = vsel %vm614, %v646, 0
        %696 = vmatprep.subr.mxu0 0.0
        %697 = vmatpush1.msra.mxu0 0.0
        %698 = vmatprep.subr.mxu0 0.0
        %699 = vmatpush1.msra.mxu0 0.0
        %700 = vmatprep.subr.mxu0 0.0
        %701 = vmatpush1.msra.mxu0 0.0
        %702 = vmatprep.subr.mxu0 0.0
        %703 = vmatpush1.msra.mxu0 0.0
        %704 = vmatprep.subr.mxu0 0.0
        %705 = vmatpush1.msra.mxu0 0.0
        %706 = vmatprep.subr.mxu0 0.0
        %707 = vmatpush1.msra.mxu0 0.0
        %708 = vmatprep.subr.mxu0 0.0
        %709 = vmatpush1.msra.mxu0 0.0
        %710 = vmatprep.subr.mxu0 0.0
        %711 = vmatpush1.msra.mxu0 0.0
        %712 = vmatprep.subr.mxu0 0.0
        %713 = vmatpush1.msra.mxu0 0.0
        %714 = vmatprep.subr.mxu0 0.0
        %715 = vmatpush1.msra.mxu0 0.0
        %716 = vmatprep.subr.mxu0 0.0
        %717 = vmatpush1.msra.mxu0 0.0
        %718 = vmatprep.subr.mxu0 0.0
        %719 = vmatpush1.msra.mxu0 0.0
        %720 = vmatprep.subr.mxu0 0.0
        %721 = vmatpush1.msra.mxu0 0.0
        %722 = vmatprep.subr.mxu0 0.0
        %723 = vmatpush1.msra.mxu0 0.0
        %724 = vmatprep.subr.mxu0 0.0
        %725 = vmatpush1.msra.mxu0 %v692
        %726 = vmatprep.subr.mxu0 0.0
        %727 = vmatpush1.msra.mxu0 %v691
        %728 = vmatprep.subr.mxu0 0.0
        %729 = vmatpush2.msra.mxu0 0.0
        %730 = vmatprep.subr.mxu0 0.0
        %731 = vmatpush2.msra.mxu0 0.0
        %732 = vmatprep.subr.mxu0 0.0
        %733 = vmatpush2.msra.mxu0 0.0
        %734 = vmatprep.subr.mxu0 0.0
        %735 = vmatpush2.msra.mxu0 0.0
        %736 = vmatprep.subr.mxu0 0.0
        %737 = vmatpush2.msra.mxu0 0.0
        %738 = vmatprep.subr.mxu0 0.0
        %739 = vmatpush2.msra.mxu0 0.0
        %740 = vmatprep.subr.mxu0 0.0
        %741 = vmatpush2.msra.mxu0 0.0
        %742 = vmatprep.subr.mxu0 0.0
        %743 = vmatpush2.msra.mxu0 0.0
        %744 = vmatprep.subr.mxu0 0.0
        %745 = vmatpush2.msra.mxu0 0.0
        %746 = vmatprep.subr.mxu0 0.0
        %747 = vmatpush2.msra.mxu0 0.0
        %748 = vmatprep.subr.mxu0 0.0
        %749 = vmatpush2.msra.mxu0 0.0
        %750 = vmatprep.subr.mxu0 0.0
        %751 = vmatpush2.msra.mxu0 0.0
        %752 = vmatprep.subr.mxu0 0.0
        %753 = vmatpush2.msra.mxu0 0.0
        %754 = vmatprep.subr.mxu0 0.0
        %755 = vmatpush2.msra.mxu0 0.0
        %756 = vmatprep.subr.mxu0 0.0
        %757 = vmatpush2.msra.mxu0 0.0
        %758 = vmatprep.subr.mxu0 0.0
        %759 = vmatpush2.msra.mxu0 0.0
        %760 = vmatprep.mubr.f32.mxu0 0.0
        %761 = vmatmul.mubr.f32.gmra.mxu0 %v694
        %v762 = vpop.f32.mrf.mxu0
        %v763 = vadd.f32 0.0, %v762
        %v764 = vpop.f32.mrf.mxu0
        %765 = vdwg.mxu0
        %v767 = vsel %vm614, %v690, 0
        %769 = vmatprep.subr.mxu0 0.0
        %770 = vmatpush1.msra.mxu0 0.0
        %771 = vmatprep.subr.mxu0 0.0
        %772 = vmatpush1.msra.mxu0 0.0
        %773 = vmatprep.subr.mxu0 0.0
        %774 = vmatpush1.msra.mxu0 0.0
        %775 = vmatprep.subr.mxu0 0.0
        %776 = vmatpush1.msra.mxu0 0.0
        %777 = vmatprep.subr.mxu0 0.0
        %778 = vmatpush1.msra.mxu0 0.0
        %779 = vmatprep.subr.mxu0 0.0
        %780 = vmatpush1.msra.mxu0 0.0
        %781 = vmatprep.subr.mxu0 0.0
        %782 = vmatpush1.msra.mxu0 0.0
        %783 = vmatprep.subr.mxu0 0.0
        %784 = vmatpush1.msra.mxu0 0.0
        %785 = vmatprep.subr.mxu0 0.0
        %786 = vmatpush1.msra.mxu0 0.0
        %787 = vmatprep.subr.mxu0 0.0
        %788 = vmatpush1.msra.mxu0 0.0
        %789 = vmatprep.subr.mxu0 0.0
        %790 = vmatpush1.msra.mxu0 0.0
        %791 = vmatprep.subr.mxu0 0.0
        %792 = vmatpush1.msra.mxu0 0.0
        %793 = vmatprep.subr.mxu0 0.0
        %794 = vmatpush1.msra.mxu0 0.0
        %795 = vmatprep.subr.mxu0 0.0
        %796 = vmatpush1.msra.mxu0 0.0
        %797 = vmatprep.subr.mxu0 0.0
        %798 = vmatpush1.msra.mxu0 %v692
        %799 = vmatprep.subr.mxu0 0.0
        %800 = vmatpush1.msra.mxu0 %v691
        %801 = vmatprep.subr.mxu0 0.0
        %802 = vmatpush2.msra.mxu0 0.0
        %803 = vmatprep.subr.mxu0 0.0
        %804 = vmatpush2.msra.mxu0 0.0
        %805 = vmatprep.subr.mxu0 0.0
        %806 = vmatpush2.msra.mxu0 0.0
        %807 = vmatprep.subr.mxu0 0.0
        %808 = vmatpush2.msra.mxu0 0.0
        %809 = vmatprep.subr.mxu0 0.0
        %810 = vmatpush2.msra.mxu0 0.0
        %811 = vmatprep.subr.mxu0 0.0
        %812 = vmatpush2.msra.mxu0 0.0
        %813 = vmatprep.subr.mxu0 0.0
        %814 = vmatpush2.msra.mxu0 0.0
        %815 = vmatprep.subr.mxu0 0.0
        %816 = vmatpush2.msra.mxu0 0.0
        %817 = vmatprep.subr.mxu0 0.0
        %818 = vmatpush2.msra.mxu0 0.0
        %819 = vmatprep.subr.mxu0 0.0
        %820 = vmatpush2.msra.mxu0 0.0
        %821 = vmatprep.subr.mxu0 0.0
        %822 = vmatpush2.msra.mxu0 0.0
        %823 = vmatprep.subr.mxu0 0.0
        %824 = vmatpush2.msra.mxu0 0.0
        %825 = vmatprep.subr.mxu0 0.0
        %826 = vmatpush2.msra.mxu0 0.0
        %827 = vmatprep.subr.mxu0 0.0
        %828 = vmatpush2.msra.mxu0 0.0
        %829 = vmatprep.subr.mxu0 0.0
        %830 = vmatpush2.msra.mxu0 0.0
        %831 = vmatprep.subr.mxu0 0.0
        %832 = vmatpush2.msra.mxu0 0.0
        %833 = vmatprep.mubr.f32.mxu0 0.0
        %834 = vmatmul.mubr.f32.gmra.mxu0 %v767
        %v835 = vpop.f32.mrf.mxu0
        %v836 = vadd.f32 0.0, %v835
        %v837 = vpop.f32.mrf.mxu0
        %838 = vdwg.mxu0
        %v839 = vmul.f32 %v763, %v763
        %v840 = vsub.f32 %v836, %v839
        %v841 = vmax.f32 %v840, 0.0
        %v842 = vadd.f32 %v841, 1e-05
        %v843 = vrsqrt.pop %v842
        %v844 = vmul.f32 %v843, %v612
        %v845 = vmul.f32 %v763, %v844
        %v846 = vsub.f32 %v613, %v845
        %v847 = vlaneseq
        %v848 = vshrl.u32 %v847, 7
        %v849 = vsub.s32 0, %v848
        %v850 = vrot.slane %v844, %v849
        %v851 = vmul.f32 %v559, %v850
        %v852 = vmul.f32 %v562, %v850
        %v853 = vmul.f32 %v567, %v850
        %v854 = vmul.f32 %v570, %v850
        %v855 = vmul.f32 %v575, %v850
        %v856 = vmul.f32 %v578, %v850
        %v857 = vmul.f32 %v583, %v850
        %v858 = vmul.f32 %v586, %v850
        %v859 = vmul.f32 %v591, %v850
        %v860 = vmul.f32 %v594, %v850
        %v861 = vmul.f32 %v599, %v850
        %v862 = vmul.f32 %v602, %v850
        %v863 = vmul.f32 %v607, %v850
        %v864 = vlaneseq
        %v865 = vshrl.u32 %v864, 7
        %v866 = vsub.s32 0, %v865
        %v867 = vrot.slane %v846, %v866
        %v868 = vadd.f32 %v851, %v867
        %v869 = vadd.f32 %v852, %v867
        %v870 = vadd.f32 %v853, %v867
        %v871 = vadd.f32 %v854, %v867
        %v872 = vadd.f32 %v855, %v867
        %v873 = vadd.f32 %v856, %v867
        %v874 = vadd.f32 %v857, %v867
        %v875 = vadd.f32 %v858, %v867
        %v876 = vadd.f32 %v859, %v867
        %v877 = vadd.f32 %v860, %v867
        %v878 = vadd.f32 %v861, %v867
        %v879 = vadd.f32 %v862, %v867
        %v880 = vadd.f32 %v863, %v867
        %v881 = vmax.f32 %v868, 0.0
        %v882 = vmax.f32 %v869, 0.0
        %v883 = vmax.f32 %v870, 0.0
        %v884 = vmax.f32 %v871, 0.0
        %v885 = vmax.f32 %v872, 0.0
        %v886 = vmax.f32 %v873, 0.0
        %v887 = vmax.f32 %v874, 0.0
        %v888 = vmax.f32 %v875, 0.0
        %v889 = vmax.f32 %v876, 0.0
        %v890 = vmax.f32 %v877, 0.0
        %v891 = vmax.f32 %v878, 0.0
        %v892 = vmax.f32 %v879, 0.0
        %v893 = vmax.f32 %v880, 0.0
        %895 = vset.pattern.permute.xlu0 0
        %896 = vperm.xlu0 %895, %v414
        %v897 = vpop.permute.xlu0 %896
        %900 = vset.pattern.permute.xlu0 0
        %901 = vperm.xlu0 %900, %v415
        %v902 = vpop.permute.xlu0 %901
        %905 = vset.pattern.permute.xlu0 0
        %906 = vperm.xlu0 %905, %v416
        %v907 = vpop.permute.xlu0 %906
        %910 = vset.pattern.permute.xlu0 0
        %911 = vperm.xlu0 %910, %v417
        %v912 = vpop.permute.xlu0 %911
        %915 = vset.pattern.permute.xlu0 0
        %916 = vperm.xlu0 %915, %v418
        %v917 = vpop.permute.xlu0 %916
        %920 = vset.pattern.permute.xlu0 0
        %921 = vperm.xlu0 %920, %v419
        %v922 = vpop.permute.xlu0 %921
        %925 = vset.pattern.permute.xlu0 0
        %926 = vperm.xlu0 %925, %v420
        %v927 = vpop.permute.xlu0 %926
        %930 = vset.pattern.permute.xlu0 0
        %931 = vperm.xlu0 %930, %v421
        %v932 = vpop.permute.xlu0 %931
        %935 = vset.pattern.permute.xlu0 0
        %936 = vperm.xlu0 %935, %v422
        %v937 = vpop.permute.xlu0 %936
        %940 = vset.pattern.permute.xlu0 0
        %941 = vperm.xlu0 %940, %v423
        %v942 = vpop.permute.xlu0 %941
        %945 = vset.pattern.permute.xlu0 0
        %946 = vperm.xlu0 %945, %v424
        %v947 = vpop.permute.xlu0 %946
        %950 = vset.pattern.permute.xlu0 0
        %951 = vperm.xlu0 %950, %v425
        %v952 = vpop.permute.xlu0 %951
        %955 = vset.pattern.permute.xlu0 0
        %956 = vperm.xlu0 %955, %v426
        %v957 = vpop.permute.xlu0 %956
        %v959 = vmul.f32 %v881, %v897
        %v960 = vmul.f32 %v882, %v902
        %v961 = vmul.f32 %v883, %v907
        %v962 = vmul.f32 %v884, %v912
        %v963 = vmul.f32 %v885, %v917
        %v964 = vmul.f32 %v886, %v922
        %v965 = vmul.f32 %v887, %v927
        %v966 = vmul.f32 %v888, %v932
        %v967 = vmul.f32 %v889, %v937
        %v968 = vmul.f32 %v890, %v942
        %v969 = vmul.f32 %v891, %v947
        %v970 = vmul.f32 %v892, %v952
        %v971 = vmul.f32 %v893, %v957
        %972 = vst [vmem:[#allocation2] sm:$0xff] 0.0
        %973 = vst.msk [vmem:[#allocation2 + $0x8] sm:$0xff] %vm614, 0.0
        %974 = vst [vmem:[#allocation2 + $0x10] sm:$0xff] 0.0
        %975 = vst.msk [vmem:[#allocation2 + $0x18] sm:$0xff] %vm614, 0.0
        %976 = vst [vmem:[#allocation2 + $0x20] sm:$0x3f] 0.0
        %vm977 = vcmask 128000
        %978 = vst.msk [vmem:[#allocation2 + $0x28] sm:$0x3f] %vm977, 0.0
        %979 = vst [vmem:[#allocation2 + $0xc0] sm:$0xf0] 0.0
        %vm980 = vcmask 130052
        %981 = vst.msk [vmem:[#allocation2 + $0xc8] sm:$0xf0] %vm980, 0.0
        %982 = vst [vmem:[#allocation2 + $0xd0] sm:$0xff] 0.0
        %983 = vst.msk [vmem:[#allocation2 + $0xd8] sm:$0xff] %vm614, 0.0
        %984 = vst [vmem:[#allocation2 + $0xe0] sm:$0xff] 0.0
        %985 = vst.msk [vmem:[#allocation2 + $0xe8] sm:$0xff] %vm614, 0.0
        %986 = vst [vmem:[#allocation2 + $0xf0] sm:$0x3] 0.0
        %vm987 = vcmask 123904
        %988 = vst.msk [vmem:[#allocation2 + $0xf8] sm:$0x3] %vm987, 0.0
        %vm1002 = vcmask 1045504
        %v1003 = vrot.slane %v959, 2
        %v1004 = vrot.slane %v960, 2
        %v1005 = vsel %vm1002, %v1003, %v1004
        %v1006 = vrot.slane %v961, 2
        %v1007 = vsel %vm1002, %v1004, %v1006
        %v1008 = vrot.slane %v962, 2
        %v1009 = vsel %vm1002, %v1006, %v1008
        %v1010 = vrot.slane %v963, 2
        %v1011 = vsel %vm1002, %v1008, %v1010
        %v1012 = vrot.slane %v964, 2
        %v1013 = vsel %vm1002, %v1010, %v1012
        %v1014 = vrot.slane %v965, 2
        %v1015 = vsel %vm1002, %v1012, %v1014
        %v1016 = vrot.slane %v966, 2
        %v1017 = vsel %vm1002, %v1014, %v1016
        %v1018 = vrot.slane %v967, 2
        %v1019 = vsel %vm1002, %v1016, %v1018
        %v1020 = vrot.slane %v968, 2
        %v1021 = vsel %vm1002, %v1018, %v1020
        %v1022 = vrot.slane %v969, 2
        %v1023 = vsel %vm1002, %v1020, %v1022
        %v1024 = vrot.slane %v970, 2
        %v1025 = vsel %vm1002, %v1022, %v1024
        %v1026 = vrot.slane %v971, 2
        %v1027 = vsel %vm1002, %v1024, %v1026
        %vm1042 = vcmask 130054
        %1043 = vst.msk [vmem:[#allocation2 + $0x20] sm:$0xc0] %vm1042, %v1003
        %1044 = vst.msk [vmem:[#allocation2 + $0x30] sm:$0xff] %vm614, %v1005
        %1045 = vst.msk [vmem:[#allocation2 + $0x40] sm:$0xff] %vm614, %v1007
        %1046 = vst.msk [vmem:[#allocation2 + $0x50] sm:$0xff] %vm614, %v1009
        %1047 = vst.msk [vmem:[#allocation2 + $0x60] sm:$0xff] %vm614, %v1011
        %1048 = vst.msk [vmem:[#allocation2 + $0x70] sm:$0xff] %vm614, %v1013
        %1049 = vst.msk [vmem:[#allocation2 + $0x80] sm:$0xff] %vm614, %v1015
        %1050 = vst.msk [vmem:[#allocation2 + $0x90] sm:$0xff] %vm614, %v1017
        %1051 = vst.msk [vmem:[#allocation2 + $0xa0] sm:$0xff] %vm614, %v1019
        %1052 = vst.msk [vmem:[#allocation2 + $0xb0] sm:$0xff] %vm614, %v1021
        %1053 = vst.msk [vmem:[#allocation2 + $0xc0] sm:$0xff] %vm614, %v1023
        %1054 = vst.msk [vmem:[#allocation2 + $0xd0] sm:$0xff] %vm614, %v1025
        %1055 = vst.msk [vmem:[#allocation2 + $0xe0] sm:$0xff] %vm614, %v1027
        %1056 = vst.msk [vmem:[#allocation2 + $0xf0] sm:$0x3] %vm987, %v1026
        %vm1057 = vcmask 1044480
        %v1058 = vrot.slane %v959, 3
        %v1059 = vrot.slane %v960, 3
        %v1060 = vsel %vm1057, %v1058, %v1059
        %v1061 = vrot.slane %v961, 3
        %v1062 = vsel %vm1057, %v1059, %v1061
        %v1063 = vrot.slane %v962, 3
        %v1064 = vsel %vm1057, %v1061, %v1063
        %v1065 = vrot.slane %v963, 3
        %v1066 = vsel %vm1057, %v1063, %v1065
        %v1067 = vrot.slane %v964, 3
        %v1068 = vsel %vm1057, %v1065, %v1067
        %v1069 = vrot.slane %v965, 3
        %v1070 = vsel %vm1057, %v1067, %v1069
        %v1071 = vrot.slane %v966, 3
        %v1072 = vsel %vm1057, %v1069, %v1071
        %v1073 = vrot.slane %v967, 3
        %v1074 = vsel %vm1057, %v1071, %v1073
        %v1075 = vrot.slane %v968, 3
        %v1076 = vsel %vm1057, %v1073, %v1075
        %v1077 = vrot.slane %v969, 3
        %v1078 = vsel %vm1057, %v1075, %v1077
        %v1079 = vrot.slane %v970, 3
        %v1080 = vsel %vm1057, %v1077, %v1079
        %v1081 = vrot.slane %v971, 3
        %v1082 = vsel %vm1057, %v1079, %v1081
        %1083 = vrot.lane.b32.xlu0 %v1058, 16
        %v1084 = vpop.permute.xlu0 %1083
        %1085 = vrot.lane.b32.xlu0 %v1060, 16
        %v1086 = vpop.permute.xlu0 %1085
        %1087 = vrot.lane.b32.xlu0 %v1062, 16
        %v1088 = vpop.permute.xlu0 %1087
        %1089 = vrot.lane.b32.xlu0 %v1064, 16
        %v1090 = vpop.permute.xlu0 %1089
        %1091 = vrot.lane.b32.xlu0 %v1066, 16
        %v1092 = vpop.permute.xlu0 %1091
        %1093 = vrot.lane.b32.xlu0 %v1068, 16
        %v1094 = vpop.permute.xlu0 %1093
        %1095 = vrot.lane.b32.xlu0 %v1070, 16
        %v1096 = vpop.permute.xlu0 %1095
        %1097 = vrot.lane.b32.xlu0 %v1072, 16
        %v1098 = vpop.permute.xlu0 %1097
        %1099 = vrot.lane.b32.xlu0 %v1074, 16
        %v1100 = vpop.permute.xlu0 %1099
        %1101 = vrot.lane.b32.xlu0 %v1076, 16
        %v1102 = vpop.permute.xlu0 %1101
        %1103 = vrot.lane.b32.xlu0 %v1078, 16
        %v1104 = vpop.permute.xlu0 %1103
        %1105 = vrot.lane.b32.xlu0 %v1080, 16
        %v1106 = vpop.permute.xlu0 %1105
        %1107 = vrot.lane.b32.xlu0 %v1082, 16
        %v1108 = vpop.permute.xlu0 %1107
        %1109 = vrot.lane.b32.xlu0 %v1081, 16
        %v1110 = vpop.permute.xlu0 %1109
        %vm1125 = vcmask 261253
        %1126 = vst.msk [vmem:[#allocation2 + $0x20] sm:$0xe0] %vm1125, %v1084
        %vm1127 = vcmask 261248
        %1128 = vst.msk [vmem:[#allocation2 + $0x30] sm:$0xff] %vm1127, %v1086
        %1129 = vst.msk [vmem:[#allocation2 + $0x40] sm:$0xff] %vm1127, %v1088
        %1130 = vst.msk [vmem:[#allocation2 + $0x50] sm:$0xff] %vm1127, %v1090
        %1131 = vst.msk [vmem:[#allocation2 + $0x60] sm:$0xff] %vm1127, %v1092
        %1132 = vst.msk [vmem:[#allocation2 + $0x70] sm:$0xff] %vm1127, %v1094
        %1133 = vst.msk [vmem:[#allocation2 + $0x80] sm:$0xff] %vm1127, %v1096
        %1134 = vst.msk [vmem:[#allocation2 + $0x90] sm:$0xff] %vm1127, %v1098
        %1135 = vst.msk [vmem:[#allocation2 + $0xa0] sm:$0xff] %vm1127, %v1100
        %1136 = vst.msk [vmem:[#allocation2 + $0xb0] sm:$0xff] %vm1127, %v1102
        %1137 = vst.msk [vmem:[#allocation2 + $0xc0] sm:$0xff] %vm1127, %v1104
        %1138 = vst.msk [vmem:[#allocation2 + $0xd0] sm:$0xff] %vm1127, %v1106
        %1139 = vst.msk [vmem:[#allocation2 + $0xe0] sm:$0xff] %vm1127, %v1108
        %vm1140 = vcmask 254080
        %1141 = vst.msk [vmem:[#allocation2 + $0xf0] sm:$0x1] %vm1140, %v1110
        %vm1142 = vcmask 1043456
        %v1143 = vrot.slane %v959, 4
        %v1144 = vrot.slane %v960, 4
        %v1145 = vsel %vm1142, %v1143, %v1144
        %v1146 = vrot.slane %v961, 4
        %v1147 = vsel %vm1142, %v1144, %v1146
        %v1148 = vrot.slane %v962, 4
        %v1149 = vsel %vm1142, %v1146, %v1148
        %v1150 = vrot.slane %v963, 4
        %v1151 = vsel %vm1142, %v1148, %v1150
        %v1152 = vrot.slane %v964, 4
        %v1153 = vsel %vm1142, %v1150, %v1152
        %v1154 = vrot.slane %v965, 4
        %v1155 = vsel %vm1142, %v1152, %v1154
        %v1156 = vrot.slane %v966, 4
        %v1157 = vsel %vm1142, %v1154, %v1156
        %v1158 = vrot.slane %v967, 4
        %v1159 = vsel %vm1142, %v1156, %v1158
        %v1160 = vrot.slane %v968, 4
        %v1161 = vsel %vm1142, %v1158, %v1160
        %v1162 = vrot.slane %v969, 4
        %v1163 = vsel %vm1142, %v1160, %v1162
        %v1164 = vrot.slane %v970, 4
        %v1165 = vsel %vm1142, %v1162, %v1164
        %v1166 = vrot.slane %v971, 4
        %v1167 = vsel %vm1142, %v1164, %v1166
        %1168 = vrot.lane.b32.xlu0 %v1143, 32
        %v1169 = vpop.permute.xlu0 %1168
        %1170 = vrot.lane.b32.xlu0 %v1145, 32
        %v1171 = vpop.permute.xlu0 %1170
        %1172 = vrot.lane.b32.xlu0 %v1147, 32
        %v1173 = vpop.permute.xlu0 %1172
        %1174 = vrot.lane.b32.xlu0 %v1149, 32
        %v1175 = vpop.permute.xlu0 %1174
        %1176 = vrot.lane.b32.xlu0 %v1151, 32
        %v1177 = vpop.permute.xlu0 %1176
        %1178 = vrot.lane.b32.xlu0 %v1153, 32
        %v1179 = vpop.permute.xlu0 %1178
        %1180 = vrot.lane.b32.xlu0 %v1155, 32
        %v1181 = vpop.permute.xlu0 %1180
        %1182 = vrot.lane.b32.xlu0 %v1157, 32
        %v1183 = vpop.permute.xlu0 %1182
        %1184 = vrot.lane.b32.xlu0 %v1159, 32
        %v1185 = vpop.permute.xlu0 %1184
        %1186 = vrot.lane.b32.xlu0 %v1161, 32
        %v1187 = vpop.permute.xlu0 %1186
        %1188 = vrot.lane.b32.xlu0 %v1163, 32
        %v1189 = vpop.permute.xlu0 %1188
        %1190 = vrot.lane.b32.xlu0 %v1165, 32
        %v1191 = vpop.permute.xlu0 %1190
        %1192 = vrot.lane.b32.xlu0 %v1167, 32
        %v1193 = vpop.permute.xlu0 %1192
        %vm1207 = vcmask 392452
        %1208 = vst.msk [vmem:[#allocation2 + $0x20] sm:$0xf0] %vm1207, %v1169
        %vm1209 = vcmask 392448
        %1210 = vst.msk [vmem:[#allocation2 + $0x30] sm:$0xff] %vm1209, %v1171
        %1211 = vst.msk [vmem:[#allocation2 + $0x40] sm:$0xff] %vm1209, %v1173
        %1212 = vst.msk [vmem:[#allocation2 + $0x50] sm:$0xff] %vm1209, %v1175
        %1213 = vst.msk [vmem:[#allocation2 + $0x60] sm:$0xff] %vm1209, %v1177
        %1214 = vst.msk [vmem:[#allocation2 + $0x70] sm:$0xff] %vm1209, %v1179
        %1215 = vst.msk [vmem:[#allocation2 + $0x80] sm:$0xff] %vm1209, %v1181
        %1216 = vst.msk [vmem:[#allocation2 + $0x90] sm:$0xff] %vm1209, %v1183
        %1217 = vst.msk [vmem:[#allocation2 + $0xa0] sm:$0xff] %vm1209, %v1185
        %1218 = vst.msk [vmem:[#allocation2 + $0xb0] sm:$0xff] %vm1209, %v1187
        %1219 = vst.msk [vmem:[#allocation2 + $0xc0] sm:$0xff] %vm1209, %v1189
        %1220 = vst.msk [vmem:[#allocation2 + $0xd0] sm:$0xff] %vm1209, %v1191
        %1221 = vst.msk [vmem:[#allocation2 + $0xe0] sm:$0xff] %vm1209, %v1193
        %1222 = vrot.lane.b32.xlu0 %v1143, 48
        %v1223 = vpop.permute.xlu0 %1222
        %1224 = vrot.lane.b32.xlu0 %v1145, 48
        %v1225 = vpop.permute.xlu0 %1224
        %1226 = vrot.lane.b32.xlu0 %v1147, 48
        %v1227 = vpop.permute.xlu0 %1226
        %1228 = vrot.lane.b32.xlu0 %v1149, 48
        %v1229 = vpop.permute.xlu0 %1228
        %1230 = vrot.lane.b32.xlu0 %v1151, 48
        %v1231 = vpop.permute.xlu0 %1230
        %1232 = vrot.lane.b32.xlu0 %v1153, 48
        %v1233 = vpop.permute.xlu0 %1232
        %1234 = vrot.lane.b32.xlu0 %v1155, 48
        %v1235 = vpop.permute.xlu0 %1234
        %1236 = vrot.lane.b32.xlu0 %v1157, 48
        %v1237 = vpop.permute.xlu0 %1236
        %1238 = vrot.lane.b32.xlu0 %v1159, 48
        %v1239 = vpop.permute.xlu0 %1238
        %1240 = vrot.lane.b32.xlu0 %v1161, 48
        %v1241 = vpop.permute.xlu0 %1240
        %1242 = vrot.lane.b32.xlu0 %v1163, 48
        %v1243 = vpop.permute.xlu0 %1242
        %1244 = vrot.lane.b32.xlu0 %v1165, 48
        %v1245 = vpop.permute.xlu0 %1244
        %1246 = vrot.lane.b32.xlu0 %v1167, 48
        %v1247 = vpop.permute.xlu0 %1246
        %vm1261 = vcmask 523652
        %1262 = vst.msk [vmem:[#allocation2 + $0x10] sm:$0xf0] %vm1261, %v1223
        %vm1263 = vcmask 523648
        %1264 = vst.msk [vmem:[#allocation2 + $0x20] sm:$0xff] %vm1263, %v1225
        %1265 = vst.msk [vmem:[#allocation2 + $0x30] sm:$0xff] %vm1263, %v1227
        %1266 = vst.msk [vmem:[#allocation2 + $0x40] sm:$0xff] %vm1263, %v1229
        %1267 = vst.msk [vmem:[#allocation2 + $0x50] sm:$0xff] %vm1263, %v1231
        %1268 = vst.msk [vmem:[#allocation2 + $0x60] sm:$0xff] %vm1263, %v1233
        %1269 = vst.msk [vmem:[#allocation2 + $0x70] sm:$0xff] %vm1263, %v1235
        %1270 = vst.msk [vmem:[#allocation2 + $0x80] sm:$0xff] %vm1263, %v1237
        %1271 = vst.msk [vmem:[#allocation2 + $0x90] sm:$0xff] %vm1263, %v1239
        %1272 = vst.msk [vmem:[#allocation2 + $0xa0] sm:$0xff] %vm1263, %v1241
        %1273 = vst.msk [vmem:[#allocation2 + $0xb0] sm:$0xff] %vm1263, %v1243
        %1274 = vst.msk [vmem:[#allocation2 + $0xc0] sm:$0xff] %vm1263, %v1245
        %1275 = vst.msk [vmem:[#allocation2 + $0xd0] sm:$0xff] %vm1263, %v1247
        %vm1276 = vcmask 1042432
        %v1277 = vrot.slane %v959, 5
        %v1278 = vrot.slane %v960, 5
        %v1279 = vsel %vm1276, %v1277, %v1278
        %v1280 = vrot.slane %v961, 5
        %v1281 = vsel %vm1276, %v1278, %v1280
        %v1282 = vrot.slane %v962, 5
        %v1283 = vsel %vm1276, %v1280, %v1282
        %v1284 = vrot.slane %v963, 5
        %v1285 = vsel %vm1276, %v1282, %v1284
        %v1286 = vrot.slane %v964, 5
        %v1287 = vsel %vm1276, %v1284, %v1286
        %v1288 = vrot.slane %v965, 5
        %v1289 = vsel %vm1276, %v1286, %v1288
        %v1290 = vrot.slane %v966, 5
        %v1291 = vsel %vm1276, %v1288, %v1290
        %v1292 = vrot.slane %v967, 5
        %v1293 = vsel %vm1276, %v1290, %v1292
        %v1294 = vrot.slane %v968, 5
        %v1295 = vsel %vm1276, %v1292, %v1294
        %v1296 = vrot.slane %v969, 5
        %v1297 = vsel %vm1276, %v1294, %v1296
        %v1298 = vrot.slane %v970, 5
        %v1299 = vsel %vm1276, %v1296, %v1298
        %v1300 = vrot.slane %v971, 5
        %v1301 = vsel %vm1276, %v1298, %v1300
        %1302 = vrot.lane.b32.xlu0 %v1277, 64
        %v1303 = vpop.permute.xlu0 %1302
        %1304 = vrot.lane.b32.xlu0 %v1279, 64
        %v1305 = vpop.permute.xlu0 %1304
        %1306 = vrot.lane.b32.xlu0 %v1281, 64
        %v1307 = vpop.permute.xlu0 %1306
        %1308 = vrot.lane.b32.xlu0 %v1283, 64
        %v1309 = vpop.permute.xlu0 %1308
        %1310 = vrot.lane.b32.xlu0 %v1285, 64
        %v1311 = vpop.permute.xlu0 %1310
        %1312 = vrot.lane.b32.xlu0 %v1287, 64
        %v1313 = vpop.permute.xlu0 %1312
        %1314 = vrot.lane.b32.xlu0 %v1289, 64
        %v1315 = vpop.permute.xlu0 %1314
        %1316 = vrot.lane.b32.xlu0 %v1291, 64
        %v1317 = vpop.permute.xlu0 %1316
        %1318 = vrot.lane.b32.xlu0 %v1293, 64
        %v1319 = vpop.permute.xlu0 %1318
        %1320 = vrot.lane.b32.xlu0 %v1295, 64
        %v1321 = vpop.permute.xlu0 %1320
        %1322 = vrot.lane.b32.xlu0 %v1297, 64
        %v1323 = vpop.permute.xlu0 %1322
        %1324 = vrot.lane.b32.xlu0 %v1299, 64
        %v1325 = vpop.permute.xlu0 %1324
        %1326 = vrot.lane.b32.xlu0 %v1301, 64
        %v1327 = vpop.permute.xlu0 %1326
        %vm1341 = vcmask 654851
        %1342 = vst.msk [vmem:[#allocation2 + $0x10] sm:$0xf8] %vm1341, %v1303
        %vm1343 = vcmask 654848
        %1344 = vst.msk [vmem:[#allocation2 + $0x20] sm:$0xff] %vm1343, %v1305
        %1345 = vst.msk [vmem:[#allocation2 + $0x30] sm:$0xff] %vm1343, %v1307
        %1346 = vst.msk [vmem:[#allocation2 + $0x40] sm:$0xff] %vm1343, %v1309
        %1347 = vst.msk [vmem:[#allocation2 + $0x50] sm:$0xff] %vm1343, %v1311
        %1348 = vst.msk [vmem:[#allocation2 + $0x60] sm:$0xff] %vm1343, %v1313
        %1349 = vst.msk [vmem:[#allocation2 + $0x70] sm:$0xff] %vm1343, %v1315
        %1350 = vst.msk [vmem:[#allocation2 + $0x80] sm:$0xff] %vm1343, %v1317
        %1351 = vst.msk [vmem:[#allocation2 + $0x90] sm:$0xff] %vm1343, %v1319
        %1352 = vst.msk [vmem:[#allocation2 + $0xa0] sm:$0xff] %vm1343, %v1321
        %1353 = vst.msk [vmem:[#allocation2 + $0xb0] sm:$0xff] %vm1343, %v1323
        %1354 = vst.msk [vmem:[#allocation2 + $0xc0] sm:$0xff] %vm1343, %v1325
        %vm1355 = vcmask 653824
        %1356 = vst.msk [vmem:[#allocation2 + $0xd0] sm:$0x7f] %vm1355, %v1327
        %v1357 = vrot.slane %v959, 6
        %v1358 = vrot.slane %v960, 6
        %v1359 = vsel %vm520, %v1357, %v1358
        %v1360 = vrot.slane %v961, 6
        %v1361 = vsel %vm520, %v1358, %v1360
        %v1362 = vrot.slane %v962, 6
        %v1363 = vsel %vm520, %v1360, %v1362
        %v1364 = vrot.slane %v963, 6
        %v1365 = vsel %vm520, %v1362, %v1364
        %v1366 = vrot.slane %v964, 6
        %v1367 = vsel %vm520, %v1364, %v1366
        %v1368 = vrot.slane %v965, 6
        %v1369 = vsel %vm520, %v1366, %v1368
        %v1370 = vrot.slane %v966, 6
        %v1371 = vsel %vm520, %v1368, %v1370
        %v1372 = vrot.slane %v967, 6
        %v1373 = vsel %vm520, %v1370, %v1372
        %v1374 = vrot.slane %v968, 6
        %v1375 = vsel %vm520, %v1372, %v1374
        %v1376 = vrot.slane %v969, 6
        %v1377 = vsel %vm520, %v1374, %v1376
        %v1378 = vrot.slane %v970, 6
        %v1379 = vsel %vm520, %v1376, %v1378
        %v1380 = vrot.slane %v971, 6
        %v1381 = vsel %vm520, %v1378, %v1380
        %1382 = vrot.lane.b32.xlu0 %v1357, 80
        %v1383 = vpop.permute.xlu0 %1382
        %1384 = vrot.lane.b32.xlu0 %v1359, 80
        %v1385 = vpop.permute.xlu0 %1384
        %1386 = vrot.lane.b32.xlu0 %v1361, 80
        %v1387 = vpop.permute.xlu0 %1386
        %1388 = vrot.lane.b32.xlu0 %v1363, 80
        %v1389 = vpop.permute.xlu0 %1388
        %1390 = vrot.lane.b32.xlu0 %v1365, 80
        %v1391 = vpop.permute.xlu0 %1390
        %1392 = vrot.lane.b32.xlu0 %v1367, 80
        %v1393 = vpop.permute.xlu0 %1392
        %1394 = vrot.lane.b32.xlu0 %v1369, 80
        %v1395 = vpop.permute.xlu0 %1394
        %1396 = vrot.lane.b32.xlu0 %v1371, 80
        %v1397 = vpop.permute.xlu0 %1396
        %1398 = vrot.lane.b32.xlu0 %v1373, 80
        %v1399 = vpop.permute.xlu0 %1398
        %1400 = vrot.lane.b32.xlu0 %v1375, 80
        %v1401 = vpop.permute.xlu0 %1400
        %1402 = vrot.lane.b32.xlu0 %v1377, 80
        %v1403 = vpop.permute.xlu0 %1402
        %1404 = vrot.lane.b32.xlu0 %v1379, 80
        %v1405 = vpop.permute.xlu0 %1404
        %1406 = vrot.lane.b32.xlu0 %v1381, 80
        %v1407 = vpop.permute.xlu0 %1406
        %vm1421 = vcmask 786050
        %1422 = vst.msk [vmem:[#allocation2 + $0x10] sm:$0xfc] %vm1421, %v1383
        %vm1423 = vcmask 786048
        %1424 = vst.msk [vmem:[#allocation2 + $0x20] sm:$0xff] %vm1423, %v1385
        %1425 = vst.msk [vmem:[#allocation2 + $0x30] sm:$0xff] %vm1423, %v1387
        %1426 = vst.msk [vmem:[#allocation2 + $0x40] sm:$0xff] %vm1423, %v1389
        %1427 = vst.msk [vmem:[#allocation2 + $0x50] sm:$0xff] %vm1423, %v1391
        %1428 = vst.msk [vmem:[#allocation2 + $0x60] sm:$0xff] %vm1423, %v1393
        %1429 = vst.msk [vmem:[#allocation2 + $0x70] sm:$0xff] %vm1423, %v1395
        %1430 = vst.msk [vmem:[#allocation2 + $0x80] sm:$0xff] %vm1423, %v1397
        %1431 = vst.msk [vmem:[#allocation2 + $0x90] sm:$0xff] %vm1423, %v1399
        %1432 = vst.msk [vmem:[#allocation2 + $0xa0] sm:$0xff] %vm1423, %v1401
        %1433 = vst.msk [vmem:[#allocation2 + $0xb0] sm:$0xff] %vm1423, %v1403
        %1434 = vst.msk [vmem:[#allocation2 + $0xc0] sm:$0xff] %vm1423, %v1405
        %vm1435 = vcmask 784000
        %1436 = vst.msk [vmem:[#allocation2 + $0xd0] sm:$0x3f] %vm1435, %v1407
        %1437 = vrot.lane.b32.xlu0 %v1357, 96
        %v1438 = vpop.permute.xlu0 %1437
        %1439 = vrot.lane.b32.xlu0 %v1359, 96
        %v1440 = vpop.permute.xlu0 %1439
        %1441 = vrot.lane.b32.xlu0 %v1361, 96
        %v1442 = vpop.permute.xlu0 %1441
        %1443 = vrot.lane.b32.xlu0 %v1363, 96
        %v1444 = vpop.permute.xlu0 %1443
        %1445 = vrot.lane.b32.xlu0 %v1365, 96
        %v1446 = vpop.permute.xlu0 %1445
        %1447 = vrot.lane.b32.xlu0 %v1367, 96
        %v1448 = vpop.permute.xlu0 %1447
        %1449 = vrot.lane.b32.xlu0 %v1369, 96
        %v1450 = vpop.permute.xlu0 %1449
        %1451 = vrot.lane.b32.xlu0 %v1371, 96
        %v1452 = vpop.permute.xlu0 %1451
        %1453 = vrot.lane.b32.xlu0 %v1373, 96
        %v1454 = vpop.permute.xlu0 %1453
        %1455 = vrot.lane.b32.xlu0 %v1375, 96
        %v1456 = vpop.permute.xlu0 %1455
        %1457 = vrot.lane.b32.xlu0 %v1377, 96
        %v1458 = vpop.permute.xlu0 %1457
        %1459 = vrot.lane.b32.xlu0 %v1379, 96
        %v1460 = vpop.permute.xlu0 %1459
        %1461 = vrot.lane.b32.xlu0 %v1381, 96
        %v1462 = vpop.permute.xlu0 %1461
        %vm1476 = vcmask 917250
        %1477 = vst.msk [vmem:[#allocation2] sm:$0xfc] %vm1476, %v1438
        %vm1478 = vcmask 917248
        %1479 = vst.msk [vmem:[#allocation2 + $0x10] sm:$0xff] %vm1478, %v1440
        %1480 = vst.msk [vmem:[#allocation2 + $0x20] sm:$0xff] %vm1478, %v1442
        %1481 = vst.msk [vmem:[#allocation2 + $0x30] sm:$0xff] %vm1478, %v1444
        %1482 = vst.msk [vmem:[#allocation2 + $0x40] sm:$0xff] %vm1478, %v1446
        %1483 = vst.msk [vmem:[#allocation2 + $0x50] sm:$0xff] %vm1478, %v1448
        %1484 = vst.msk [vmem:[#allocation2 + $0x60] sm:$0xff] %vm1478, %v1450
        %1485 = vst.msk [vmem:[#allocation2 + $0x70] sm:$0xff] %vm1478, %v1452
        %1486 = vst.msk [vmem:[#allocation2 + $0x80] sm:$0xff] %vm1478, %v1454
        %1487 = vst.msk [vmem:[#allocation2 + $0x90] sm:$0xff] %vm1478, %v1456
        %1488 = vst.msk [vmem:[#allocation2 + $0xa0] sm:$0xff] %vm1478, %v1458
        %1489 = vst.msk [vmem:[#allocation2 + $0xb0] sm:$0xff] %vm1478, %v1460
        %vm1490 = vcmask 915200
        %1491 = vst.msk [vmem:[#allocation2 + $0xc0] sm:$0x3f] %vm1490, %v1462
        %vm1492 = vcmask 1040384
        %v1493 = vrot.slane %v959, 7
        %v1494 = vrot.slane %v960, 7
        %v1495 = vsel %vm1492, %v1493, %v1494
        %v1496 = vrot.slane %v961, 7
        %v1497 = vsel %vm1492, %v1494, %v1496
        %v1498 = vrot.slane %v962, 7
        %v1499 = vsel %vm1492, %v1496, %v1498
        %v1500 = vrot.slane %v963, 7
        %v1501 = vsel %vm1492, %v1498, %v1500
        %v1502 = vrot.slane %v964, 7
        %v1503 = vsel %vm1492, %v1500, %v1502
        %v1504 = vrot.slane %v965, 7
        %v1505 = vsel %vm1492, %v1502, %v1504
        %v1506 = vrot.slane %v966, 7
        %v1507 = vsel %vm1492, %v1504, %v1506
        %v1508 = vrot.slane %v967, 7
        %v1509 = vsel %vm1492, %v1506, %v1508
        %v1510 = vrot.slane %v968, 7
        %v1511 = vsel %vm1492, %v1508, %v1510
        %v1512 = vrot.slane %v969, 7
        %v1513 = vsel %vm1492, %v1510, %v1512
        %v1514 = vrot.slane %v970, 7
        %v1515 = vsel %vm1492, %v1512, %v1514
        %v1516 = vrot.slane %v971, 7
        %v1517 = vsel %vm1492, %v1514, %v1516
        %1518 = vrot.lane.b32.xlu0 %v1493, 112
        %v1519 = vpop.permute.xlu0 %1518
        %1520 = vrot.lane.b32.xlu0 %v1495, 112
        %v1521 = vpop.permute.xlu0 %1520
        %1522 = vrot.lane.b32.xlu0 %v1497, 112
        %v1523 = vpop.permute.xlu0 %1522
        %1524 = vrot.lane.b32.xlu0 %v1499, 112
        %v1525 = vpop.permute.xlu0 %1524
        %1526 = vrot.lane.b32.xlu0 %v1501, 112
        %v1527 = vpop.permute.xlu0 %1526
        %1528 = vrot.lane.b32.xlu0 %v1503, 112
        %v1529 = vpop.permute.xlu0 %1528
        %1530 = vrot.lane.b32.xlu0 %v1505, 112
        %v1531 = vpop.permute.xlu0 %1530
        %1532 = vrot.lane.b32.xlu0 %v1507, 112
        %v1533 = vpop.permute.xlu0 %1532
        %1534 = vrot.lane.b32.xlu0 %v1509, 112
        %v1535 = vpop.permute.xlu0 %1534
        %1536 = vrot.lane.b32.xlu0 %v1511, 112
        %v1537 = vpop.permute.xlu0 %1536
        %1538 = vrot.lane.b32.xlu0 %v1513, 112
        %v1539 = vpop.permute.xlu0 %1538
        %1540 = vrot.lane.b32.xlu0 %v1515, 112
        %v1541 = vpop.permute.xlu0 %1540
        %1542 = vrot.lane.b32.xlu0 %v1517, 112
        %v1543 = vpop.permute.xlu0 %1542
        %vm1557 = vcmask 1048449
        %1558 = vst.msk [vmem:[#allocation2] sm:$0xfe] %vm1557, %v1519
        %vm1559 = vcmask 1048448
        %1560 = vst.msk [vmem:[#allocation2 + $0x10] sm:$0xff] %vm1559, %v1521
        %1561 = vst.msk [vmem:[#allocation2 + $0x20] sm:$0xff] %vm1559, %v1523
        %1562 = vst.msk [vmem:[#allocation2 + $0x30] sm:$0xff] %vm1559, %v1525
        %1563 = vst.msk [vmem:[#allocation2 + $0x40] sm:$0xff] %vm1559, %v1527
        %1564 = vst.msk [vmem:[#allocation2 + $0x50] sm:$0xff] %vm1559, %v1529
        %1565 = vst.msk [vmem:[#allocation2 + $0x60] sm:$0xff] %vm1559, %v1531
        %1566 = vst.msk [vmem:[#allocation2 + $0x70] sm:$0xff] %vm1559, %v1533
        %1567 = vst.msk [vmem:[#allocation2 + $0x80] sm:$0xff] %vm1559, %v1535
        %1568 = vst.msk [vmem:[#allocation2 + $0x90] sm:$0xff] %vm1559, %v1537
        %1569 = vst.msk [vmem:[#allocation2 + $0xa0] sm:$0xff] %vm1559, %v1539
        %1570 = vst.msk [vmem:[#allocation2 + $0xb0] sm:$0xff] %vm1559, %v1541
        %vm1571 = vcmask 1045376
        %1572 = vst.msk [vmem:[#allocation2 + $0xc0] sm:$0x1f] %vm1571, %v1543
        %1573 = vst.msk [vmem:[#allocation2 + $0x8] sm:$0xff] %vm614, %v959
        %1574 = vst.msk [vmem:[#allocation2 + $0x18] sm:$0xff] %vm614, %v960
        %1575 = vst.msk [vmem:[#allocation2 + $0x28] sm:$0xff] %vm614, %v961
        %1576 = vst.msk [vmem:[#allocation2 + $0x38] sm:$0xff] %vm614, %v962
        %1577 = vst.msk [vmem:[#allocation2 + $0x48] sm:$0xff] %vm614, %v963
        %1578 = vst.msk [vmem:[#allocation2 + $0x58] sm:$0xff] %vm614, %v964
        %1579 = vst.msk [vmem:[#allocation2 + $0x68] sm:$0xff] %vm614, %v965
        %1580 = vst.msk [vmem:[#allocation2 + $0x78] sm:$0xff] %vm614, %v966
        %1581 = vst.msk [vmem:[#allocation2 + $0x88] sm:$0xff] %vm614, %v967
        %1582 = vst.msk [vmem:[#allocation2 + $0x98] sm:$0xff] %vm614, %v968
        %1583 = vst.msk [vmem:[#allocation2 + $0xa8] sm:$0xff] %vm614, %v969
        %1584 = vst.msk [vmem:[#allocation2 + $0xb8] sm:$0xff] %vm614, %v970
        %1585 = vst.msk [vmem:[#allocation2 + $0xc8] sm:$0xf] %vm638, %v971
        %v1586 = vld [vmem:[#allocation2 + $0x10] sm:$0xf8]
        %v1587 = vld [vmem:[#allocation2 + $0x18] sm:$0xf8]
        %v1588 = vld [vmem:[#allocation2 + $0x20] sm:$0xff]
        %v1589 = vld [vmem:[#allocation2 + $0x28] sm:$0xff]
        %v1590 = vld [vmem:[#allocation2 + $0x30] sm:$0xff]
        %v1591 = vld [vmem:[#allocation2 + $0x38] sm:$0xff]
        %v1592 = vld [vmem:[#allocation2 + $0x40] sm:$0xff]
        %v1593 = vld [vmem:[#allocation2 + $0x48] sm:$0xff]
        %v1594 = vld [vmem:[#allocation2 + $0x50] sm:$0xff]
        %v1595 = vld [vmem:[#allocation2 + $0x58] sm:$0xff]
        %v1596 = vld [vmem:[#allocation2 + $0x60] sm:$0xff]
        %v1597 = vld [vmem:[#allocation2 + $0x68] sm:$0xff]
        %v1598 = vld [vmem:[#allocation2 + $0x70] sm:$0xff]
        %v1599 = vld [vmem:[#allocation2 + $0x78] sm:$0xff]
        %v1600 = vld [vmem:[#allocation2 + $0x80] sm:$0xff]
        %v1601 = vld [vmem:[#allocation2 + $0x88] sm:$0xff]
        %v1602 = vld [vmem:[#allocation2 + $0x90] sm:$0xff]
        %v1603 = vld [vmem:[#allocation2 + $0x98] sm:$0xff]
        %v1604 = vld [vmem:[#allocation2 + $0xa0] sm:$0xff]
        %v1605 = vld [vmem:[#allocation2 + $0xa8] sm:$0xff]
        %v1606 = vld [vmem:[#allocation2 + $0xb0] sm:$0xff]
        %v1607 = vld [vmem:[#allocation2 + $0xb8] sm:$0xff]
        %v1608 = vld [vmem:[#allocation2 + $0xc0] sm:$0xff]
        %v1609 = vld [vmem:[#allocation2 + $0xc8] sm:$0xff]
        %v1610 = vld [vmem:[#allocation2 + $0xd0] sm:$0x7f]
        %v1611 = vld [vmem:[#allocation2 + $0xd8] sm:$0x7f]
        %v1612 = vpack.c.bf16 %v1588, %v1586
        %v1613 = vpack.c.bf16 %v1589, %v1587
        %v1614 = vpack.c.bf16 %v1592, %v1590
        %v1615 = vpack.c.bf16 %v1593, %v1591
        %v1616 = vpack.c.bf16 %v1596, %v1594
        %v1617 = vpack.c.bf16 %v1597, %v1595
        %v1618 = vpack.c.bf16 %v1600, %v1598
        %v1619 = vpack.c.bf16 %v1601, %v1599
        %v1620 = vpack.c.bf16 %v1604, %v1602
        %v1621 = vpack.c.bf16 %v1605, %v1603
        %v1622 = vpack.c.bf16 %v1608, %v1606
        %v1623 = vpack.c.bf16 %v1609, %v1607
        %v1624 = vpack.c.bf16 %v1610, %v1610
        %v1625 = vpack.c.bf16 %v1611, %v1611
        %v1626 = vld [vmem:[%s3] sm:$0xf]
        %v1627 = vld [vmem:[%s3 + $0x4] sm:$0xf]
        %v1628 = vld [vmem:[%s3 + $0x8] sm:$0xf]
        %v1629 = vld [vmem:[%s3 + $0xc] sm:$0xf]
        %v1630 = vld [vmem:[%s3 + $0x10] sm:$0xf]
        %v1631 = vld [vmem:[%s3 + $0x14] sm:$0xf]
        %v1632 = vld [vmem:[%s3 + $0x18] sm:$0xf]
        %v1633 = vld [vmem:[%s3 + $0x1c] sm:$0xf]
        %v1634 = vld [vmem:[%s3 + $0x20] sm:$0xf]
        %v1635 = vld [vmem:[%s3 + $0x24] sm:$0xf]
        %v1636 = vld [vmem:[%s3 + $0x28] sm:$0xf]
        %v1637 = vld [vmem:[%s3 + $0x2c] sm:$0xf]
        %v1638 = vld [vmem:[%s3 + $0x30] sm:$0xf]
        %v1639 = vld [vmem:[%s3 + $0x34] sm:$0xf]
        %v1640 = vld [vmem:[%s3 + $0x38] sm:$0xf]
        %v1641 = vld [vmem:[%s3 + $0x3c] sm:$0xf]
        %v1642 = vld [vmem:[%s3 + $0x40] sm:$0xf]
        %v1643 = vld [vmem:[%s3 + $0x44] sm:$0xf]
        %vm1644 = vsmask.f32 6400
        %v1646 = vshrl.u32 %v1612, 16
        %v1648 = vrot.slane %v1646, 1
        %v1649 = vshll.u32 %v1612, 16
        %v1651 = vrot.slane %v1649, 2
        %v1652 = vor.u32 %v1648, %v1651
        %v1654 = vshrl.u32 %v1614, 16
        %v1656 = vrot.slane %v1654, 1
        %v1657 = vshll.u32 %v1614, 16
        %v1659 = vrot.slane %v1657, 2
        %v1660 = vor.u32 %v1656, %v1659
        %v1661 = vsel %vm1644, %v1652, %v1660
        %v1663 = vshrl.u32 %v1613, 16
        %v1665 = vrot.slane %v1663, 1
        %v1666 = vshll.u32 %v1613, 16
        %v1668 = vrot.slane %v1666, 2
        %v1669 = vor.u32 %v1665, %v1668
        %v1671 = vshrl.u32 %v1615, 16
        %v1673 = vrot.slane %v1671, 1
        %v1674 = vshll.u32 %v1615, 16
        %v1676 = vrot.slane %v1674, 2
        %v1677 = vor.u32 %v1673, %v1676
        %v1678 = vsel %vm1644, %v1669, %v1677
        %v1680 = vshrl.u32 %v1616, 16
        %v1682 = vrot.slane %v1680, 1
        %v1683 = vshll.u32 %v1616, 16
        %v1685 = vrot.slane %v1683, 2
        %v1686 = vor.u32 %v1682, %v1685
        %v1687 = vsel %vm1644, %v1660, %v1686
        %v1689 = vshrl.u32 %v1617, 16
        %v1691 = vrot.slane %v1689, 1
        %v1692 = vshll.u32 %v1617, 16
        %v1694 = vrot.slane %v1692, 2
        %v1695 = vor.u32 %v1691, %v1694
        %v1696 = vsel %vm1644, %v1677, %v1695
        %v1698 = vshrl.u32 %v1618, 16
        %v1700 = vrot.slane %v1698, 1
        %v1701 = vshll.u32 %v1618, 16
        %v1703 = vrot.slane %v1701, 2
        %v1704 = vor.u32 %v1700, %v1703
        %v1705 = vsel %vm1644, %v1686, %v1704
        %v1707 = vshrl.u32 %v1619, 16
        %v1709 = vrot.slane %v1707, 1
        %v1710 = vshll.u32 %v1619, 16
        %v1712 = vrot.slane %v1710, 2
        %v1713 = vor.u32 %v1709, %v1712
        %v1714 = vsel %vm1644, %v1695, %v1713
        %v1716 = vshrl.u32 %v1620, 16
        %v1718 = vrot.slane %v1716, 1
        %v1719 = vshll.u32 %v1620, 16
        %v1721 = vrot.slane %v1719, 2
        %v1722 = vor.u32 %v1718, %v1721
        %v1723 = vsel %vm1644, %v1704, %v1722
        %v1725 = vshrl.u32 %v1621, 16
        %v1727 = vrot.slane %v1725, 1
        %v1728 = vshll.u32 %v1621, 16
        %v1730 = vrot.slane %v1728, 2
        %v1731 = vor.u32 %v1727, %v1730
        %v1732 = vsel %vm1644, %v1713, %v1731
        %v1734 = vshrl.u32 %v1622, 16
        %v1736 = vrot.slane %v1734, 1
        %v1737 = vshll.u32 %v1622, 16
        %v1739 = vrot.slane %v1737, 2
        %v1740 = vor.u32 %v1736, %v1739
        %v1741 = vsel %vm1644, %v1722, %v1740
        %v1743 = vshrl.u32 %v1623, 16
        %v1745 = vrot.slane %v1743, 1
        %v1746 = vshll.u32 %v1623, 16
        %v1748 = vrot.slane %v1746, 2
        %v1749 = vor.u32 %v1745, %v1748
        %v1750 = vsel %vm1644, %v1731, %v1749
        %v1752 = vshrl.u32 %v1624, 16
        %v1754 = vrot.slane %v1752, 1
        %v1755 = vshll.u32 %v1624, 16
        %v1757 = vrot.slane %v1755, 2
        %v1758 = vor.u32 %v1754, %v1757
        %v1759 = vsel %vm1644, %v1740, %v1758
        %v1761 = vshrl.u32 %v1625, 16
        %v1763 = vrot.slane %v1761, 1
        %v1764 = vshll.u32 %v1625, 16
        %v1766 = vrot.slane %v1764, 2
        %v1767 = vor.u32 %v1763, %v1766
        %v1768 = vsel %vm1644, %v1749, %v1767
        %v1794 = vunpack.c.l.b16 %v1626
        %v1795 = vunpack.c.l.b16 %v1627
        %v1796 = vunpack.c.l.b16 %v1628
        %v1797 = vunpack.c.l.b16 %v1629
        %v1798 = vunpack.c.l.b16 %v1630
        %v1799 = vunpack.c.l.b16 %v1631
        %v1800 = vunpack.c.l.b16 %v1632
        %v1801 = vunpack.c.l.b16 %v1633
        %v1802 = vunpack.c.l.b16 %v1634
        %v1803 = vunpack.c.l.b16 %v1635
        %v1804 = vunpack.c.l.b16 %v1636
        %v1805 = vunpack.c.l.b16 %v1637
        %v1806 = vunpack.c.l.b16 %v1638
        %v1807 = vunpack.c.l.b16 %v1639
        %v1808 = vunpack.c.l.b16 %v1640
        %v1809 = vunpack.c.l.b16 %v1641
        %v1810 = vunpack.c.l.b16 %v1642
        %v1811 = vunpack.c.l.b16 %v1643
        %v1812 = vpack.c.b16 %v1795, %v1794
        %v1813 = vpack.c.b16 %v1797, %v1796
        %v1814 = vpack.c.b16 %v1799, %v1798
        %v1815 = vpack.c.b16 %v1801, %v1800
        %v1816 = vpack.c.b16 %v1803, %v1802
        %v1817 = vpack.c.b16 %v1805, %v1804
        %v1818 = vpack.c.b16 %v1807, %v1806
        %v1819 = vpack.c.b16 %v1809, %v1808
        %v1820 = vpack.c.b16 %v1811, %v1810
        %v1831 = vsel %vm614, %v1678, 0
        %v1834 = vsel %vm614, %v1696, 0
        %v1837 = vsel %vm614, %v1714, 0
        %v1840 = vsel %vm614, %v1732, 0
        %v1843 = vsel %vm614, %v1750, 0
        %v1846 = vsel %vm614, %v1768, 0
        %v1849 = vsel %vm614, %v1767, 0
        %1851 = vmatprep.subr.bf16.mxu0 0
        %1852 = vmatpush1.bf16.msra.mxu0 %v1819
        %1853 = vmatprep.subr.bf16.mxu0 0
        %1854 = vmatpush1.bf16.msra.mxu0 %v1818
        %1855 = vmatprep.subr.bf16.mxu0 0
        %1856 = vmatpush1.bf16.msra.mxu0 %v1817
        %1857 = vmatprep.subr.bf16.mxu0 0
        %1858 = vmatpush1.bf16.msra.mxu0 %v1816
        %1859 = vmatprep.subr.bf16.mxu0 0
        %1860 = vmatpush1.bf16.msra.mxu0 %v1815
        %1861 = vmatprep.subr.bf16.mxu0 0
        %1862 = vmatpush1.bf16.msra.mxu0 %v1814
        %1863 = vmatprep.subr.bf16.mxu0 0
        %1864 = vmatpush1.bf16.msra.mxu0 %v1813
        %1865 = vmatprep.subr.bf16.mxu0 0
        %1866 = vmatpush1.bf16.msra.mxu0 %v1812
        %1867 = vmatprep.subr.bf16.mxu0 0
        %1868 = vmatpush2.bf16.msra.mxu0 0
        %1869 = vmatprep.subr.bf16.mxu0 0
        %1870 = vmatpush2.bf16.msra.mxu0 0
        %1871 = vmatprep.subr.bf16.mxu0 0
        %1872 = vmatpush2.bf16.msra.mxu0 0
        %1873 = vmatprep.subr.bf16.mxu0 0
        %1874 = vmatpush2.bf16.msra.mxu0 0
        %1875 = vmatprep.subr.bf16.mxu0 0
        %1876 = vmatpush2.bf16.msra.mxu0 0
        %1877 = vmatprep.subr.bf16.mxu0 0
        %1878 = vmatpush2.bf16.msra.mxu0 0
        %1879 = vmatprep.subr.bf16.mxu0 0
        %1880 = vmatpush2.bf16.msra.mxu0 0
        %1881 = vmatprep.subr.bf16.mxu0 0
        %1882 = vmatpush2.bf16.msra.mxu0 %v1820
        %1883 = vmatprep.mubr.bf16.mxu0 %v1831
        %1884 = vmatmul.mubr.bf16.gmra.mxu0 %v1661
        %v1885 = vpop.f32.mrf.mxu0
        %v1886 = vadd.f32 0.0, %v1885
        %v1887 = vpop.f32.mrf.mxu0
        %v1888 = vpop.f32.mrf.mxu0
        %v1889 = vadd.f32 0.0, %v1888
        %v1890 = vpop.f32.mrf.mxu0
        %1891 = vmatprep.mubr.bf16.mxu0 %v1834
        %1892 = vmatmul.mubr.bf16.gmra.mxu0 %v1687
        %v1893 = vpop.f32.mrf.mxu0
        %v1894 = vadd.f32 0.0, %v1893
        %v1895 = vpop.f32.mrf.mxu0
        %v1896 = vpop.f32.mrf.mxu0
        %v1897 = vadd.f32 0.0, %v1896
        %v1898 = vpop.f32.mrf.mxu0
        %1899 = vmatprep.mubr.bf16.mxu0 %v1837
        %1900 = vmatmul.mubr.bf16.gmra.mxu0 %v1705
        %v1901 = vpop.f32.mrf.mxu0
        %v1902 = vadd.f32 0.0, %v1901
        %v1903 = vpop.f32.mrf.mxu0
        %v1904 = vpop.f32.mrf.mxu0
        %v1905 = vadd.f32 0.0, %v1904
        %v1906 = vpop.f32.mrf.mxu0
        %1907 = vmatprep.mubr.bf16.mxu0 %v1840
        %1908 = vmatmul.mubr.bf16.gmra.mxu0 %v1723
        %v1909 = vpop.f32.mrf.mxu0
        %v1910 = vadd.f32 0.0, %v1909
        %v1911 = vpop.f32.mrf.mxu0
        %v1912 = vpop.f32.mrf.mxu0
        %v1913 = vadd.f32 0.0, %v1912
        %v1914 = vpop.f32.mrf.mxu0
        %1915 = vmatprep.mubr.bf16.mxu0 %v1843
        %1916 = vmatmul.mubr.bf16.gmra.mxu0 %v1741
        %v1917 = vpop.f32.mrf.mxu0
        %v1918 = vadd.f32 0.0, %v1917
        %v1919 = vpop.f32.mrf.mxu0
        %v1920 = vpop.f32.mrf.mxu0
        %v1921 = vadd.f32 0.0, %v1920
        %v1922 = vpop.f32.mrf.mxu0
        %1923 = vmatprep.mubr.bf16.mxu0 %v1846
        %1924 = vmatmul.mubr.bf16.gmra.mxu0 %v1759
        %v1925 = vpop.f32.mrf.mxu0
        %v1926 = vadd.f32 0.0, %v1925
        %v1927 = vpop.f32.mrf.mxu0
        %v1928 = vpop.f32.mrf.mxu0
        %v1929 = vadd.f32 0.0, %v1928
        %v1930 = vpop.f32.mrf.mxu0
        %1931 = vmatprep.mubr.bf16.mxu0 %v1849
        %1932 = vmatmul.mubr.bf16.gmra.mxu0 %v1758
        %v1933 = vpop.f32.mrf.mxu0
        %v1934 = vadd.f32 0.0, %v1933
        %v1935 = vpop.f32.mrf.mxu0
        %v1936 = vpop.f32.mrf.mxu0
        %v1937 = vpop.f32.mrf.mxu0
        %1938 = vdwg.mxu0
        %v1939 = vmul.f32 %v1886, %v897
        %v1940 = vmul.f32 %v1889, %v902
        %v1941 = vmul.f32 %v1894, %v907
        %v1942 = vmul.f32 %v1897, %v912
        %v1943 = vmul.f32 %v1902, %v917
        %v1944 = vmul.f32 %v1905, %v922
        %v1945 = vmul.f32 %v1910, %v927
        %v1946 = vmul.f32 %v1913, %v932
        %v1947 = vmul.f32 %v1918, %v937
        %v1948 = vmul.f32 %v1921, %v942
        %v1949 = vmul.f32 %v1926, %v947
        %v1950 = vmul.f32 %v1929, %v952
        %v1951 = vmul.f32 %v1934, %v957
        %v1952 = vld [vmem:[%s1 + $0x2] sm:$0x1]
        %v1953 = vld [vmem:[%s1 + $0x3] sm:$0x1]
        %v1954 = vsel %vm614, %v1939, 0.0
        %v1955 = vsel %vm614, %v1940, 0.0
        %v1956 = vadd.f32 %v1954, %v1955
        %v1957 = vsel %vm614, %v1941, 0.0
        %v1958 = vadd.f32 %v1956, %v1957
        %v1959 = vsel %vm614, %v1942, 0.0
        %v1960 = vadd.f32 %v1958, %v1959
        %v1961 = vsel %vm614, %v1943, 0.0
        %v1962 = vadd.f32 %v1960, %v1961
        %v1963 = vsel %vm614, %v1944, 0.0
        %v1964 = vadd.f32 %v1962, %v1963
        %v1965 = vsel %vm614, %v1945, 0.0
        %v1966 = vadd.f32 %v1964, %v1965
        %v1967 = vsel %vm614, %v1946, 0.0
        %v1968 = vadd.f32 %v1966, %v1967
        %v1969 = vsel %vm614, %v1947, 0.0
        %v1970 = vadd.f32 %v1968, %v1969
        %v1971 = vsel %vm614, %v1948, 0.0
        %v1972 = vadd.f32 %v1970, %v1971
        %v1973 = vsel %vm614, %v1949, 0.0
        %v1974 = vadd.f32 %v1972, %v1973
        %v1975 = vsel %vm614, %v1950, 0.0
        %v1976 = vadd.f32 %v1974, %v1975
        %v1977 = vsel %vm638, %v1951, 0.0
        %v1978 = vadd.f32 %v1976, %v1977
        %v1979 = vrot.slane %v1978, 4
        %v1980 = vadd.f32 %v1978, %v1979
        %v1981 = vrot.slane %v1980, 2
        %v1982 = vadd.f32 %v1980, %v1981
        %v1983 = vrot.slane %v1982, 1
        %v1984 = vadd.f32 %v1982, %v1983
        %v1985 = vmul.f32 %v1939, %v1939
        %v1986 = vmul.f32 %v1940, %v1940
        %v1987 = vmul.f32 %v1941, %v1941
        %v1988 = vmul.f32 %v1942, %v1942
        %v1989 = vmul.f32 %v1943, %v1943
        %v1990 = vmul.f32 %v1944, %v1944
        %v1991 = vmul.f32 %v1945, %v1945
        %v1992 = vmul.f32 %v1946, %v1946
        %v1993 = vmul.f32 %v1947, %v1947
        %v1994 = vmul.f32 %v1948, %v1948
        %v1995 = vmul.f32 %v1949, %v1949
        %v1996 = vmul.f32 %v1950, %v1950
        %v1997 = vmul.f32 %v1951, %v1951
        %v1998 = vsel %vm614, %v1985, 0.0
        %v1999 = vsel %vm614, %v1986, 0.0
        %v2000 = vadd.f32 %v1998, %v1999
        %v2001 = vsel %vm614, %v1987, 0.0
        %v2002 = vadd.f32 %v2000, %v2001
        %v2003 = vsel %vm614, %v1988, 0.0
        %v2004 = vadd.f32 %v2002, %v2003
        %v2005 = vsel %vm614, %v1989, 0.0
        %v2006 = vadd.f32 %v2004, %v2005
        %v2007 = vsel %vm614, %v1990, 0.0
        %v2008 = vadd.f32 %v2006, %v2007
        %v2009 = vsel %vm614, %v1991, 0.0
        %v2010 = vadd.f32 %v2008, %v2009
        %v2011 = vsel %vm614, %v1992, 0.0
        %v2012 = vadd.f32 %v2010, %v2011
        %v2013 = vsel %vm614, %v1993, 0.0
        %v2014 = vadd.f32 %v2012, %v2013
        %v2015 = vsel %vm614, %v1994, 0.0
        %v2016 = vadd.f32 %v2014, %v2015
        %v2017 = vsel %vm614, %v1995, 0.0
        %v2018 = vadd.f32 %v2016, %v2017
        %v2019 = vsel %vm614, %v1996, 0.0
        %v2020 = vadd.f32 %v2018, %v2019
        %v2021 = vsel %vm638, %v1997, 0.0
        %v2022 = vadd.f32 %v2020, %v2021
        %v2023 = vrot.slane %v2022, 4
        %v2024 = vadd.f32 %v2022, %v2023
        %v2025 = vrot.slane %v2024, 2
        %v2026 = vadd.f32 %v2024, %v2025
        %v2027 = vrot.slane %v2026, 1
        %v2028 = vadd.f32 %v2026, %v2027
        %v2029 = vld [vmem:[%s7] sm:$0xff]
        %v2030 = vld [vmem:[%s7 + $0x8] sm:$0xff]
        %v2032 = vsel %vm614, %v1984, 0
        %2034 = vmatprep.subr.mxu0 0.0
        %2035 = vmatpush1.msra.mxu0 0.0
        %2036 = vmatprep.subr.mxu0 0.0
        %2037 = vmatpush1.msra.mxu0 0.0
        %2038 = vmatprep.subr.mxu0 0.0
        %2039 = vmatpush1.msra.mxu0 0.0
        %2040 = vmatprep.subr.mxu0 0.0
        %2041 = vmatpush1.msra.mxu0 0.0
        %2042 = vmatprep.subr.mxu0 0.0
        %2043 = vmatpush1.msra.mxu0 0.0
        %2044 = vmatprep.subr.mxu0 0.0
        %2045 = vmatpush1.msra.mxu0 0.0
        %2046 = vmatprep.subr.mxu0 0.0
        %2047 = vmatpush1.msra.mxu0 0.0
        %2048 = vmatprep.subr.mxu0 0.0
        %2049 = vmatpush1.msra.mxu0 0.0
        %2050 = vmatprep.subr.mxu0 0.0
        %2051 = vmatpush1.msra.mxu0 0.0
        %2052 = vmatprep.subr.mxu0 0.0
        %2053 = vmatpush1.msra.mxu0 0.0
        %2054 = vmatprep.subr.mxu0 0.0
        %2055 = vmatpush1.msra.mxu0 0.0
        %2056 = vmatprep.subr.mxu0 0.0
        %2057 = vmatpush1.msra.mxu0 0.0
        %2058 = vmatprep.subr.mxu0 0.0
        %2059 = vmatpush1.msra.mxu0 0.0
        %2060 = vmatprep.subr.mxu0 0.0
        %2061 = vmatpush1.msra.mxu0 0.0
        %2062 = vmatprep.subr.mxu0 0.0
        %2063 = vmatpush1.msra.mxu0 %v2030
        %2064 = vmatprep.subr.mxu0 0.0
        %2065 = vmatpush1.msra.mxu0 %v2029
        %2066 = vmatprep.subr.mxu0 0.0
        %2067 = vmatpush2.msra.mxu0 0.0
        %2068 = vmatprep.subr.mxu0 0.0
        %2069 = vmatpush2.msra.mxu0 0.0
        %2070 = vmatprep.subr.mxu0 0.0
        %2071 = vmatpush2.msra.mxu0 0.0
        %2072 = vmatprep.subr.mxu0 0.0
        %2073 = vmatpush2.msra.mxu0 0.0
        %2074 = vmatprep.subr.mxu0 0.0
        %2075 = vmatpush2.msra.mxu0 0.0
        %2076 = vmatprep.subr.mxu0 0.0
        %2077 = vmatpush2.msra.mxu0 0.0
        %2078 = vmatprep.subr.mxu0 0.0
        %2079 = vmatpush2.msra.mxu0 0.0
        %2080 = vmatprep.subr.mxu0 0.0
        %2081 = vmatpush2.msra.mxu0 0.0
        %2082 = vmatprep.subr.mxu0 0.0
        %2083 = vmatpush2.msra.mxu0 0.0
        %2084 = vmatprep.subr.mxu0 0.0
        %2085 = vmatpush2.msra.mxu0 0.0
        %2086 = vmatprep.subr.mxu0 0.0
        %2087 = vmatpush2.msra.mxu0 0.0
        %2088 = vmatprep.subr.mxu0 0.0
        %2089 = vmatpush2.msra.mxu0 0.0
        %2090 = vmatprep.subr.mxu0 0.0
        %2091 = vmatpush2.msra.mxu0 0.0
        %2092 = vmatprep.subr.mxu0 0.0
        %2093 = vmatpush2.msra.mxu0 0.0
        %2094 = vmatprep.subr.mxu0 0.0
        %2095 = vmatpush2.msra.mxu0 0.0
        %2096 = vmatprep.subr.mxu0 0.0
        %2097 = vmatpush2.msra.mxu0 0.0
        %2098 = vmatprep.mubr.f32.mxu0 0.0
        %2099 = vmatmul.mubr.f32.gmra.mxu0 %v2032
        %v2100 = vpop.f32.mrf.mxu0
        %v2101 = vadd.f32 0.0, %v2100
        %v2102 = vpop.f32.mrf.mxu0
        %2103 = vdwg.mxu0
        %v2105 = vsel %vm614, %v2028, 0
        %2107 = vmatprep.subr.mxu0 0.0
        %2108 = vmatpush1.msra.mxu0 0.0
        %2109 = vmatprep.subr.mxu0 0.0
        %2110 = vmatpush1.msra.mxu0 0.0
        %2111 = vmatprep.subr.mxu0 0.0
        %2112 = vmatpush1.msra.mxu0 0.0
        %2113 = vmatprep.subr.mxu0 0.0
        %2114 = vmatpush1.msra.mxu0 0.0
        %2115 = vmatprep.subr.mxu0 0.0
        %2116 = vmatpush1.msra.mxu0 0.0
        %2117 = vmatprep.subr.mxu0 0.0
        %2118 = vmatpush1.msra.mxu0 0.0
        %2119 = vmatprep.subr.mxu0 0.0
        %2120 = vmatpush1.msra.mxu0 0.0
        %2121 = vmatprep.subr.mxu0 0.0
        %2122 = vmatpush1.msra.mxu0 0.0
        %2123 = vmatprep.subr.mxu0 0.0
        %2124 = vmatpush1.msra.mxu0 0.0
        %2125 = vmatprep.subr.mxu0 0.0
        %2126 = vmatpush1.msra.mxu0 0.0
        %2127 = vmatprep.subr.mxu0 0.0
        %2128 = vmatpush1.msra.mxu0 0.0
        %2129 = vmatprep.subr.mxu0 0.0
        %2130 = vmatpush1.msra.mxu0 0.0
        %2131 = vmatprep.subr.mxu0 0.0
        %2132 = vmatpush1.msra.mxu0 0.0
        %2133 = vmatprep.subr.mxu0 0.0
        %2134 = vmatpush1.msra.mxu0 0.0
        %2135 = vmatprep.subr.mxu0 0.0
        %2136 = vmatpush1.msra.mxu0 %v2030
        %2137 = vmatprep.subr.mxu0 0.0
        %2138 = vmatpush1.msra.mxu0 %v2029
        %2139 = vmatprep.subr.mxu0 0.0
        %2140 = vmatpush2.msra.mxu0 0.0
        %2141 = vmatprep.subr.mxu0 0.0
        %2142 = vmatpush2.msra.mxu0 0.0
        %2143 = vmatprep.subr.mxu0 0.0
        %2144 = vmatpush2.msra.mxu0 0.0
        %2145 = vmatprep.subr.mxu0 0.0
        %2146 = vmatpush2.msra.mxu0 0.0
        %2147 = vmatprep.subr.mxu0 0.0
        %2148 = vmatpush2.msra.mxu0 0.0
        %2149 = vmatprep.subr.mxu0 0.0
        %2150 = vmatpush2.msra.mxu0 0.0
        %2151 = vmatprep.subr.mxu0 0.0
        %2152 = vmatpush2.msra.mxu0 0.0
        %2153 = vmatprep.subr.mxu0 0.0
        %2154 = vmatpush2.msra.mxu0 0.0
        %2155 = vmatprep.subr.mxu0 0.0
        %2156 = vmatpush2.msra.mxu0 0.0
        %2157 = vmatprep.subr.mxu0 0.0
        %2158 = vmatpush2.msra.mxu0 0.0
        %2159 = vmatprep.subr.mxu0 0.0
        %2160 = vmatpush2.msra.mxu0 0.0
        %2161 = vmatprep.subr.mxu0 0.0
        %2162 = vmatpush2.msra.mxu0 0.0
        %2163 = vmatprep.subr.mxu0 0.0
        %2164 = vmatpush2.msra.mxu0 0.0
        %2165 = vmatprep.subr.mxu0 0.0
        %2166 = vmatpush2.msra.mxu0 0.0
        %2167 = vmatprep.subr.mxu0 0.0
        %2168 = vmatpush2.msra.mxu0 0.0
        %2169 = vmatprep.subr.mxu0 0.0
        %2170 = vmatpush2.msra.mxu0 0.0
        %2171 = vmatprep.mubr.f32.mxu0 0.0
        %2172 = vmatmul.mubr.f32.gmra.mxu0 %v2105
        %v2173 = vpop.f32.mrf.mxu0
        %v2174 = vadd.f32 0.0, %v2173
        %v2175 = vpop.f32.mrf.mxu0
        %2176 = vdwg.mxu0
        %v2177 = vmul.f32 %v2101, %v2101
        %v2178 = vsub.f32 %v2174, %v2177
        %v2179 = vmax.f32 %v2178, 0.0
        %v2180 = vadd.f32 %v2179, 1e-05
        %v2181 = vrsqrt.pop %v2180
        %v2182 = vmul.f32 %v2181, %v1952
        %v2183 = vmul.f32 %v2101, %v2182
        %v2184 = vsub.f32 %v1953, %v2183
        %v2185 = vlaneseq
        %v2186 = vshrl.u32 %v2185, 7
        %v2187 = vsub.s32 0, %v2186
        %v2188 = vrot.slane %v2182, %v2187
        %v2189 = vmul.f32 %v1939, %v2188
        %v2190 = vmul.f32 %v1940, %v2188
        %v2191 = vmul.f32 %v1941, %v2188
        %v2192 = vmul.f32 %v1942, %v2188
        %v2193 = vmul.f32 %v1943, %v2188
        %v2194 = vmul.f32 %v1944, %v2188
        %v2195 = vmul.f32 %v1945, %v2188
        %v2196 = vmul.f32 %v1946, %v2188
        %v2197 = vmul.f32 %v1947, %v2188
        %v2198 = vmul.f32 %v1948, %v2188
        %v2199 = vmul.f32 %v1949, %v2188
        %v2200 = vmul.f32 %v1950, %v2188
        %v2201 = vmul.f32 %v1951, %v2188
        %v2202 = vlaneseq
        %v2203 = vshrl.u32 %v2202, 7
        %v2204 = vsub.s32 0, %v2203
        %v2205 = vrot.slane %v2184, %v2204
        %v2206 = vadd.f32 %v2189, %v2205
        %v2207 = vadd.f32 %v2190, %v2205
        %v2208 = vadd.f32 %v2191, %v2205
        %v2209 = vadd.f32 %v2192, %v2205
        %v2210 = vadd.f32 %v2193, %v2205
        %v2211 = vadd.f32 %v2194, %v2205
        %v2212 = vadd.f32 %v2195, %v2205
        %v2213 = vadd.f32 %v2196, %v2205
        %v2214 = vadd.f32 %v2197, %v2205
        %v2215 = vadd.f32 %v2198, %v2205
        %v2216 = vadd.f32 %v2199, %v2205
        %v2217 = vadd.f32 %v2200, %v2205
        %v2218 = vadd.f32 %v2201, %v2205
        %v2219 = vmax.f32 %v2206, 0.0
        %v2220 = vmax.f32 %v2207, 0.0
        %v2221 = vmax.f32 %v2208, 0.0
        %v2222 = vmax.f32 %v2209, 0.0
        %v2223 = vmax.f32 %v2210, 0.0
        %v2224 = vmax.f32 %v2211, 0.0
        %v2225 = vmax.f32 %v2212, 0.0
        %v2226 = vmax.f32 %v2213, 0.0
        %v2227 = vmax.f32 %v2214, 0.0
        %v2228 = vmax.f32 %v2215, 0.0
        %v2229 = vmax.f32 %v2216, 0.0
        %v2230 = vmax.f32 %v2217, 0.0
        %v2231 = vmax.f32 %v2218, 0.0
        %v2232 = vmul.f32 %v2219, %v897
        %v2233 = vmul.f32 %v2220, %v902
        %v2234 = vmul.f32 %v2221, %v907
        %v2235 = vmul.f32 %v2222, %v912
        %v2236 = vmul.f32 %v2223, %v917
        %v2237 = vmul.f32 %v2224, %v922
        %v2238 = vmul.f32 %v2225, %v927
        %v2239 = vmul.f32 %v2226, %v932
        %v2240 = vmul.f32 %v2227, %v937
        %v2241 = vmul.f32 %v2228, %v942
        %v2242 = vmul.f32 %v2229, %v947
        %v2243 = vmul.f32 %v2230, %v952
        %v2244 = vmul.f32 %v2231, %v957
        %2245 = vst [vmem:[#allocation3] sm:$0xff] 0.0
        %2246 = vst.msk [vmem:[#allocation3 + $0x8] sm:$0xff] %vm614, 0.0
        %2247 = vst [vmem:[#allocation3 + $0x10] sm:$0xff] 0.0
        %2248 = vst.msk [vmem:[#allocation3 + $0x18] sm:$0xff] %vm614, 0.0
        %2249 = vst [vmem:[#allocation3 + $0x20] sm:$0x3f] 0.0
        %2250 = vst.msk [vmem:[#allocation3 + $0x28] sm:$0x3f] %vm977, 0.0
        %2251 = vst [vmem:[#allocation3 + $0xc0] sm:$0xf0] 0.0
        %2252 = vst.msk [vmem:[#allocation3 + $0xc8] sm:$0xf0] %vm980, 0.0
        %2253 = vst [vmem:[#allocation3 + $0xd0] sm:$0xff] 0.0
        %2254 = vst.msk [vmem:[#allocation3 + $0xd8] sm:$0xff] %vm614, 0.0
        %2255 = vst [vmem:[#allocation3 + $0xe0] sm:$0xff] 0.0
        %2256 = vst.msk [vmem:[#allocation3 + $0xe8] sm:$0xff] %vm614, 0.0
        %2257 = vst [vmem:[#allocation3 + $0xf0] sm:$0x3] 0.0
        %2258 = vst.msk [vmem:[#allocation3 + $0xf8] sm:$0x3] %vm987, 0.0
        %v2272 = vrot.slane %v2232, 2
        %v2273 = vrot.slane %v2233, 2
        %v2274 = vsel %vm1002, %v2272, %v2273
        %v2275 = vrot.slane %v2234, 2
        %v2276 = vsel %vm1002, %v2273, %v2275
        %v2277 = vrot.slane %v2235, 2
        %v2278 = vsel %vm1002, %v2275, %v2277
        %v2279 = vrot.slane %v2236, 2
        %v2280 = vsel %vm1002, %v2277, %v2279
        %v2281 = vrot.slane %v2237, 2
        %v2282 = vsel %vm1002, %v2279, %v2281
        %v2283 = vrot.slane %v2238, 2
        %v2284 = vsel %vm1002, %v2281, %v2283
        %v2285 = vrot.slane %v2239, 2
        %v2286 = vsel %vm1002, %v2283, %v2285
        %v2287 = vrot.slane %v2240, 2
        %v2288 = vsel %vm1002, %v2285, %v2287
        %v2289 = vrot.slane %v2241, 2
        %v2290 = vsel %vm1002, %v2287, %v2289
        %v2291 = vrot.slane %v2242, 2
        %v2292 = vsel %vm1002, %v2289, %v2291
        %v2293 = vrot.slane %v2243, 2
        %v2294 = vsel %vm1002, %v2291, %v2293
        %v2295 = vrot.slane %v2244, 2
        %v2296 = vsel %vm1002, %v2293, %v2295
        %2311 = vst.msk [vmem:[#allocation3 + $0x20] sm:$0xc0] %vm1042, %v2272
        %2312 = vst.msk [vmem:[#allocation3 + $0x30] sm:$0xff] %vm614, %v2274
        %2313 = vst.msk [vmem:[#allocation3 + $0x40] sm:$0xff] %vm614, %v2276
        %2314 = vst.msk [vmem:[#allocation3 + $0x50] sm:$0xff] %vm614, %v2278
        %2315 = vst.msk [vmem:[#allocation3 + $0x60] sm:$0xff] %vm614, %v2280
        %2316 = vst.msk [vmem:[#allocation3 + $0x70] sm:$0xff] %vm614, %v2282
        %2317 = vst.msk [vmem:[#allocation3 + $0x80] sm:$0xff] %vm614, %v2284
        %2318 = vst.msk [vmem:[#allocation3 + $0x90] sm:$0xff] %vm614, %v2286
        %2319 = vst.msk [vmem:[#allocation3 + $0xa0] sm:$0xff] %vm614, %v2288
        %2320 = vst.msk [vmem:[#allocation3 + $0xb0] sm:$0xff] %vm614, %v2290
        %2321 = vst.msk [vmem:[#allocation3 + $0xc0] sm:$0xff] %vm614, %v2292
        %2322 = vst.msk [vmem:[#allocation3 + $0xd0] sm:$0xff] %vm614, %v2294
        %2323 = vst.msk [vmem:[#allocation3 + $0xe0] sm:$0xff] %vm614, %v2296
        %2324 = vst.msk [vmem:[#allocation3 + $0xf0] sm:$0x3] %vm987, %v2295
        %v2325 = vrot.slane %v2232, 3
        %v2326 = vrot.slane %v2233, 3
        %v2327 = vsel %vm1057, %v2325, %v2326
        %v2328 = vrot.slane %v2234, 3
        %v2329 = vsel %vm1057, %v2326, %v2328
        %v2330 = vrot.slane %v2235, 3
        %v2331 = vsel %vm1057, %v2328, %v2330
        %v2332 = vrot.slane %v2236, 3
        %v2333 = vsel %vm1057, %v2330, %v2332
        %v2334 = vrot.slane %v2237, 3
        %v2335 = vsel %vm1057, %v2332, %v2334
        %v2336 = vrot.slane %v2238, 3
        %v2337 = vsel %vm1057, %v2334, %v2336
        %v2338 = vrot.slane %v2239, 3
        %v2339 = vsel %vm1057, %v2336, %v2338
        %v2340 = vrot.slane %v2240, 3
        %v2341 = vsel %vm1057, %v2338, %v2340
        %v2342 = vrot.slane %v2241, 3
        %v2343 = vsel %vm1057, %v2340, %v2342
        %v2344 = vrot.slane %v2242, 3
        %v2345 = vsel %vm1057, %v2342, %v2344
        %v2346 = vrot.slane %v2243, 3
        %v2347 = vsel %vm1057, %v2344, %v2346
        %v2348 = vrot.slane %v2244, 3
        %v2349 = vsel %vm1057, %v2346, %v2348
        %2350 = vrot.lane.b32.xlu0 %v2325, 16
        %v2351 = vpop.permute.xlu0 %2350
        %2352 = vrot.lane.b32.xlu0 %v2327, 16
        %v2353 = vpop.permute.xlu0 %2352
        %2354 = vrot.lane.b32.xlu0 %v2329, 16
        %v2355 = vpop.permute.xlu0 %2354
        %2356 = vrot.lane.b32.xlu0 %v2331, 16
        %v2357 = vpop.permute.xlu0 %2356
        %2358 = vrot.lane.b32.xlu0 %v2333, 16
        %v2359 = vpop.permute.xlu0 %2358
        %2360 = vrot.lane.b32.xlu0 %v2335, 16
        %v2361 = vpop.permute.xlu0 %2360
        %2362 = vrot.lane.b32.xlu0 %v2337, 16
        %v2363 = vpop.permute.xlu0 %2362
        %2364 = vrot.lane.b32.xlu0 %v2339, 16
        %v2365 = vpop.permute.xlu0 %2364
        %2366 = vrot.lane.b32.xlu0 %v2341, 16
        %v2367 = vpop.permute.xlu0 %2366
        %2368 = vrot.lane.b32.xlu0 %v2343, 16
        %v2369 = vpop.permute.xlu0 %2368
        %2370 = vrot.lane.b32.xlu0 %v2345, 16
        %v2371 = vpop.permute.xlu0 %2370
        %2372 = vrot.lane.b32.xlu0 %v2347, 16
        %v2373 = vpop.permute.xlu0 %2372
        %2374 = vrot.lane.b32.xlu0 %v2349, 16
        %v2375 = vpop.permute.xlu0 %2374
        %2376 = vrot.lane.b32.xlu0 %v2348, 16
        %v2377 = vpop.permute.xlu0 %2376
        %2392 = vst.msk [vmem:[#allocation3 + $0x20] sm:$0xe0] %vm1125, %v2351
        %2393 = vst.msk [vmem:[#allocation3 + $0x30] sm:$0xff] %vm1127, %v2353
        %2394 = vst.msk [vmem:[#allocation3 + $0x40] sm:$0xff] %vm1127, %v2355
        %2395 = vst.msk [vmem:[#allocation3 + $0x50] sm:$0xff] %vm1127, %v2357
        %2396 = vst.msk [vmem:[#allocation3 + $0x60] sm:$0xff] %vm1127, %v2359
        %2397 = vst.msk [vmem:[#allocation3 + $0x70] sm:$0xff] %vm1127, %v2361
        %2398 = vst.msk [vmem:[#allocation3 + $0x80] sm:$0xff] %vm1127, %v2363
        %2399 = vst.msk [vmem:[#allocation3 + $0x90] sm:$0xff] %vm1127, %v2365
        %2400 = vst.msk [vmem:[#allocation3 + $0xa0] sm:$0xff] %vm1127, %v2367
        %2401 = vst.msk [vmem:[#allocation3 + $0xb0] sm:$0xff] %vm1127, %v2369
        %2402 = vst.msk [vmem:[#allocation3 + $0xc0] sm:$0xff] %vm1127, %v2371
        %2403 = vst.msk [vmem:[#allocation3 + $0xd0] sm:$0xff] %vm1127, %v2373
        %2404 = vst.msk [vmem:[#allocation3 + $0xe0] sm:$0xff] %vm1127, %v2375
        %2405 = vst.msk [vmem:[#allocation3 + $0xf0] sm:$0x1] %vm1140, %v2377
        %v2406 = vrot.slane %v2232, 4
        %v2407 = vrot.slane %v2233, 4
        %v2408 = vsel %vm1142, %v2406, %v2407
        %v2409 = vrot.slane %v2234, 4
        %v2410 = vsel %vm1142, %v2407, %v2409
        %v2411 = vrot.slane %v2235, 4
        %v2412 = vsel %vm1142, %v2409, %v2411
        %v2413 = vrot.slane %v2236, 4
        %v2414 = vsel %vm1142, %v2411, %v2413
        %v2415 = vrot.slane %v2237, 4
        %v2416 = vsel %vm1142, %v2413, %v2415
        %v2417 = vrot.slane %v2238, 4
        %v2418 = vsel %vm1142, %v2415, %v2417
        %v2419 = vrot.slane %v2239, 4
        %v2420 = vsel %vm1142, %v2417, %v2419
        %v2421 = vrot.slane %v2240, 4
        %v2422 = vsel %vm1142, %v2419, %v2421
        %v2423 = vrot.slane %v2241, 4
        %v2424 = vsel %vm1142, %v2421, %v2423
        %v2425 = vrot.slane %v2242, 4
        %v2426 = vsel %vm1142, %v2423, %v2425
        %v2427 = vrot.slane %v2243, 4
        %v2428 = vsel %vm1142, %v2425, %v2427
        %v2429 = vrot.slane %v2244, 4
        %v2430 = vsel %vm1142, %v2427, %v2429
        %2431 = vrot.lane.b32.xlu0 %v2406, 32
        %v2432 = vpop.permute.xlu0 %2431
        %2433 = vrot.lane.b32.xlu0 %v2408, 32
        %v2434 = vpop.permute.xlu0 %2433
        %2435 = vrot.lane.b32.xlu0 %v2410, 32
        %v2436 = vpop.permute.xlu0 %2435
        %2437 = vrot.lane.b32.xlu0 %v2412, 32
        %v2438 = vpop.permute.xlu0 %2437
        %2439 = vrot.lane.b32.xlu0 %v2414, 32
        %v2440 = vpop.permute.xlu0 %2439
        %2441 = vrot.lane.b32.xlu0 %v2416, 32
        %v2442 = vpop.permute.xlu0 %2441
        %2443 = vrot.lane.b32.xlu0 %v2418, 32
        %v2444 = vpop.permute.xlu0 %2443
        %2445 = vrot.lane.b32.xlu0 %v2420, 32
        %v2446 = vpop.permute.xlu0 %2445
        %2447 = vrot.lane.b32.xlu0 %v2422, 32
        %v2448 = vpop.permute.xlu0 %2447
        %2449 = vrot.lane.b32.xlu0 %v2424, 32
        %v2450 = vpop.permute.xlu0 %2449
        %2451 = vrot.lane.b32.xlu0 %v2426, 32
        %v2452 = vpop.permute.xlu0 %2451
        %2453 = vrot.lane.b32.xlu0 %v2428, 32
        %v2454 = vpop.permute.xlu0 %2453
        %2455 = vrot.lane.b32.xlu0 %v2430, 32
        %v2456 = vpop.permute.xlu0 %2455
        %2470 = vst.msk [vmem:[#allocation3 + $0x20] sm:$0xf0] %vm1207, %v2432
        %2471 = vst.msk [vmem:[#allocation3 + $0x30] sm:$0xff] %vm1209, %v2434
        %2472 = vst.msk [vmem:[#allocation3 + $0x40] sm:$0xff] %vm1209, %v2436
        %2473 = vst.msk [vmem:[#allocation3 + $0x50] sm:$0xff] %vm1209, %v2438
        %2474 = vst.msk [vmem:[#allocation3 + $0x60] sm:$0xff] %vm1209, %v2440
        %2475 = vst.msk [vmem:[#allocation3 + $0x70] sm:$0xff] %vm1209, %v2442
        %2476 = vst.msk [vmem:[#allocation3 + $0x80] sm:$0xff] %vm1209, %v2444
        %2477 = vst.msk [vmem:[#allocation3 + $0x90] sm:$0xff] %vm1209, %v2446
        %2478 = vst.msk [vmem:[#allocation3 + $0xa0] sm:$0xff] %vm1209, %v2448
        %2479 = vst.msk [vmem:[#allocation3 + $0xb0] sm:$0xff] %vm1209, %v2450
        %2480 = vst.msk [vmem:[#allocation3 + $0xc0] sm:$0xff] %vm1209, %v2452
        %2481 = vst.msk [vmem:[#allocation3 + $0xd0] sm:$0xff] %vm1209, %v2454
        %2482 = vst.msk [vmem:[#allocation3 + $0xe0] sm:$0xff] %vm1209, %v2456
        %2483 = vrot.lane.b32.xlu0 %v2406, 48
        %v2484 = vpop.permute.xlu0 %2483
        %2485 = vrot.lane.b32.xlu0 %v2408, 48
        %v2486 = vpop.permute.xlu0 %2485
        %2487 = vrot.lane.b32.xlu0 %v2410, 48
        %v2488 = vpop.permute.xlu0 %2487
        %2489 = vrot.lane.b32.xlu0 %v2412, 48
        %v2490 = vpop.permute.xlu0 %2489
        %2491 = vrot.lane.b32.xlu0 %v2414, 48
        %v2492 = vpop.permute.xlu0 %2491
        %2493 = vrot.lane.b32.xlu0 %v2416, 48
        %v2494 = vpop.permute.xlu0 %2493
        %2495 = vrot.lane.b32.xlu0 %v2418, 48
        %v2496 = vpop.permute.xlu0 %2495
        %2497 = vrot.lane.b32.xlu0 %v2420, 48
        %v2498 = vpop.permute.xlu0 %2497
        %2499 = vrot.lane.b32.xlu0 %v2422, 48
        %v2500 = vpop.permute.xlu0 %2499
        %2501 = vrot.lane.b32.xlu0 %v2424, 48
        %v2502 = vpop.permute.xlu0 %2501
        %2503 = vrot.lane.b32.xlu0 %v2426, 48
        %v2504 = vpop.permute.xlu0 %2503
        %2505 = vrot.lane.b32.xlu0 %v2428, 48
        %v2506 = vpop.permute.xlu0 %2505
        %2507 = vrot.lane.b32.xlu0 %v2430, 48
        %v2508 = vpop.permute.xlu0 %2507
        %2522 = vst.msk [vmem:[#allocation3 + $0x10] sm:$0xf0] %vm1261, %v2484
        %2523 = vst.msk [vmem:[#allocation3 + $0x20] sm:$0xff] %vm1263, %v2486
        %2524 = vst.msk [vmem:[#allocation3 + $0x30] sm:$0xff] %vm1263, %v2488
        %2525 = vst.msk [vmem:[#allocation3 + $0x40] sm:$0xff] %vm1263, %v2490
        %2526 = vst.msk [vmem:[#allocation3 + $0x50] sm:$0xff] %vm1263, %v2492
        %2527 = vst.msk [vmem:[#allocation3 + $0x60] sm:$0xff] %vm1263, %v2494
        %2528 = vst.msk [vmem:[#allocation3 + $0x70] sm:$0xff] %vm1263, %v2496
        %2529 = vst.msk [vmem:[#allocation3 + $0x80] sm:$0xff] %vm1263, %v2498
        %2530 = vst.msk [vmem:[#allocation3 + $0x90] sm:$0xff] %vm1263, %v2500
        %2531 = vst.msk [vmem:[#allocation3 + $0xa0] sm:$0xff] %vm1263, %v2502
        %2532 = vst.msk [vmem:[#allocation3 + $0xb0] sm:$0xff] %vm1263, %v2504
        %2533 = vst.msk [vmem:[#allocation3 + $0xc0] sm:$0xff] %vm1263, %v2506
        %2534 = vst.msk [vmem:[#allocation3 + $0xd0] sm:$0xff] %vm1263, %v2508
        %v2535 = vrot.slane %v2232, 5
        %v2536 = vrot.slane %v2233, 5
        %v2537 = vsel %vm1276, %v2535, %v2536
        %v2538 = vrot.slane %v2234, 5
        %v2539 = vsel %vm1276, %v2536, %v2538
        %v2540 = vrot.slane %v2235, 5
        %v2541 = vsel %vm1276, %v2538, %v2540
        %v2542 = vrot.slane %v2236, 5
        %v2543 = vsel %vm1276, %v2540, %v2542
        %v2544 = vrot.slane %v2237, 5
        %v2545 = vsel %vm1276, %v2542, %v2544
        %v2546 = vrot.slane %v2238, 5
        %v2547 = vsel %vm1276, %v2544, %v2546
        %v2548 = vrot.slane %v2239, 5
        %v2549 = vsel %vm1276, %v2546, %v2548
        %v2550 = vrot.slane %v2240, 5
        %v2551 = vsel %vm1276, %v2548, %v2550
        %v2552 = vrot.slane %v2241, 5
        %v2553 = vsel %vm1276, %v2550, %v2552
        %v2554 = vrot.slane %v2242, 5
        %v2555 = vsel %vm1276, %v2552, %v2554
        %v2556 = vrot.slane %v2243, 5
        %v2557 = vsel %vm1276, %v2554, %v2556
        %v2558 = vrot.slane %v2244, 5
        %v2559 = vsel %vm1276, %v2556, %v2558
        %2560 = vrot.lane.b32.xlu0 %v2535, 64
        %v2561 = vpop.permute.xlu0 %2560
        %2562 = vrot.lane.b32.xlu0 %v2537, 64
        %v2563 = vpop.permute.xlu0 %2562
        %2564 = vrot.lane.b32.xlu0 %v2539, 64
        %v2565 = vpop.permute.xlu0 %2564
        %2566 = vrot.lane.b32.xlu0 %v2541, 64
        %v2567 = vpop.permute.xlu0 %2566
        %2568 = vrot.lane.b32.xlu0 %v2543, 64
        %v2569 = vpop.permute.xlu0 %2568
        %2570 = vrot.lane.b32.xlu0 %v2545, 64
        %v2571 = vpop.permute.xlu0 %2570
        %2572 = vrot.lane.b32.xlu0 %v2547, 64
        %v2573 = vpop.permute.xlu0 %2572
        %2574 = vrot.lane.b32.xlu0 %v2549, 64
        %v2575 = vpop.permute.xlu0 %2574
        %2576 = vrot.lane.b32.xlu0 %v2551, 64
        %v2577 = vpop.permute.xlu0 %2576
        %2578 = vrot.lane.b32.xlu0 %v2553, 64
        %v2579 = vpop.permute.xlu0 %2578
        %2580 = vrot.lane.b32.xlu0 %v2555, 64
        %v2581 = vpop.permute.xlu0 %2580
        %2582 = vrot.lane.b32.xlu0 %v2557, 64
        %v2583 = vpop.permute.xlu0 %2582
        %2584 = vrot.lane.b32.xlu0 %v2559, 64
        %v2585 = vpop.permute.xlu0 %2584
        %2599 = vst.msk [vmem:[#allocation3 + $0x10] sm:$0xf8] %vm1341, %v2561
        %2600 = vst.msk [vmem:[#allocation3 + $0x20] sm:$0xff] %vm1343, %v2563
        %2601 = vst.msk [vmem:[#allocation3 + $0x30] sm:$0xff] %vm1343, %v2565
        %2602 = vst.msk [vmem:[#allocation3 + $0x40] sm:$0xff] %vm1343, %v2567
        %2603 = vst.msk [vmem:[#allocation3 + $0x50] sm:$0xff] %vm1343, %v2569
        %2604 = vst.msk [vmem:[#allocation3 + $0x60] sm:$0xff] %vm1343, %v2571
        %2605 = vst.msk [vmem:[#allocation3 + $0x70] sm:$0xff] %vm1343, %v2573
        %2606 = vst.msk [vmem:[#allocation3 + $0x80] sm:$0xff] %vm1343, %v2575
        %2607 = vst.msk [vmem:[#allocation3 + $0x90] sm:$0xff] %vm1343, %v2577
        %2608 = vst.msk [vmem:[#allocation3 + $0xa0] sm:$0xff] %vm1343, %v2579
        %2609 = vst.msk [vmem:[#allocation3 + $0xb0] sm:$0xff] %vm1343, %v2581
        %2610 = vst.msk [vmem:[#allocation3 + $0xc0] sm:$0xff] %vm1343, %v2583
        %2611 = vst.msk [vmem:[#allocation3 + $0xd0] sm:$0x7f] %vm1355, %v2585
        %v2612 = vrot.slane %v2232, 6
        %v2613 = vrot.slane %v2233, 6
        %v2614 = vsel %vm520, %v2612, %v2613
        %v2615 = vrot.slane %v2234, 6
        %v2616 = vsel %vm520, %v2613, %v2615
        %v2617 = vrot.slane %v2235, 6
        %v2618 = vsel %vm520, %v2615, %v2617
        %v2619 = vrot.slane %v2236, 6
        %v2620 = vsel %vm520, %v2617, %v2619
        %v2621 = vrot.slane %v2237, 6
        %v2622 = vsel %vm520, %v2619, %v2621
        %v2623 = vrot.slane %v2238, 6
        %v2624 = vsel %vm520, %v2621, %v2623
        %v2625 = vrot.slane %v2239, 6
        %v2626 = vsel %vm520, %v2623, %v2625
        %v2627 = vrot.slane %v2240, 6
        %v2628 = vsel %vm520, %v2625, %v2627
        %v2629 = vrot.slane %v2241, 6
        %v2630 = vsel %vm520, %v2627, %v2629
        %v2631 = vrot.slane %v2242, 6
        %v2632 = vsel %vm520, %v2629, %v2631
        %v2633 = vrot.slane %v2243, 6
        %v2634 = vsel %vm520, %v2631, %v2633
        %v2635 = vrot.slane %v2244, 6
        %v2636 = vsel %vm520, %v2633, %v2635
        %2637 = vrot.lane.b32.xlu0 %v2612, 80
        %v2638 = vpop.permute.xlu0 %2637
        %2639 = vrot.lane.b32.xlu0 %v2614, 80
        %v2640 = vpop.permute.xlu0 %2639
        %2641 = vrot.lane.b32.xlu0 %v2616, 80
        %v2642 = vpop.permute.xlu0 %2641
        %2643 = vrot.lane.b32.xlu0 %v2618, 80
        %v2644 = vpop.permute.xlu0 %2643
        %2645 = vrot.lane.b32.xlu0 %v2620, 80
        %v2646 = vpop.permute.xlu0 %2645
        %2647 = vrot.lane.b32.xlu0 %v2622, 80
        %v2648 = vpop.permute.xlu0 %2647
        %2649 = vrot.lane.b32.xlu0 %v2624, 80
        %v2650 = vpop.permute.xlu0 %2649
        %2651 = vrot.lane.b32.xlu0 %v2626, 80
        %v2652 = vpop.permute.xlu0 %2651
        %2653 = vrot.lane.b32.xlu0 %v2628, 80
        %v2654 = vpop.permute.xlu0 %2653
        %2655 = vrot.lane.b32.xlu0 %v2630, 80
        %v2656 = vpop.permute.xlu0 %2655
        %2657 = vrot.lane.b32.xlu0 %v2632, 80
        %v2658 = vpop.permute.xlu0 %2657
        %2659 = vrot.lane.b32.xlu0 %v2634, 80
        %v2660 = vpop.permute.xlu0 %2659
        %2661 = vrot.lane.b32.xlu0 %v2636, 80
        %v2662 = vpop.permute.xlu0 %2661
        %2676 = vst.msk [vmem:[#allocation3 + $0x10] sm:$0xfc] %vm1421, %v2638
        %2677 = vst.msk [vmem:[#allocation3 + $0x20] sm:$0xff] %vm1423, %v2640
        %2678 = vst.msk [vmem:[#allocation3 + $0x30] sm:$0xff] %vm1423, %v2642
        %2679 = vst.msk [vmem:[#allocation3 + $0x40] sm:$0xff] %vm1423, %v2644
        %2680 = vst.msk [vmem:[#allocation3 + $0x50] sm:$0xff] %vm1423, %v2646
        %2681 = vst.msk [vmem:[#allocation3 + $0x60] sm:$0xff] %vm1423, %v2648
        %2682 = vst.msk [vmem:[#allocation3 + $0x70] sm:$0xff] %vm1423, %v2650
        %2683 = vst.msk [vmem:[#allocation3 + $0x80] sm:$0xff] %vm1423, %v2652
        %2684 = vst.msk [vmem:[#allocation3 + $0x90] sm:$0xff] %vm1423, %v2654
        %2685 = vst.msk [vmem:[#allocation3 + $0xa0] sm:$0xff] %vm1423, %v2656
        %2686 = vst.msk [vmem:[#allocation3 + $0xb0] sm:$0xff] %vm1423, %v2658
        %2687 = vst.msk [vmem:[#allocation3 + $0xc0] sm:$0xff] %vm1423, %v2660
        %2688 = vst.msk [vmem:[#allocation3 + $0xd0] sm:$0x3f] %vm1435, %v2662
        %2689 = vrot.lane.b32.xlu0 %v2612, 96
        %v2690 = vpop.permute.xlu0 %2689
        %2691 = vrot.lane.b32.xlu0 %v2614, 96
        %v2692 = vpop.permute.xlu0 %2691
        %2693 = vrot.lane.b32.xlu0 %v2616, 96
        %v2694 = vpop.permute.xlu0 %2693
        %2695 = vrot.lane.b32.xlu0 %v2618, 96
        %v2696 = vpop.permute.xlu0 %2695
        %2697 = vrot.lane.b32.xlu0 %v2620, 96
        %v2698 = vpop.permute.xlu0 %2697
        %2699 = vrot.lane.b32.xlu0 %v2622, 96
        %v2700 = vpop.permute.xlu0 %2699
        %2701 = vrot.lane.b32.xlu0 %v2624, 96
        %v2702 = vpop.permute.xlu0 %2701
        %2703 = vrot.lane.b32.xlu0 %v2626, 96
        %v2704 = vpop.permute.xlu0 %2703
        %2705 = vrot.lane.b32.xlu0 %v2628, 96
        %v2706 = vpop.permute.xlu0 %2705
        %2707 = vrot.lane.b32.xlu0 %v2630, 96
        %v2708 = vpop.permute.xlu0 %2707
        %2709 = vrot.lane.b32.xlu0 %v2632, 96
        %v2710 = vpop.permute.xlu0 %2709
        %2711 = vrot.lane.b32.xlu0 %v2634, 96
        %v2712 = vpop.permute.xlu0 %2711
        %2713 = vrot.lane.b32.xlu0 %v2636, 96
        %v2714 = vpop.permute.xlu0 %2713
        %2728 = vst.msk [vmem:[#allocation3] sm:$0xfc] %vm1476, %v2690
        %2729 = vst.msk [vmem:[#allocation3 + $0x10] sm:$0xff] %vm1478, %v2692
        %2730 = vst.msk [vmem:[#allocation3 + $0x20] sm:$0xff] %vm1478, %v2694
        %2731 = vst.msk [vmem:[#allocation3 + $0x30] sm:$0xff] %vm1478, %v2696
        %2732 = vst.msk [vmem:[#allocation3 + $0x40] sm:$0xff] %vm1478, %v2698
        %2733 = vst.msk [vmem:[#allocation3 + $0x50] sm:$0xff] %vm1478, %v2700
        %2734 = vst.msk [vmem:[#allocation3 + $0x60] sm:$0xff] %vm1478, %v2702
        %2735 = vst.msk [vmem:[#allocation3 + $0x70] sm:$0xff] %vm1478, %v2704
        %2736 = vst.msk [vmem:[#allocation3 + $0x80] sm:$0xff] %vm1478, %v2706
        %2737 = vst.msk [vmem:[#allocation3 + $0x90] sm:$0xff] %vm1478, %v2708
        %2738 = vst.msk [vmem:[#allocation3 + $0xa0] sm:$0xff] %vm1478, %v2710
        %2739 = vst.msk [vmem:[#allocation3 + $0xb0] sm:$0xff] %vm1478, %v2712
        %2740 = vst.msk [vmem:[#allocation3 + $0xc0] sm:$0x3f] %vm1490, %v2714
        %v2741 = vrot.slane %v2232, 7
        %v2742 = vrot.slane %v2233, 7
        %v2743 = vsel %vm1492, %v2741, %v2742
        %v2744 = vrot.slane %v2234, 7
        %v2745 = vsel %vm1492, %v2742, %v2744
        %v2746 = vrot.slane %v2235, 7
        %v2747 = vsel %vm1492, %v2744, %v2746
        %v2748 = vrot.slane %v2236, 7
        %v2749 = vsel %vm1492, %v2746, %v2748
        %v2750 = vrot.slane %v2237, 7
        %v2751 = vsel %vm1492, %v2748, %v2750
        %v2752 = vrot.slane %v2238, 7
        %v2753 = vsel %vm1492, %v2750, %v2752
        %v2754 = vrot.slane %v2239, 7
        %v2755 = vsel %vm1492, %v2752, %v2754
        %v2756 = vrot.slane %v2240, 7
        %v2757 = vsel %vm1492, %v2754, %v2756
        %v2758 = vrot.slane %v2241, 7
        %v2759 = vsel %vm1492, %v2756, %v2758
        %v2760 = vrot.slane %v2242, 7
        %v2761 = vsel %vm1492, %v2758, %v2760
        %v2762 = vrot.slane %v2243, 7
        %v2763 = vsel %vm1492, %v2760, %v2762
        %v2764 = vrot.slane %v2244, 7
        %v2765 = vsel %vm1492, %v2762, %v2764
        %2766 = vrot.lane.b32.xlu0 %v2741, 112
        %v2767 = vpop.permute.xlu0 %2766
        %2768 = vrot.lane.b32.xlu0 %v2743, 112
        %v2769 = vpop.permute.xlu0 %2768
        %2770 = vrot.lane.b32.xlu0 %v2745, 112
        %v2771 = vpop.permute.xlu0 %2770
        %2772 = vrot.lane.b32.xlu0 %v2747, 112
        %v2773 = vpop.permute.xlu0 %2772
        %2774 = vrot.lane.b32.xlu0 %v2749, 112
        %v2775 = vpop.permute.xlu0 %2774
        %2776 = vrot.lane.b32.xlu0 %v2751, 112
        %v2777 = vpop.permute.xlu0 %2776
        %2778 = vrot.lane.b32.xlu0 %v2753, 112
        %v2779 = vpop.permute.xlu0 %2778
        %2780 = vrot.lane.b32.xlu0 %v2755, 112
        %v2781 = vpop.permute.xlu0 %2780
        %2782 = vrot.lane.b32.xlu0 %v2757, 112
        %v2783 = vpop.permute.xlu0 %2782
        %2784 = vrot.lane.b32.xlu0 %v2759, 112
        %v2785 = vpop.permute.xlu0 %2784
        %2786 = vrot.lane.b32.xlu0 %v2761, 112
        %v2787 = vpop.permute.xlu0 %2786
        %2788 = vrot.lane.b32.xlu0 %v2763, 112
        %v2789 = vpop.permute.xlu0 %2788
        %2790 = vrot.lane.b32.xlu0 %v2765, 112
        %v2791 = vpop.permute.xlu0 %2790
        %2805 = vst.msk [vmem:[#allocation3] sm:$0xfe] %vm1557, %v2767
        %2806 = vst.msk [vmem:[#allocation3 + $0x10] sm:$0xff] %vm1559, %v2769
        %2807 = vst.msk [vmem:[#allocation3 + $0x20] sm:$0xff] %vm1559, %v2771
        %2808 = vst.msk [vmem:[#allocation3 + $0x30] sm:$0xff] %vm1559, %v2773
        %2809 = vst.msk [vmem:[#allocation3 + $0x40] sm:$0xff] %vm1559, %v2775
        %2810 = vst.msk [vmem:[#allocation3 + $0x50] sm:$0xff] %vm1559, %v2777
        %2811 = vst.msk [vmem:[#allocation3 + $0x60] sm:$0xff] %vm1559, %v2779
        %2812 = vst.msk [vmem:[#allocation3 + $0x70] sm:$0xff] %vm1559, %v2781
        %2813 = vst.msk [vmem:[#allocation3 + $0x80] sm:$0xff] %vm1559, %v2783
        %2814 = vst.msk [vmem:[#allocation3 + $0x90] sm:$0xff] %vm1559, %v2785
        %2815 = vst.msk [vmem:[#allocation3 + $0xa0] sm:$0xff] %vm1559, %v2787
        %2816 = vst.msk [vmem:[#allocation3 + $0xb0] sm:$0xff] %vm1559, %v2789
        %2817 = vst.msk [vmem:[#allocation3 + $0xc0] sm:$0x1f] %vm1571, %v2791
        %2818 = vst.msk [vmem:[#allocation3 + $0x8] sm:$0xff] %vm614, %v2232
        %2819 = vst.msk [vmem:[#allocation3 + $0x18] sm:$0xff] %vm614, %v2233
        %2820 = vst.msk [vmem:[#allocation3 + $0x28] sm:$0xff] %vm614, %v2234
        %2821 = vst.msk [vmem:[#allocation3 + $0x38] sm:$0xff] %vm614, %v2235
        %2822 = vst.msk [vmem:[#allocation3 + $0x48] sm:$0xff] %vm614, %v2236
        %2823 = vst.msk [vmem:[#allocation3 + $0x58] sm:$0xff] %vm614, %v2237
        %2824 = vst.msk [vmem:[#allocation3 + $0x68] sm:$0xff] %vm614, %v2238
        %2825 = vst.msk [vmem:[#allocation3 + $0x78] sm:$0xff] %vm614, %v2239
        %2826 = vst.msk [vmem:[#allocation3 + $0x88] sm:$0xff] %vm614, %v2240
        %2827 = vst.msk [vmem:[#allocation3 + $0x98] sm:$0xff] %vm614, %v2241
        %2828 = vst.msk [vmem:[#allocation3 + $0xa8] sm:$0xff] %vm614, %v2242
        %2829 = vst.msk [vmem:[#allocation3 + $0xb8] sm:$0xff] %vm614, %v2243
        %2830 = vst.msk [vmem:[#allocation3 + $0xc8] sm:$0xf] %vm638, %v2244
        %v2831 = vld [vmem:[#allocation3 + $0x10] sm:$0xf8]
        %v2832 = vld [vmem:[#allocation3 + $0x18] sm:$0xf8]
        %v2833 = vld [vmem:[#allocation3 + $0x20] sm:$0xff]
        %v2834 = vld [vmem:[#allocation3 + $0x28] sm:$0xff]
        %v2835 = vld [vmem:[#allocation3 + $0x30] sm:$0xff]
        %v2836 = vld [vmem:[#allocation3 + $0x38] sm:$0xff]
        %v2837 = vld [vmem:[#allocation3 + $0x40] sm:$0xff]
        %v2838 = vld [vmem:[#allocation3 + $0x48] sm:$0xff]
        %v2839 = vld [vmem:[#allocation3 + $0x50] sm:$0xff]
        %v2840 = vld [vmem:[#allocation3 + $0x58] sm:$0xff]
        %v2841 = vld [vmem:[#allocation3 + $0x60] sm:$0xff]
        %v2842 = vld [vmem:[#allocation3 + $0x68] sm:$0xff]
        %v2843 = vld [vmem:[#allocation3 + $0x70] sm:$0xff]
        %v2844 = vld [vmem:[#allocation3 + $0x78] sm:$0xff]
        %v2845 = vld [vmem:[#allocation3 + $0x80] sm:$0xff]
        %v2846 = vld [vmem:[#allocation3 + $0x88] sm:$0xff]
        %v2847 = vld [vmem:[#allocation3 + $0x90] sm:$0xff]
        %v2848 = vld [vmem:[#allocation3 + $0x98] sm:$0xff]
        %v2849 = vld [vmem:[#allocation3 + $0xa0] sm:$0xff]
        %v2850 = vld [vmem:[#allocation3 + $0xa8] sm:$0xff]
        %v2851 = vld [vmem:[#allocation3 + $0xb0] sm:$0xff]
        %v2852 = vld [vmem:[#allocation3 + $0xb8] sm:$0xff]
        %v2853 = vld [vmem:[#allocation3 + $0xc0] sm:$0xff]
        %v2854 = vld [vmem:[#allocation3 + $0xc8] sm:$0xff]
        %v2855 = vld [vmem:[#allocation3 + $0xd0] sm:$0x7f]
        %v2856 = vld [vmem:[#allocation3 + $0xd8] sm:$0x7f]
        %v2857 = vpack.c.bf16 %v2833, %v2831
        %v2858 = vpack.c.bf16 %v2834, %v2832
        %v2859 = vpack.c.bf16 %v2837, %v2835
        %v2860 = vpack.c.bf16 %v2838, %v2836
        %v2861 = vpack.c.bf16 %v2841, %v2839
        %v2862 = vpack.c.bf16 %v2842, %v2840
        %v2863 = vpack.c.bf16 %v2845, %v2843
        %v2864 = vpack.c.bf16 %v2846, %v2844
        %v2865 = vpack.c.bf16 %v2849, %v2847
        %v2866 = vpack.c.bf16 %v2850, %v2848
        %v2867 = vpack.c.bf16 %v2853, %v2851
        %v2868 = vpack.c.bf16 %v2854, %v2852
        %v2869 = vpack.c.bf16 %v2855, %v2855
        %v2870 = vpack.c.bf16 %v2856, %v2856
        %v2871 = vld [vmem:[%s4] sm:$0xf]
        %v2872 = vld [vmem:[%s4 + $0x4] sm:$0xf]
        %v2873 = vld [vmem:[%s4 + $0x8] sm:$0xf]
        %v2874 = vld [vmem:[%s4 + $0xc] sm:$0xf]
        %v2875 = vld [vmem:[%s4 + $0x10] sm:$0xf]
        %v2876 = vld [vmem:[%s4 + $0x14] sm:$0xf]
        %v2877 = vld [vmem:[%s4 + $0x18] sm:$0xf]
        %v2878 = vld [vmem:[%s4 + $0x1c] sm:$0xf]
        %v2879 = vld [vmem:[%s4 + $0x20] sm:$0xf]
        %v2880 = vld [vmem:[%s4 + $0x24] sm:$0xf]
        %v2881 = vld [vmem:[%s4 + $0x28] sm:$0xf]
        %v2882 = vld [vmem:[%s4 + $0x2c] sm:$0xf]
        %v2883 = vld [vmem:[%s4 + $0x30] sm:$0xf]
        %v2884 = vld [vmem:[%s4 + $0x34] sm:$0xf]
        %v2885 = vld [vmem:[%s4 + $0x38] sm:$0xf]
        %v2886 = vld [vmem:[%s4 + $0x3c] sm:$0xf]
        %v2887 = vld [vmem:[%s4 + $0x40] sm:$0xf]
        %v2888 = vld [vmem:[%s4 + $0x44] sm:$0xf]
        %v2890 = vshrl.u32 %v2857, 16
        %v2892 = vrot.slane %v2890, 1
        %v2893 = vshll.u32 %v2857, 16
        %v2895 = vrot.slane %v2893, 2
        %v2896 = vor.u32 %v2892, %v2895
        %v2898 = vshrl.u32 %v2859, 16
        %v2900 = vrot.slane %v2898, 1
        %v2901 = vshll.u32 %v2859, 16
        %v2903 = vrot.slane %v2901, 2
        %v2904 = vor.u32 %v2900, %v2903
        %v2905 = vsel %vm1644, %v2896, %v2904
        %v2907 = vshrl.u32 %v2858, 16
        %v2909 = vrot.slane %v2907, 1
        %v2910 = vshll.u32 %v2858, 16
        %v2912 = vrot.slane %v2910, 2
        %v2913 = vor.u32 %v2909, %v2912
        %v2915 = vshrl.u32 %v2860, 16
        %v2917 = vrot.slane %v2915, 1
        %v2918 = vshll.u32 %v2860, 16
        %v2920 = vrot.slane %v2918, 2
        %v2921 = vor.u32 %v2917, %v2920
        %v2922 = vsel %vm1644, %v2913, %v2921
        %v2924 = vshrl.u32 %v2861, 16
        %v2926 = vrot.slane %v2924, 1
        %v2927 = vshll.u32 %v2861, 16
        %v2929 = vrot.slane %v2927, 2
        %v2930 = vor.u32 %v2926, %v2929
        %v2931 = vsel %vm1644, %v2904, %v2930
        %v2933 = vshrl.u32 %v2862, 16
        %v2935 = vrot.slane %v2933, 1
        %v2936 = vshll.u32 %v2862, 16
        %v2938 = vrot.slane %v2936, 2
        %v2939 = vor.u32 %v2935, %v2938
        %v2940 = vsel %vm1644, %v2921, %v2939
        %v2942 = vshrl.u32 %v2863, 16
        %v2944 = vrot.slane %v2942, 1
        %v2945 = vshll.u32 %v2863, 16
        %v2947 = vrot.slane %v2945, 2
        %v2948 = vor.u32 %v2944, %v2947
        %v2949 = vsel %vm1644, %v2930, %v2948
        %v2951 = vshrl.u32 %v2864, 16
        %v2953 = vrot.slane %v2951, 1
        %v2954 = vshll.u32 %v2864, 16
        %v2956 = vrot.slane %v2954, 2
        %v2957 = vor.u32 %v2953, %v2956
        %v2958 = vsel %vm1644, %v2939, %v2957
        %v2960 = vshrl.u32 %v2865, 16
        %v2962 = vrot.slane %v2960, 1
        %v2963 = vshll.u32 %v2865, 16
        %v2965 = vrot.slane %v2963, 2
        %v2966 = vor.u32 %v2962, %v2965
        %v2967 = vsel %vm1644, %v2948, %v2966
        %v2969 = vshrl.u32 %v2866, 16
        %v2971 = vrot.slane %v2969, 1
        %v2972 = vshll.u32 %v2866, 16
        %v2974 = vrot.slane %v2972, 2
        %v2975 = vor.u32 %v2971, %v2974
        %v2976 = vsel %vm1644, %v2957, %v2975
        %v2978 = vshrl.u32 %v2867, 16
        %v2980 = vrot.slane %v2978, 1
        %v2981 = vshll.u32 %v2867, 16
        %v2983 = vrot.slane %v2981, 2
        %v2984 = vor.u32 %v2980, %v2983
        %v2985 = vsel %vm1644, %v2966, %v2984
        %v2987 = vshrl.u32 %v2868, 16
        %v2989 = vrot.slane %v2987, 1
        %v2990 = vshll.u32 %v2868, 16
        %v2992 = vrot.slane %v2990, 2
        %v2993 = vor.u32 %v2989, %v2992
        %v2994 = vsel %vm1644, %v2975, %v2993
        %v2996 = vshrl.u32 %v2869, 16
        %v2998 = vrot.slane %v2996, 1
        %v2999 = vshll.u32 %v2869, 16
        %v3001 = vrot.slane %v2999, 2
        %v3002 = vor.u32 %v2998, %v3001
        %v3003 = vsel %vm1644, %v2984, %v3002
        %v3005 = vshrl.u32 %v2870, 16
        %v3007 = vrot.slane %v3005, 1
        %v3008 = vshll.u32 %v2870, 16
        %v3010 = vrot.slane %v3008, 2
        %v3011 = vor.u32 %v3007, %v3010
        %v3012 = vsel %vm1644, %v2993, %v3011
        %v3038 = vunpack.c.l.b16 %v2871
        %v3039 = vunpack.c.l.b16 %v2872
        %v3040 = vunpack.c.l.b16 %v2873
        %v3041 = vunpack.c.l.b16 %v2874
        %v3042 = vunpack.c.l.b16 %v2875
        %v3043 = vunpack.c.l.b16 %v2876
        %v3044 = vunpack.c.l.b16 %v2877
        %v3045 = vunpack.c.l.b16 %v2878
        %v3046 = vunpack.c.l.b16 %v2879
        %v3047 = vunpack.c.l.b16 %v2880
        %v3048 = vunpack.c.l.b16 %v2881
        %v3049 = vunpack.c.l.b16 %v2882
        %v3050 = vunpack.c.l.b16 %v2883
        %v3051 = vunpack.c.l.b16 %v2884
        %v3052 = vunpack.c.l.b16 %v2885
        %v3053 = vunpack.c.l.b16 %v2886
        %v3054 = vunpack.c.l.b16 %v2887
        %v3055 = vunpack.c.l.b16 %v2888
        %v3056 = vpack.c.b16 %v3039, %v3038
        %v3057 = vpack.c.b16 %v3041, %v3040
        %v3058 = vpack.c.b16 %v3043, %v3042
        %v3059 = vpack.c.b16 %v3045, %v3044
        %v3060 = vpack.c.b16 %v3047, %v3046
        %v3061 = vpack.c.b16 %v3049, %v3048
        %v3062 = vpack.c.b16 %v3051, %v3050
        %v3063 = vpack.c.b16 %v3053, %v3052
        %v3064 = vpack.c.b16 %v3055, %v3054
        %v3075 = vsel %vm614, %v2922, 0
        %v3078 = vsel %vm614, %v2940, 0
        %v3081 = vsel %vm614, %v2958, 0
        %v3084 = vsel %vm614, %v2976, 0
        %v3087 = vsel %vm614, %v2994, 0
        %v3090 = vsel %vm614, %v3012, 0
        %v3093 = vsel %vm614, %v3011, 0
        %3095 = vmatprep.subr.bf16.mxu0 0
        %3096 = vmatpush1.bf16.msra.mxu0 %v3063
        %3097 = vmatprep.subr.bf16.mxu0 0
        %3098 = vmatpush1.bf16.msra.mxu0 %v3062
        %3099 = vmatprep.subr.bf16.mxu0 0
        %3100 = vmatpush1.bf16.msra.mxu0 %v3061
        %3101 = vmatprep.subr.bf16.mxu0 0
        %3102 = vmatpush1.bf16.msra.mxu0 %v3060
        %3103 = vmatprep.subr.bf16.mxu0 0
        %3104 = vmatpush1.bf16.msra.mxu0 %v3059
        %3105 = vmatprep.subr.bf16.mxu0 0
        %3106 = vmatpush1.bf16.msra.mxu0 %v3058
        %3107 = vmatprep.subr.bf16.mxu0 0
        %3108 = vmatpush1.bf16.msra.mxu0 %v3057
        %3109 = vmatprep.subr.bf16.mxu0 0
        %3110 = vmatpush1.bf16.msra.mxu0 %v3056
        %3111 = vmatprep.subr.bf16.mxu0 0
        %3112 = vmatpush2.bf16.msra.mxu0 0
        %3113 = vmatprep.subr.bf16.mxu0 0
        %3114 = vmatpush2.bf16.msra.mxu0 0
        %3115 = vmatprep.subr.bf16.mxu0 0
        %3116 = vmatpush2.bf16.msra.mxu0 0
        %3117 = vmatprep.subr.bf16.mxu0 0
        %3118 = vmatpush2.bf16.msra.mxu0 0
        %3119 = vmatprep.subr.bf16.mxu0 0
        %3120 = vmatpush2.bf16.msra.mxu0 0
        %3121 = vmatprep.subr.bf16.mxu0 0
        %3122 = vmatpush2.bf16.msra.mxu0 0
        %3123 = vmatprep.subr.bf16.mxu0 0
        %3124 = vmatpush2.bf16.msra.mxu0 0
        %3125 = vmatprep.subr.bf16.mxu0 0
        %3126 = vmatpush2.bf16.msra.mxu0 %v3064
        %3127 = vmatprep.mubr.bf16.mxu0 %v3075
        %3128 = vmatmul.mubr.bf16.gmra.mxu0 %v2905
        %v3129 = vpop.f32.mrf.mxu0
        %v3130 = vadd.f32 0.0, %v3129
        %v3131 = vpop.f32.mrf.mxu0
        %v3132 = vpop.f32.mrf.mxu0
        %v3133 = vadd.f32 0.0, %v3132
        %v3134 = vpop.f32.mrf.mxu0
        %3135 = vmatprep.mubr.bf16.mxu0 %v3078
        %3136 = vmatmul.mubr.bf16.gmra.mxu0 %v2931
        %v3137 = vpop.f32.mrf.mxu0
        %v3138 = vadd.f32 0.0, %v3137
        %v3139 = vpop.f32.mrf.mxu0
        %v3140 = vpop.f32.mrf.mxu0
        %v3141 = vadd.f32 0.0, %v3140
        %v3142 = vpop.f32.mrf.mxu0
        %3143 = vmatprep.mubr.bf16.mxu0 %v3081
        %3144 = vmatmul.mubr.bf16.gmra.mxu0 %v2949
        %v3145 = vpop.f32.mrf.mxu0
        %v3146 = vadd.f32 0.0, %v3145
        %v3147 = vpop.f32.mrf.mxu0
        %v3148 = vpop.f32.mrf.mxu0
        %v3149 = vadd.f32 0.0, %v3148
        %v3150 = vpop.f32.mrf.mxu0
        %3151 = vmatprep.mubr.bf16.mxu0 %v3084
        %3152 = vmatmul.mubr.bf16.gmra.mxu0 %v2967
        %v3153 = vpop.f32.mrf.mxu0
        %v3154 = vadd.f32 0.0, %v3153
        %v3155 = vpop.f32.mrf.mxu0
        %v3156 = vpop.f32.mrf.mxu0
        %v3157 = vadd.f32 0.0, %v3156
        %v3158 = vpop.f32.mrf.mxu0
        %3159 = vmatprep.mubr.bf16.mxu0 %v3087
        %3160 = vmatmul.mubr.bf16.gmra.mxu0 %v2985
        %v3161 = vpop.f32.mrf.mxu0
        %v3162 = vadd.f32 0.0, %v3161
        %v3163 = vpop.f32.mrf.mxu0
        %v3164 = vpop.f32.mrf.mxu0
        %v3165 = vadd.f32 0.0, %v3164
        %v3166 = vpop.f32.mrf.mxu0
        %3167 = vmatprep.mubr.bf16.mxu0 %v3090
        %3168 = vmatmul.mubr.bf16.gmra.mxu0 %v3003
        %v3169 = vpop.f32.mrf.mxu0
        %v3170 = vadd.f32 0.0, %v3169
        %v3171 = vpop.f32.mrf.mxu0
        %v3172 = vpop.f32.mrf.mxu0
        %v3173 = vadd.f32 0.0, %v3172
        %v3174 = vpop.f32.mrf.mxu0
        %3175 = vmatprep.mubr.bf16.mxu0 %v3093
        %3176 = vmatmul.mubr.bf16.gmra.mxu0 %v3002
        %v3177 = vpop.f32.mrf.mxu0
        %v3178 = vadd.f32 0.0, %v3177
        %v3179 = vpop.f32.mrf.mxu0
        %v3180 = vpop.f32.mrf.mxu0
        %v3181 = vpop.f32.mrf.mxu0
        %3182 = vdwg.mxu0
        %v3183 = vmul.f32 %v3130, %v897
        %v3184 = vmul.f32 %v3133, %v902
        %v3185 = vmul.f32 %v3138, %v907
        %v3186 = vmul.f32 %v3141, %v912
        %v3187 = vmul.f32 %v3146, %v917
        %v3188 = vmul.f32 %v3149, %v922
        %v3189 = vmul.f32 %v3154, %v927
        %v3190 = vmul.f32 %v3157, %v932
        %v3191 = vmul.f32 %v3162, %v937
        %v3192 = vmul.f32 %v3165, %v942
        %v3193 = vmul.f32 %v3170, %v947
        %v3194 = vmul.f32 %v3173, %v952
        %v3195 = vmul.f32 %v3178, %v957
        %v3196 = vld [vmem:[%s1 + $0x4] sm:$0x1]
        %v3197 = vld [vmem:[%s1 + $0x5] sm:$0x1]
        %v3198 = vsel %vm614, %v3183, 0.0
        %v3199 = vsel %vm614, %v3184, 0.0
        %v3200 = vadd.f32 %v3198, %v3199
        %v3201 = vsel %vm614, %v3185, 0.0
        %v3202 = vadd.f32 %v3200, %v3201
        %v3203 = vsel %vm614, %v3186, 0.0
        %v3204 = vadd.f32 %v3202, %v3203
        %v3205 = vsel %vm614, %v3187, 0.0
        %v3206 = vadd.f32 %v3204, %v3205
        %v3207 = vsel %vm614, %v3188, 0.0
        %v3208 = vadd.f32 %v3206, %v3207
        %v3209 = vsel %vm614, %v3189, 0.0
        %v3210 = vadd.f32 %v3208, %v3209
        %v3211 = vsel %vm614, %v3190, 0.0
        %v3212 = vadd.f32 %v3210, %v3211
        %v3213 = vsel %vm614, %v3191, 0.0
        %v3214 = vadd.f32 %v3212, %v3213
        %v3215 = vsel %vm614, %v3192, 0.0
        %v3216 = vadd.f32 %v3214, %v3215
        %v3217 = vsel %vm614, %v3193, 0.0
        %v3218 = vadd.f32 %v3216, %v3217
        %v3219 = vsel %vm614, %v3194, 0.0
        %v3220 = vadd.f32 %v3218, %v3219
        %v3221 = vsel %vm638, %v3195, 0.0
        %v3222 = vadd.f32 %v3220, %v3221
        %v3223 = vrot.slane %v3222, 4
        %v3224 = vadd.f32 %v3222, %v3223
        %v3225 = vrot.slane %v3224, 2
        %v3226 = vadd.f32 %v3224, %v3225
        %v3227 = vrot.slane %v3226, 1
        %v3228 = vadd.f32 %v3226, %v3227
        %v3229 = vmul.f32 %v3183, %v3183
        %v3230 = vmul.f32 %v3184, %v3184
        %v3231 = vmul.f32 %v3185, %v3185
        %v3232 = vmul.f32 %v3186, %v3186
        %v3233 = vmul.f32 %v3187, %v3187
        %v3234 = vmul.f32 %v3188, %v3188
        %v3235 = vmul.f32 %v3189, %v3189
        %v3236 = vmul.f32 %v3190, %v3190
        %v3237 = vmul.f32 %v3191, %v3191
        %v3238 = vmul.f32 %v3192, %v3192
        %v3239 = vmul.f32 %v3193, %v3193
        %v3240 = vmul.f32 %v3194, %v3194
        %v3241 = vmul.f32 %v3195, %v3195
        %v3242 = vsel %vm614, %v3229, 0.0
        %v3243 = vsel %vm614, %v3230, 0.0
        %v3244 = vadd.f32 %v3242, %v3243
        %v3245 = vsel %vm614, %v3231, 0.0
        %v3246 = vadd.f32 %v3244, %v3245
        %v3247 = vsel %vm614, %v3232, 0.0
        %v3248 = vadd.f32 %v3246, %v3247
        %v3249 = vsel %vm614, %v3233, 0.0
        %v3250 = vadd.f32 %v3248, %v3249
        %v3251 = vsel %vm614, %v3234, 0.0
        %v3252 = vadd.f32 %v3250, %v3251
        %v3253 = vsel %vm614, %v3235, 0.0
        %v3254 = vadd.f32 %v3252, %v3253
        %v3255 = vsel %vm614, %v3236, 0.0
        %v3256 = vadd.f32 %v3254, %v3255
        %v3257 = vsel %vm614, %v3237, 0.0
        %v3258 = vadd.f32 %v3256, %v3257
        %v3259 = vsel %vm614, %v3238, 0.0
        %v3260 = vadd.f32 %v3258, %v3259
        %v3261 = vsel %vm614, %v3239, 0.0
        %v3262 = vadd.f32 %v3260, %v3261
        %v3263 = vsel %vm614, %v3240, 0.0
        %v3264 = vadd.f32 %v3262, %v3263
        %v3265 = vsel %vm638, %v3241, 0.0
        %v3266 = vadd.f32 %v3264, %v3265
        %v3267 = vrot.slane %v3266, 4
        %v3268 = vadd.f32 %v3266, %v3267
        %v3269 = vrot.slane %v3268, 2
        %v3270 = vadd.f32 %v3268, %v3269
        %v3271 = vrot.slane %v3270, 1
        %v3272 = vadd.f32 %v3270, %v3271
        %v3273 = vld [vmem:[%s7] sm:$0xff]
        %v3274 = vld [vmem:[%s7 + $0x8] sm:$0xff]
        %v3276 = vsel %vm614, %v3228, 0
        %3278 = vmatprep.subr.mxu0 0.0
        %3279 = vmatpush1.msra.mxu0 0.0
        %3280 = vmatprep.subr.mxu0 0.0
        %3281 = vmatpush1.msra.mxu0 0.0
        %3282 = vmatprep.subr.mxu0 0.0
        %3283 = vmatpush1.msra.mxu0 0.0
        %3284 = vmatprep.subr.mxu0 0.0
        %3285 = vmatpush1.msra.mxu0 0.0
        %3286 = vmatprep.subr.mxu0 0.0
        %3287 = vmatpush1.msra.mxu0 0.0
        %3288 = vmatprep.subr.mxu0 0.0
        %3289 = vmatpush1.msra.mxu0 0.0
        %3290 = vmatprep.subr.mxu0 0.0
        %3291 = vmatpush1.msra.mxu0 0.0
        %3292 = vmatprep.subr.mxu0 0.0
        %3293 = vmatpush1.msra.mxu0 0.0
        %3294 = vmatprep.subr.mxu0 0.0
        %3295 = vmatpush1.msra.mxu0 0.0
        %3296 = vmatprep.subr.mxu0 0.0
        %3297 = vmatpush1.msra.mxu0 0.0
        %3298 = vmatprep.subr.mxu0 0.0
        %3299 = vmatpush1.msra.mxu0 0.0
        %3300 = vmatprep.subr.mxu0 0.0
        %3301 = vmatpush1.msra.mxu0 0.0
        %3302 = vmatprep.subr.mxu0 0.0
        %3303 = vmatpush1.msra.mxu0 0.0
        %3304 = vmatprep.subr.mxu0 0.0
        %3305 = vmatpush1.msra.mxu0 0.0
        %3306 = vmatprep.subr.mxu0 0.0
        %3307 = vmatpush1.msra.mxu0 %v3274
        %3308 = vmatprep.subr.mxu0 0.0
        %3309 = vmatpush1.msra.mxu0 %v3273
        %3310 = vmatprep.subr.mxu0 0.0
        %3311 = vmatpush2.msra.mxu0 0.0
        %3312 = vmatprep.subr.mxu0 0.0
        %3313 = vmatpush2.msra.mxu0 0.0
        %3314 = vmatprep.subr.mxu0 0.0
        %3315 = vmatpush2.msra.mxu0 0.0
        %3316 = vmatprep.subr.mxu0 0.0
        %3317 = vmatpush2.msra.mxu0 0.0
        %3318 = vmatprep.subr.mxu0 0.0
        %3319 = vmatpush2.msra.mxu0 0.0
        %3320 = vmatprep.subr.mxu0 0.0
        %3321 = vmatpush2.msra.mxu0 0.0
        %3322 = vmatprep.subr.mxu0 0.0
        %3323 = vmatpush2.msra.mxu0 0.0
        %3324 = vmatprep.subr.mxu0 0.0
        %3325 = vmatpush2.msra.mxu0 0.0
        %3326 = vmatprep.subr.mxu0 0.0
        %3327 = vmatpush2.msra.mxu0 0.0
        %3328 = vmatprep.subr.mxu0 0.0
        %3329 = vmatpush2.msra.mxu0 0.0
        %3330 = vmatprep.subr.mxu0 0.0
        %3331 = vmatpush2.msra.mxu0 0.0
        %3332 = vmatprep.subr.mxu0 0.0
        %3333 = vmatpush2.msra.mxu0 0.0
        %3334 = vmatprep.subr.mxu0 0.0
        %3335 = vmatpush2.msra.mxu0 0.0
        %3336 = vmatprep.subr.mxu0 0.0
        %3337 = vmatpush2.msra.mxu0 0.0
        %3338 = vmatprep.subr.mxu0 0.0
        %3339 = vmatpush2.msra.mxu0 0.0
        %3340 = vmatprep.subr.mxu0 0.0
        %3341 = vmatpush2.msra.mxu0 0.0
        %3342 = vmatprep.mubr.f32.mxu0 0.0
        %3343 = vmatmul.mubr.f32.gmra.mxu0 %v3276
        %v3344 = vpop.f32.mrf.mxu0
        %v3345 = vadd.f32 0.0, %v3344
        %v3346 = vpop.f32.mrf.mxu0
        %3347 = vdwg.mxu0
        %v3349 = vsel %vm614, %v3272, 0
        %3351 = vmatprep.subr.mxu0 0.0
        %3352 = vmatpush1.msra.mxu0 0.0
        %3353 = vmatprep.subr.mxu0 0.0
        %3354 = vmatpush1.msra.mxu0 0.0
        %3355 = vmatprep.subr.mxu0 0.0
        %3356 = vmatpush1.msra.mxu0 0.0
        %3357 = vmatprep.subr.mxu0 0.0
        %3358 = vmatpush1.msra.mxu0 0.0
        %3359 = vmatprep.subr.mxu0 0.0
        %3360 = vmatpush1.msra.mxu0 0.0
        %3361 = vmatprep.subr.mxu0 0.0
        %3362 = vmatpush1.msra.mxu0 0.0
        %3363 = vmatprep.subr.mxu0 0.0
        %3364 = vmatpush1.msra.mxu0 0.0
        %3365 = vmatprep.subr.mxu0 0.0
        %3366 = vmatpush1.msra.mxu0 0.0
        %3367 = vmatprep.subr.mxu0 0.0
        %3368 = vmatpush1.msra.mxu0 0.0
        %3369 = vmatprep.subr.mxu0 0.0
        %3370 = vmatpush1.msra.mxu0 0.0
        %3371 = vmatprep.subr.mxu0 0.0
        %3372 = vmatpush1.msra.mxu0 0.0
        %3373 = vmatprep.subr.mxu0 0.0
        %3374 = vmatpush1.msra.mxu0 0.0
        %3375 = vmatprep.subr.mxu0 0.0
        %3376 = vmatpush1.msra.mxu0 0.0
        %3377 = vmatprep.subr.mxu0 0.0
        %3378 = vmatpush1.msra.mxu0 0.0
        %3379 = vmatprep.subr.mxu0 0.0
        %3380 = vmatpush1.msra.mxu0 %v3274
        %3381 = vmatprep.subr.mxu0 0.0
        %3382 = vmatpush1.msra.mxu0 %v3273
        %3383 = vmatprep.subr.mxu0 0.0
        %3384 = vmatpush2.msra.mxu0 0.0
        %3385 = vmatprep.subr.mxu0 0.0
        %3386 = vmatpush2.msra.mxu0 0.0
        %3387 = vmatprep.subr.mxu0 0.0
        %3388 = vmatpush2.msra.mxu0 0.0
        %3389 = vmatprep.subr.mxu0 0.0
        %3390 = vmatpush2.msra.mxu0 0.0
        %3391 = vmatprep.subr.mxu0 0.0
        %3392 = vmatpush2.msra.mxu0 0.0
        %3393 = vmatprep.subr.mxu0 0.0
        %3394 = vmatpush2.msra.mxu0 0.0
        %3395 = vmatprep.subr.mxu0 0.0
        %3396 = vmatpush2.msra.mxu0 0.0
        %3397 = vmatprep.subr.mxu0 0.0
        %3398 = vmatpush2.msra.mxu0 0.0
        %3399 = vmatprep.subr.mxu0 0.0
        %3400 = vmatpush2.msra.mxu0 0.0
        %3401 = vmatprep.subr.mxu0 0.0
        %3402 = vmatpush2.msra.mxu0 0.0
        %3403 = vmatprep.subr.mxu0 0.0
        %3404 = vmatpush2.msra.mxu0 0.0
        %3405 = vmatprep.subr.mxu0 0.0
        %3406 = vmatpush2.msra.mxu0 0.0
        %3407 = vmatprep.subr.mxu0 0.0
        %3408 = vmatpush2.msra.mxu0 0.0
        %3409 = vmatprep.subr.mxu0 0.0
        %3410 = vmatpush2.msra.mxu0 0.0
        %3411 = vmatprep.subr.mxu0 0.0
        %3412 = vmatpush2.msra.mxu0 0.0
        %3413 = vmatprep.subr.mxu0 0.0
        %3414 = vmatpush2.msra.mxu0 0.0
        %3415 = vmatprep.mubr.f32.mxu0 0.0
        %3416 = vmatmul.mubr.f32.gmra.mxu0 %v3349
        %v3417 = vpop.f32.mrf.mxu0
        %v3418 = vadd.f32 0.0, %v3417
        %v3419 = vpop.f32.mrf.mxu0
        %3420 = vdwg.mxu0
        %v3421 = vmul.f32 %v3345, %v3345
        %v3422 = vsub.f32 %v3418, %v3421
        %v3423 = vmax.f32 %v3422, 0.0
        %v3424 = vadd.f32 %v3423, 1e-05
        %v3425 = vrsqrt.pop %v3424
        %v3426 = vmul.f32 %v3425, %v3196
        %v3427 = vmul.f32 %v3345, %v3426
        %v3428 = vsub.f32 %v3197, %v3427
        %v3429 = vld [vmem:[#allocation2 + $0x10] sm:$0xf8]
        %v3430 = vld [vmem:[#allocation2 + $0x20] sm:$0xff]
        %v3431 = vld [vmem:[#allocation2 + $0x30] sm:$0xff]
        %v3432 = vld [vmem:[#allocation2 + $0x40] sm:$0xff]
        %v3433 = vld [vmem:[#allocation2 + $0x50] sm:$0xff]
        %v3434 = vld [vmem:[#allocation2 + $0x60] sm:$0xff]
        %v3435 = vld [vmem:[#allocation2 + $0x70] sm:$0xff]
        %v3436 = vld [vmem:[#allocation2 + $0x80] sm:$0xff]
        %v3437 = vld [vmem:[#allocation2 + $0x90] sm:$0xff]
        %v3438 = vld [vmem:[#allocation2 + $0xa0] sm:$0xff]
        %v3439 = vld [vmem:[#allocation2 + $0xb0] sm:$0xff]
        %v3440 = vld [vmem:[#allocation2 + $0xc0] sm:$0xff]
        %v3441 = vld [vmem:[#allocation2 + $0xd0] sm:$0x7f]
        %v3442 = vlaneseq
        %v3443 = vshrl.u32 %v3442, 7
        %v3444 = vsub.s32 0, %v3443
        %v3445 = vrot.slane %v3426, %v3444
        %v3446 = vmul.f32 %v3183, %v3445
        %v3447 = vmul.f32 %v3184, %v3445
        %v3448 = vmul.f32 %v3185, %v3445
        %v3449 = vmul.f32 %v3186, %v3445
        %v3450 = vmul.f32 %v3187, %v3445
        %v3451 = vmul.f32 %v3188, %v3445
        %v3452 = vmul.f32 %v3189, %v3445
        %v3453 = vmul.f32 %v3190, %v3445
        %v3454 = vmul.f32 %v3191, %v3445
        %v3455 = vmul.f32 %v3192, %v3445
        %v3456 = vmul.f32 %v3193, %v3445
        %v3457 = vmul.f32 %v3194, %v3445
        %v3458 = vmul.f32 %v3195, %v3445
        %v3459 = vlaneseq
        %v3460 = vshrl.u32 %v3459, 7
        %v3461 = vsub.s32 0, %v3460
        %v3462 = vrot.slane %v3428, %v3461
        %v3463 = vadd.f32 %v3446, %v3462
        %v3464 = vadd.f32 %v3447, %v3462
        %v3465 = vadd.f32 %v3448, %v3462
        %v3466 = vadd.f32 %v3449, %v3462
        %v3467 = vadd.f32 %v3450, %v3462
        %v3468 = vadd.f32 %v3451, %v3462
        %v3469 = vadd.f32 %v3452, %v3462
        %v3470 = vadd.f32 %v3453, %v3462
        %v3471 = vadd.f32 %v3454, %v3462
        %v3472 = vadd.f32 %v3455, %v3462
        %v3473 = vadd.f32 %v3456, %v3462
        %v3474 = vadd.f32 %v3457, %v3462
        %v3475 = vadd.f32 %v3458, %v3462
        %v3489 = vrot.slane %v3429, 3
        %v3490 = vrot.slane %v3430, 3
        %v3491 = vsel %vm1057, %v3489, %v3490
        %v3492 = vrot.slane %v3431, 3
        %v3493 = vsel %vm1057, %v3490, %v3492
        %v3494 = vrot.slane %v3432, 3
        %v3495 = vsel %vm1057, %v3492, %v3494
        %v3496 = vrot.slane %v3433, 3
        %v3497 = vsel %vm1057, %v3494, %v3496
        %v3498 = vrot.slane %v3434, 3
        %v3499 = vsel %vm1057, %v3496, %v3498
        %v3500 = vrot.slane %v3435, 3
        %v3501 = vsel %vm1057, %v3498, %v3500
        %v3502 = vrot.slane %v3436, 3
        %v3503 = vsel %vm1057, %v3500, %v3502
        %v3504 = vrot.slane %v3437, 3
        %v3505 = vsel %vm1057, %v3502, %v3504
        %v3506 = vrot.slane %v3438, 3
        %v3507 = vsel %vm1057, %v3504, %v3506
        %v3508 = vrot.slane %v3439, 3
        %v3509 = vsel %vm1057, %v3506, %v3508
        %v3510 = vrot.slane %v3440, 3
        %v3511 = vsel %vm1057, %v3508, %v3510
        %v3512 = vrot.slane %v3441, 3
        %v3513 = vsel %vm1057, %v3510, %v3512
        %3514 = vrot.lane.b32.xlu0 %v3491, 64
        %v3515 = vpop.permute.xlu0 %3514
        %3516 = vrot.lane.b32.xlu0 %v3493, 64
        %v3517 = vpop.permute.xlu0 %3516
        %3518 = vrot.lane.b32.xlu0 %v3495, 64
        %v3519 = vpop.permute.xlu0 %3518
        %3520 = vrot.lane.b32.xlu0 %v3497, 64
        %v3521 = vpop.permute.xlu0 %3520
        %3522 = vrot.lane.b32.xlu0 %v3499, 64
        %v3523 = vpop.permute.xlu0 %3522
        %3524 = vrot.lane.b32.xlu0 %v3501, 64
        %v3525 = vpop.permute.xlu0 %3524
        %3526 = vrot.lane.b32.xlu0 %v3503, 64
        %v3527 = vpop.permute.xlu0 %3526
        %3528 = vrot.lane.b32.xlu0 %v3505, 64
        %v3529 = vpop.permute.xlu0 %3528
        %3530 = vrot.lane.b32.xlu0 %v3507, 64
        %v3531 = vpop.permute.xlu0 %3530
        %3532 = vrot.lane.b32.xlu0 %v3509, 64
        %v3533 = vpop.permute.xlu0 %3532
        %3534 = vrot.lane.b32.xlu0 %v3511, 64
        %v3535 = vpop.permute.xlu0 %3534
        %3536 = vrot.lane.b32.xlu0 %v3513, 64
        %v3537 = vpop.permute.xlu0 %3536
        %3538 = vrot.lane.b32.xlu0 %v3512, 64
        %v3539 = vpop.permute.xlu0 %3538
        %v3553 = vadd.f32 %v3463, %v3515
        %v3554 = vadd.f32 %v3464, %v3517
        %v3555 = vadd.f32 %v3465, %v3519
        %v3556 = vadd.f32 %v3466, %v3521
        %v3557 = vadd.f32 %v3467, %v3523
        %v3558 = vadd.f32 %v3468, %v3525
        %v3559 = vadd.f32 %v3469, %v3527
        %v3560 = vadd.f32 %v3470, %v3529
        %v3561 = vadd.f32 %v3471, %v3531
        %v3562 = vadd.f32 %v3472, %v3533
        %v3563 = vadd.f32 %v3473, %v3535
        %v3564 = vadd.f32 %v3474, %v3537
        %v3565 = vadd.f32 %v3475, %v3539
        %v3566 = vmax.f32 %v3553, 0.0
        %v3567 = vmax.f32 %v3554, 0.0
        %v3568 = vmax.f32 %v3555, 0.0
        %v3569 = vmax.f32 %v3556, 0.0
        %v3570 = vmax.f32 %v3557, 0.0
        %v3571 = vmax.f32 %v3558, 0.0
        %v3572 = vmax.f32 %v3559, 0.0
        %v3573 = vmax.f32 %v3560, 0.0
        %v3574 = vmax.f32 %v3561, 0.0
        %v3575 = vmax.f32 %v3562, 0.0
        %v3576 = vmax.f32 %v3563, 0.0
        %v3577 = vmax.f32 %v3564, 0.0
        %v3578 = vmax.f32 %v3565, 0.0
        %v3579 = vmul.f32 %v3566, %v897
        %v3580 = vmul.f32 %v3567, %v902
        %v3581 = vmul.f32 %v3568, %v907
        %v3582 = vmul.f32 %v3569, %v912
        %v3583 = vmul.f32 %v3570, %v917
        %v3584 = vmul.f32 %v3571, %v922
        %v3585 = vmul.f32 %v3572, %v927
        %v3586 = vmul.f32 %v3573, %v932
        %v3587 = vmul.f32 %v3574, %v937
        %v3588 = vmul.f32 %v3575, %v942
        %v3589 = vmul.f32 %v3576, %v947
        %v3590 = vmul.f32 %v3577, %v952
        %v3591 = vmul.f32 %v3578, %v957
        %3592 = vst [vmem:[#allocation4] sm:$0xff] 0.0
        %3593 = vst.msk [vmem:[#allocation4 + $0x8] sm:$0xff] %vm614, 0.0
        %3594 = vst [vmem:[#allocation4 + $0x10] sm:$0xff] 0.0
        %3595 = vst.msk [vmem:[#allocation4 + $0x18] sm:$0xff] %vm614, 0.0
        %3596 = vst [vmem:[#allocation4 + $0x20] sm:$0x3f] 0.0
        %3597 = vst.msk [vmem:[#allocation4 + $0x28] sm:$0x3f] %vm977, 0.0
        %3598 = vst [vmem:[#allocation4 + $0xc0] sm:$0xf0] 0.0
        %3599 = vst.msk [vmem:[#allocation4 + $0xc8] sm:$0xf0] %vm980, 0.0
        %3600 = vst [vmem:[#allocation4 + $0xd0] sm:$0xff] 0.0
        %3601 = vst.msk [vmem:[#allocation4 + $0xd8] sm:$0xff] %vm614, 0.0
        %3602 = vst [vmem:[#allocation4 + $0xe0] sm:$0xff] 0.0
        %3603 = vst.msk [vmem:[#allocation4 + $0xe8] sm:$0xff] %vm614, 0.0
        %3604 = vst [vmem:[#allocation4 + $0xf0] sm:$0x3] 0.0
        %3605 = vst.msk [vmem:[#allocation4 + $0xf8] sm:$0x3] %vm987, 0.0
        %v3619 = vrot.slane %v3579, 2
        %v3620 = vrot.slane %v3580, 2
        %v3621 = vsel %vm1002, %v3619, %v3620
        %v3622 = vrot.slane %v3581, 2
        %v3623 = vsel %vm1002, %v3620, %v3622
        %v3624 = vrot.slane %v3582, 2
        %v3625 = vsel %vm1002, %v3622, %v3624
        %v3626 = vrot.slane %v3583, 2
        %v3627 = vsel %vm1002, %v3624, %v3626
        %v3628 = vrot.slane %v3584, 2
        %v3629 = vsel %vm1002, %v3626, %v3628
        %v3630 = vrot.slane %v3585, 2
        %v3631 = vsel %vm1002, %v3628, %v3630
        %v3632 = vrot.slane %v3586, 2
        %v3633 = vsel %vm1002, %v3630, %v3632
        %v3634 = vrot.slane %v3587, 2
        %v3635 = vsel %vm1002, %v3632, %v3634
        %v3636 = vrot.slane %v3588, 2
        %v3637 = vsel %vm1002, %v3634, %v3636
        %v3638 = vrot.slane %v3589, 2
        %v3639 = vsel %vm1002, %v3636, %v3638
        %v3640 = vrot.slane %v3590, 2
        %v3641 = vsel %vm1002, %v3638, %v3640
        %v3642 = vrot.slane %v3591, 2
        %v3643 = vsel %vm1002, %v3640, %v3642
        %3658 = vst.msk [vmem:[#allocation4 + $0x20] sm:$0xc0] %vm1042, %v3619
        %3659 = vst.msk [vmem:[#allocation4 + $0x30] sm:$0xff] %vm614, %v3621
        %3660 = vst.msk [vmem:[#allocation4 + $0x40] sm:$0xff] %vm614, %v3623
        %3661 = vst.msk [vmem:[#allocation4 + $0x50] sm:$0xff] %vm614, %v3625
        %3662 = vst.msk [vmem:[#allocation4 + $0x60] sm:$0xff] %vm614, %v3627
        %3663 = vst.msk [vmem:[#allocation4 + $0x70] sm:$0xff] %vm614, %v3629
        %3664 = vst.msk [vmem:[#allocation4 + $0x80] sm:$0xff] %vm614, %v3631
        %3665 = vst.msk [vmem:[#allocation4 + $0x90] sm:$0xff] %vm614, %v3633
        %3666 = vst.msk [vmem:[#allocation4 + $0xa0] sm:$0xff] %vm614, %v3635
        %3667 = vst.msk [vmem:[#allocation4 + $0xb0] sm:$0xff] %vm614, %v3637
        %3668 = vst.msk [vmem:[#allocation4 + $0xc0] sm:$0xff] %vm614, %v3639
        %3669 = vst.msk [vmem:[#allocation4 + $0xd0] sm:$0xff] %vm614, %v3641
        %3670 = vst.msk [vmem:[#allocation4 + $0xe0] sm:$0xff] %vm614, %v3643
        %3671 = vst.msk [vmem:[#allocation4 + $0xf0] sm:$0x3] %vm987, %v3642
        %v3672 = vrot.slane %v3579, 3
        %v3673 = vrot.slane %v3580, 3
        %v3674 = vsel %vm1057, %v3672, %v3673
        %v3675 = vrot.slane %v3581, 3
        %v3676 = vsel %vm1057, %v3673, %v3675
        %v3677 = vrot.slane %v3582, 3
        %v3678 = vsel %vm1057, %v3675, %v3677
        %v3679 = vrot.slane %v3583, 3
        %v3680 = vsel %vm1057, %v3677, %v3679
        %v3681 = vrot.slane %v3584, 3
        %v3682 = vsel %vm1057, %v3679, %v3681
        %v3683 = vrot.slane %v3585, 3
        %v3684 = vsel %vm1057, %v3681, %v3683
        %v3685 = vrot.slane %v3586, 3
        %v3686 = vsel %vm1057, %v3683, %v3685
        %v3687 = vrot.slane %v3587, 3
        %v3688 = vsel %vm1057, %v3685, %v3687
        %v3689 = vrot.slane %v3588, 3
        %v3690 = vsel %vm1057, %v3687, %v3689
        %v3691 = vrot.slane %v3589, 3
        %v3692 = vsel %vm1057, %v3689, %v3691
        %v3693 = vrot.slane %v3590, 3
        %v3694 = vsel %vm1057, %v3691, %v3693
        %v3695 = vrot.slane %v3591, 3
        %v3696 = vsel %vm1057, %v3693, %v3695
        %3697 = vrot.lane.b32.xlu0 %v3672, 16
        %v3698 = vpop.permute.xlu0 %3697
        %3699 = vrot.lane.b32.xlu0 %v3674, 16
        %v3700 = vpop.permute.xlu0 %3699
        %3701 = vrot.lane.b32.xlu0 %v3676, 16
        %v3702 = vpop.permute.xlu0 %3701
        %3703 = vrot.lane.b32.xlu0 %v3678, 16
        %v3704 = vpop.permute.xlu0 %3703
        %3705 = vrot.lane.b32.xlu0 %v3680, 16
        %v3706 = vpop.permute.xlu0 %3705
        %3707 = vrot.lane.b32.xlu0 %v3682, 16
        %v3708 = vpop.permute.xlu0 %3707
        %3709 = vrot.lane.b32.xlu0 %v3684, 16
        %v3710 = vpop.permute.xlu0 %3709
        %3711 = vrot.lane.b32.xlu0 %v3686, 16
        %v3712 = vpop.permute.xlu0 %3711
        %3713 = vrot.lane.b32.xlu0 %v3688, 16
        %v3714 = vpop.permute.xlu0 %3713
        %3715 = vrot.lane.b32.xlu0 %v3690, 16
        %v3716 = vpop.permute.xlu0 %3715
        %3717 = vrot.lane.b32.xlu0 %v3692, 16
        %v3718 = vpop.permute.xlu0 %3717
        %3719 = vrot.lane.b32.xlu0 %v3694, 16
        %v3720 = vpop.permute.xlu0 %3719
        %3721 = vrot.lane.b32.xlu0 %v3696, 16
        %v3722 = vpop.permute.xlu0 %3721
        %3723 = vrot.lane.b32.xlu0 %v3695, 16
        %v3724 = vpop.permute.xlu0 %3723
        %3739 = vst.msk [vmem:[#allocation4 + $0x20] sm:$0xe0] %vm1125, %v3698
        %3740 = vst.msk [vmem:[#allocation4 + $0x30] sm:$0xff] %vm1127, %v3700
        %3741 = vst.msk [vmem:[#allocation4 + $0x40] sm:$0xff] %vm1127, %v3702
        %3742 = vst.msk [vmem:[#allocation4 + $0x50] sm:$0xff] %vm1127, %v3704
        %3743 = vst.msk [vmem:[#allocation4 + $0x60] sm:$0xff] %vm1127, %v3706
        %3744 = vst.msk [vmem:[#allocation4 + $0x70] sm:$0xff] %vm1127, %v3708
        %3745 = vst.msk [vmem:[#allocation4 + $0x80] sm:$0xff] %vm1127, %v3710
        %3746 = vst.msk [vmem:[#allocation4 + $0x90] sm:$0xff] %vm1127, %v3712
        %3747 = vst.msk [vmem:[#allocation4 + $0xa0] sm:$0xff] %vm1127, %v3714
        %3748 = vst.msk [vmem:[#allocation4 + $0xb0] sm:$0xff] %vm1127, %v3716
        %3749 = vst.msk [vmem:[#allocation4 + $0xc0] sm:$0xff] %vm1127, %v3718
        %3750 = vst.msk [vmem:[#allocation4 + $0xd0] sm:$0xff] %vm1127, %v3720
        %3751 = vst.msk [vmem:[#allocation4 + $0xe0] sm:$0xff] %vm1127, %v3722
        %3752 = vst.msk [vmem:[#allocation4 + $0xf0] sm:$0x1] %vm1140, %v3724
        %v3753 = vrot.slane %v3579, 4
        %v3754 = vrot.slane %v3580, 4
        %v3755 = vsel %vm1142, %v3753, %v3754
        %v3756 = vrot.slane %v3581, 4
        %v3757 = vsel %vm1142, %v3754, %v3756
        %v3758 = vrot.slane %v3582, 4
        %v3759 = vsel %vm1142, %v3756, %v3758
        %v3760 = vrot.slane %v3583, 4
        %v3761 = vsel %vm1142, %v3758, %v3760
        %v3762 = vrot.slane %v3584, 4
        %v3763 = vsel %vm1142, %v3760, %v3762
        %v3764 = vrot.slane %v3585, 4
        %v3765 = vsel %vm1142, %v3762, %v3764
        %v3766 = vrot.slane %v3586, 4
        %v3767 = vsel %vm1142, %v3764, %v3766
        %v3768 = vrot.slane %v3587, 4
        %v3769 = vsel %vm1142, %v3766, %v3768
        %v3770 = vrot.slane %v3588, 4
        %v3771 = vsel %vm1142, %v3768, %v3770
        %v3772 = vrot.slane %v3589, 4
        %v3773 = vsel %vm1142, %v3770, %v3772
        %v3774 = vrot.slane %v3590, 4
        %v3775 = vsel %vm1142, %v3772, %v3774
        %v3776 = vrot.slane %v3591, 4
        %v3777 = vsel %vm1142, %v3774, %v3776
        %3778 = vrot.lane.b32.xlu0 %v3753, 32
        %v3779 = vpop.permute.xlu0 %3778
        %3780 = vrot.lane.b32.xlu0 %v3755, 32
        %v3781 = vpop.permute.xlu0 %3780
        %3782 = vrot.lane.b32.xlu0 %v3757, 32
        %v3783 = vpop.permute.xlu0 %3782
        %3784 = vrot.lane.b32.xlu0 %v3759, 32
        %v3785 = vpop.permute.xlu0 %3784
        %3786 = vrot.lane.b32.xlu0 %v3761, 32
        %v3787 = vpop.permute.xlu0 %3786
        %3788 = vrot.lane.b32.xlu0 %v3763, 32
        %v3789 = vpop.permute.xlu0 %3788
        %3790 = vrot.lane.b32.xlu0 %v3765, 32
        %v3791 = vpop.permute.xlu0 %3790
        %3792 = vrot.lane.b32.xlu0 %v3767, 32
        %v3793 = vpop.permute.xlu0 %3792
        %3794 = vrot.lane.b32.xlu0 %v3769, 32
        %v3795 = vpop.permute.xlu0 %3794
        %3796 = vrot.lane.b32.xlu0 %v3771, 32
        %v3797 = vpop.permute.xlu0 %3796
        %3798 = vrot.lane.b32.xlu0 %v3773, 32
        %v3799 = vpop.permute.xlu0 %3798
        %3800 = vrot.lane.b32.xlu0 %v3775, 32
        %v3801 = vpop.permute.xlu0 %3800
        %3802 = vrot.lane.b32.xlu0 %v3777, 32
        %v3803 = vpop.permute.xlu0 %3802
        %3817 = vst.msk [vmem:[#allocation4 + $0x20] sm:$0xf0] %vm1207, %v3779
        %3818 = vst.msk [vmem:[#allocation4 + $0x30] sm:$0xff] %vm1209, %v3781
        %3819 = vst.msk [vmem:[#allocation4 + $0x40] sm:$0xff] %vm1209, %v3783
        %3820 = vst.msk [vmem:[#allocation4 + $0x50] sm:$0xff] %vm1209, %v3785
        %3821 = vst.msk [vmem:[#allocation4 + $0x60] sm:$0xff] %vm1209, %v3787
        %3822 = vst.msk [vmem:[#allocation4 + $0x70] sm:$0xff] %vm1209, %v3789
        %3823 = vst.msk [vmem:[#allocation4 + $0x80] sm:$0xff] %vm1209, %v3791
        %3824 = vst.msk [vmem:[#allocation4 + $0x90] sm:$0xff] %vm1209, %v3793
        %3825 = vst.msk [vmem:[#allocation4 + $0xa0] sm:$0xff] %vm1209, %v3795
        %3826 = vst.msk [vmem:[#allocation4 + $0xb0] sm:$0xff] %vm1209, %v3797
        %3827 = vst.msk [vmem:[#allocation4 + $0xc0] sm:$0xff] %vm1209, %v3799
        %3828 = vst.msk [vmem:[#allocation4 + $0xd0] sm:$0xff] %vm1209, %v3801
        %3829 = vst.msk [vmem:[#allocation4 + $0xe0] sm:$0xff] %vm1209, %v3803
        %3830 = vrot.lane.b32.xlu0 %v3753, 48
        %v3831 = vpop.permute.xlu0 %3830
        %3832 = vrot.lane.b32.xlu0 %v3755, 48
        %v3833 = vpop.permute.xlu0 %3832
        %3834 = vrot.lane.b32.xlu0 %v3757, 48
        %v3835 = vpop.permute.xlu0 %3834
        %3836 = vrot.lane.b32.xlu0 %v3759, 48
        %v3837 = vpop.permute.xlu0 %3836
        %3838 = vrot.lane.b32.xlu0 %v3761, 48
        %v3839 = vpop.permute.xlu0 %3838
        %3840 = vrot.lane.b32.xlu0 %v3763, 48
        %v3841 = vpop.permute.xlu0 %3840
        %3842 = vrot.lane.b32.xlu0 %v3765, 48
        %v3843 = vpop.permute.xlu0 %3842
        %3844 = vrot.lane.b32.xlu0 %v3767, 48
        %v3845 = vpop.permute.xlu0 %3844
        %3846 = vrot.lane.b32.xlu0 %v3769, 48
        %v3847 = vpop.permute.xlu0 %3846
        %3848 = vrot.lane.b32.xlu0 %v3771, 48
        %v3849 = vpop.permute.xlu0 %3848
        %3850 = vrot.lane.b32.xlu0 %v3773, 48
        %v3851 = vpop.permute.xlu0 %3850
        %3852 = vrot.lane.b32.xlu0 %v3775, 48
        %v3853 = vpop.permute.xlu0 %3852
        %3854 = vrot.lane.b32.xlu0 %v3777, 48
        %v3855 = vpop.permute.xlu0 %3854
        %3869 = vst.msk [vmem:[#allocation4 + $0x10] sm:$0xf0] %vm1261, %v3831
        %3870 = vst.msk [vmem:[#allocation4 + $0x20] sm:$0xff] %vm1263, %v3833
        %3871 = vst.msk [vmem:[#allocation4 + $0x30] sm:$0xff] %vm1263, %v3835
        %3872 = vst.msk [vmem:[#allocation4 + $0x40] sm:$0xff] %vm1263, %v3837
        %3873 = vst.msk [vmem:[#allocation4 + $0x50] sm:$0xff] %vm1263, %v3839
        %3874 = vst.msk [vmem:[#allocation4 + $0x60] sm:$0xff] %vm1263, %v3841
        %3875 = vst.msk [vmem:[#allocation4 + $0x70] sm:$0xff] %vm1263, %v3843
        %3876 = vst.msk [vmem:[#allocation4 + $0x80] sm:$0xff] %vm1263, %v3845
        %3877 = vst.msk [vmem:[#allocation4 + $0x90] sm:$0xff] %vm1263, %v3847
        %3878 = vst.msk [vmem:[#allocation4 + $0xa0] sm:$0xff] %vm1263, %v3849
        %3879 = vst.msk [vmem:[#allocation4 + $0xb0] sm:$0xff] %vm1263, %v3851
        %3880 = vst.msk [vmem:[#allocation4 + $0xc0] sm:$0xff] %vm1263, %v3853
        %3881 = vst.msk [vmem:[#allocation4 + $0xd0] sm:$0xff] %vm1263, %v3855
        %v3882 = vrot.slane %v3579, 5
        %v3883 = vrot.slane %v3580, 5
        %v3884 = vsel %vm1276, %v3882, %v3883
        %v3885 = vrot.slane %v3581, 5
        %v3886 = vsel %vm1276, %v3883, %v3885
        %v3887 = vrot.slane %v3582, 5
        %v3888 = vsel %vm1276, %v3885, %v3887
        %v3889 = vrot.slane %v3583, 5
        %v3890 = vsel %vm1276, %v3887, %v3889
        %v3891 = vrot.slane %v3584, 5
        %v3892 = vsel %vm1276, %v3889, %v3891
        %v3893 = vrot.slane %v3585, 5
        %v3894 = vsel %vm1276, %v3891, %v3893
        %v3895 = vrot.slane %v3586, 5
        %v3896 = vsel %vm1276, %v3893, %v3895
        %v3897 = vrot.slane %v3587, 5
        %v3898 = vsel %vm1276, %v3895, %v3897
        %v3899 = vrot.slane %v3588, 5
        %v3900 = vsel %vm1276, %v3897, %v3899
        %v3901 = vrot.slane %v3589, 5
        %v3902 = vsel %vm1276, %v3899, %v3901
        %v3903 = vrot.slane %v3590, 5
        %v3904 = vsel %vm1276, %v3901, %v3903
        %v3905 = vrot.slane %v3591, 5
        %v3906 = vsel %vm1276, %v3903, %v3905
        %3907 = vrot.lane.b32.xlu0 %v3882, 64
        %v3908 = vpop.permute.xlu0 %3907
        %3909 = vrot.lane.b32.xlu0 %v3884, 64
        %v3910 = vpop.permute.xlu0 %3909
        %3911 = vrot.lane.b32.xlu0 %v3886, 64
        %v3912 = vpop.permute.xlu0 %3911
        %3913 = vrot.lane.b32.xlu0 %v3888, 64
        %v3914 = vpop.permute.xlu0 %3913
        %3915 = vrot.lane.b32.xlu0 %v3890, 64
        %v3916 = vpop.permute.xlu0 %3915
        %3917 = vrot.lane.b32.xlu0 %v3892, 64
        %v3918 = vpop.permute.xlu0 %3917
        %3919 = vrot.lane.b32.xlu0 %v3894, 64
        %v3920 = vpop.permute.xlu0 %3919
        %3921 = vrot.lane.b32.xlu0 %v3896, 64
        %v3922 = vpop.permute.xlu0 %3921
        %3923 = vrot.lane.b32.xlu0 %v3898, 64
        %v3924 = vpop.permute.xlu0 %3923
        %3925 = vrot.lane.b32.xlu0 %v3900, 64
        %v3926 = vpop.permute.xlu0 %3925
        %3927 = vrot.lane.b32.xlu0 %v3902, 64
        %v3928 = vpop.permute.xlu0 %3927
        %3929 = vrot.lane.b32.xlu0 %v3904, 64
        %v3930 = vpop.permute.xlu0 %3929
        %3931 = vrot.lane.b32.xlu0 %v3906, 64
        %v3932 = vpop.permute.xlu0 %3931
        %3946 = vst.msk [vmem:[#allocation4 + $0x10] sm:$0xf8] %vm1341, %v3908
        %3947 = vst.msk [vmem:[#allocation4 + $0x20] sm:$0xff] %vm1343, %v3910
        %3948 = vst.msk [vmem:[#allocation4 + $0x30] sm:$0xff] %vm1343, %v3912
        %3949 = vst.msk [vmem:[#allocation4 + $0x40] sm:$0xff] %vm1343, %v3914
        %3950 = vst.msk [vmem:[#allocation4 + $0x50] sm:$0xff] %vm1343, %v3916
        %3951 = vst.msk [vmem:[#allocation4 + $0x60] sm:$0xff] %vm1343, %v3918
        %3952 = vst.msk [vmem:[#allocation4 + $0x70] sm:$0xff] %vm1343, %v3920
        %3953 = vst.msk [vmem:[#allocation4 + $0x80] sm:$0xff] %vm1343, %v3922
        %3954 = vst.msk [vmem:[#allocation4 + $0x90] sm:$0xff] %vm1343, %v3924
        %3955 = vst.msk [vmem:[#allocation4 + $0xa0] sm:$0xff] %vm1343, %v3926
        %3956 = vst.msk [vmem:[#allocation4 + $0xb0] sm:$0xff] %vm1343, %v3928
        %3957 = vst.msk [vmem:[#allocation4 + $0xc0] sm:$0xff] %vm1343, %v3930
        %3958 = vst.msk [vmem:[#allocation4 + $0xd0] sm:$0x7f] %vm1355, %v3932
        %v3959 = vrot.slane %v3579, 6
        %v3960 = vrot.slane %v3580, 6
        %v3961 = vsel %vm520, %v3959, %v3960
        %v3962 = vrot.slane %v3581, 6
        %v3963 = vsel %vm520, %v3960, %v3962
        %v3964 = vrot.slane %v3582, 6
        %v3965 = vsel %vm520, %v3962, %v3964
        %v3966 = vrot.slane %v3583, 6
        %v3967 = vsel %vm520, %v3964, %v3966
        %v3968 = vrot.slane %v3584, 6
        %v3969 = vsel %vm520, %v3966, %v3968
        %v3970 = vrot.slane %v3585, 6
        %v3971 = vsel %vm520, %v3968, %v3970
        %v3972 = vrot.slane %v3586, 6
        %v3973 = vsel %vm520, %v3970, %v3972
        %v3974 = vrot.slane %v3587, 6
        %v3975 = vsel %vm520, %v3972, %v3974
        %v3976 = vrot.slane %v3588, 6
        %v3977 = vsel %vm520, %v3974, %v3976
        %v3978 = vrot.slane %v3589, 6
        %v3979 = vsel %vm520, %v3976, %v3978
        %v3980 = vrot.slane %v3590, 6
        %v3981 = vsel %vm520, %v3978, %v3980
        %v3982 = vrot.slane %v3591, 6
        %v3983 = vsel %vm520, %v3980, %v3982
        %3984 = vrot.lane.b32.xlu0 %v3959, 80
        %v3985 = vpop.permute.xlu0 %3984
        %3986 = vrot.lane.b32.xlu0 %v3961, 80
        %v3987 = vpop.permute.xlu0 %3986
        %3988 = vrot.lane.b32.xlu0 %v3963, 80
        %v3989 = vpop.permute.xlu0 %3988
        %3990 = vrot.lane.b32.xlu0 %v3965, 80
        %v3991 = vpop.permute.xlu0 %3990
        %3992 = vrot.lane.b32.xlu0 %v3967, 80
        %v3993 = vpop.permute.xlu0 %3992
        %3994 = vrot.lane.b32.xlu0 %v3969, 80
        %v3995 = vpop.permute.xlu0 %3994
        %3996 = vrot.lane.b32.xlu0 %v3971, 80
        %v3997 = vpop.permute.xlu0 %3996
        %3998 = vrot.lane.b32.xlu0 %v3973, 80
        %v3999 = vpop.permute.xlu0 %3998
        %4000 = vrot.lane.b32.xlu0 %v3975, 80
        %v4001 = vpop.permute.xlu0 %4000
        %4002 = vrot.lane.b32.xlu0 %v3977, 80
        %v4003 = vpop.permute.xlu0 %4002
        %4004 = vrot.lane.b32.xlu0 %v3979, 80
        %v4005 = vpop.permute.xlu0 %4004
        %4006 = vrot.lane.b32.xlu0 %v3981, 80
        %v4007 = vpop.permute.xlu0 %4006
        %4008 = vrot.lane.b32.xlu0 %v3983, 80
        %v4009 = vpop.permute.xlu0 %4008
        %4023 = vst.msk [vmem:[#allocation4 + $0x10] sm:$0xfc] %vm1421, %v3985
        %4024 = vst.msk [vmem:[#allocation4 + $0x20] sm:$0xff] %vm1423, %v3987
        %4025 = vst.msk [vmem:[#allocation4 + $0x30] sm:$0xff] %vm1423, %v3989
        %4026 = vst.msk [vmem:[#allocation4 + $0x40] sm:$0xff] %vm1423, %v3991
        %4027 = vst.msk [vmem:[#allocation4 + $0x50] sm:$0xff] %vm1423, %v3993
        %4028 = vst.msk [vmem:[#allocation4 + $0x60] sm:$0xff] %vm1423, %v3995
        %4029 = vst.msk [vmem:[#allocation4 + $0x70] sm:$0xff] %vm1423, %v3997
        %4030 = vst.msk [vmem:[#allocation4 + $0x80] sm:$0xff] %vm1423, %v3999
        %4031 = vst.msk [vmem:[#allocation4 + $0x90] sm:$0xff] %vm1423, %v4001
        %4032 = vst.msk [vmem:[#allocation4 + $0xa0] sm:$0xff] %vm1423, %v4003
        %4033 = vst.msk [vmem:[#allocation4 + $0xb0] sm:$0xff] %vm1423, %v4005
        %4034 = vst.msk [vmem:[#allocation4 + $0xc0] sm:$0xff] %vm1423, %v4007
        %4035 = vst.msk [vmem:[#allocation4 + $0xd0] sm:$0x3f] %vm1435, %v4009
        %4036 = vrot.lane.b32.xlu0 %v3959, 96
        %v4037 = vpop.permute.xlu0 %4036
        %4038 = vrot.lane.b32.xlu0 %v3961, 96
        %v4039 = vpop.permute.xlu0 %4038
        %4040 = vrot.lane.b32.xlu0 %v3963, 96
        %v4041 = vpop.permute.xlu0 %4040
        %4042 = vrot.lane.b32.xlu0 %v3965, 96
        %v4043 = vpop.permute.xlu0 %4042
        %4044 = vrot.lane.b32.xlu0 %v3967, 96
        %v4045 = vpop.permute.xlu0 %4044
        %4046 = vrot.lane.b32.xlu0 %v3969, 96
        %v4047 = vpop.permute.xlu0 %4046
        %4048 = vrot.lane.b32.xlu0 %v3971, 96
        %v4049 = vpop.permute.xlu0 %4048
        %4050 = vrot.lane.b32.xlu0 %v3973, 96
        %v4051 = vpop.permute.xlu0 %4050
        %4052 = vrot.lane.b32.xlu0 %v3975, 96
        %v4053 = vpop.permute.xlu0 %4052
        %4054 = vrot.lane.b32.xlu0 %v3977, 96
        %v4055 = vpop.permute.xlu0 %4054
        %4056 = vrot.lane.b32.xlu0 %v3979, 96
        %v4057 = vpop.permute.xlu0 %4056
        %4058 = vrot.lane.b32.xlu0 %v3981, 96
        %v4059 = vpop.permute.xlu0 %4058
        %4060 = vrot.lane.b32.xlu0 %v3983, 96
        %v4061 = vpop.permute.xlu0 %4060
        %4075 = vst.msk [vmem:[#allocation4] sm:$0xfc] %vm1476, %v4037
        %4076 = vst.msk [vmem:[#allocation4 + $0x10] sm:$0xff] %vm1478, %v4039
        %4077 = vst.msk [vmem:[#allocation4 + $0x20] sm:$0xff] %vm1478, %v4041
        %4078 = vst.msk [vmem:[#allocation4 + $0x30] sm:$0xff] %vm1478, %v4043
        %4079 = vst.msk [vmem:[#allocation4 + $0x40] sm:$0xff] %vm1478, %v4045
        %4080 = vst.msk [vmem:[#allocation4 + $0x50] sm:$0xff] %vm1478, %v4047
        %4081 = vst.msk [vmem:[#allocation4 + $0x60] sm:$0xff] %vm1478, %v4049
        %4082 = vst.msk [vmem:[#allocation4 + $0x70] sm:$0xff] %vm1478, %v4051
        %4083 = vst.msk [vmem:[#allocation4 + $0x80] sm:$0xff] %vm1478, %v4053
        %4084 = vst.msk [vmem:[#allocation4 + $0x90] sm:$0xff] %vm1478, %v4055
        %4085 = vst.msk [vmem:[#allocation4 + $0xa0] sm:$0xff] %vm1478, %v4057
        %4086 = vst.msk [vmem:[#allocation4 + $0xb0] sm:$0xff] %vm1478, %v4059
        %4087 = vst.msk [vmem:[#allocation4 + $0xc0] sm:$0x3f] %vm1490, %v4061
        %v4088 = vrot.slane %v3579, 7
        %v4089 = vrot.slane %v3580, 7
        %v4090 = vsel %vm1492, %v4088, %v4089
        %v4091 = vrot.slane %v3581, 7
        %v4092 = vsel %vm1492, %v4089, %v4091
        %v4093 = vrot.slane %v3582, 7
        %v4094 = vsel %vm1492, %v4091, %v4093
        %v4095 = vrot.slane %v3583, 7
        %v4096 = vsel %vm1492, %v4093, %v4095
        %v4097 = vrot.slane %v3584, 7
        %v4098 = vsel %vm1492, %v4095, %v4097
        %v4099 = vrot.slane %v3585, 7
        %v4100 = vsel %vm1492, %v4097, %v4099
        %v4101 = vrot.slane %v3586, 7
        %v4102 = vsel %vm1492, %v4099, %v4101
        %v4103 = vrot.slane %v3587, 7
        %v4104 = vsel %vm1492, %v4101, %v4103
        %v4105 = vrot.slane %v3588, 7
        %v4106 = vsel %vm1492, %v4103, %v4105
        %v4107 = vrot.slane %v3589, 7
        %v4108 = vsel %vm1492, %v4105, %v4107
        %v4109 = vrot.slane %v3590, 7
        %v4110 = vsel %vm1492, %v4107, %v4109
        %v4111 = vrot.slane %v3591, 7
        %v4112 = vsel %vm1492, %v4109, %v4111
        %4113 = vrot.lane.b32.xlu0 %v4088, 112
        %v4114 = vpop.permute.xlu0 %4113
        %4115 = vrot.lane.b32.xlu0 %v4090, 112
        %v4116 = vpop.permute.xlu0 %4115
        %4117 = vrot.lane.b32.xlu0 %v4092, 112
        %v4118 = vpop.permute.xlu0 %4117
        %4119 = vrot.lane.b32.xlu0 %v4094, 112
        %v4120 = vpop.permute.xlu0 %4119
        %4121 = vrot.lane.b32.xlu0 %v4096, 112
        %v4122 = vpop.permute.xlu0 %4121
        %4123 = vrot.lane.b32.xlu0 %v4098, 112
        %v4124 = vpop.permute.xlu0 %4123
        %4125 = vrot.lane.b32.xlu0 %v4100, 112
        %v4126 = vpop.permute.xlu0 %4125
        %4127 = vrot.lane.b32.xlu0 %v4102, 112
        %v4128 = vpop.permute.xlu0 %4127
        %4129 = vrot.lane.b32.xlu0 %v4104, 112
        %v4130 = vpop.permute.xlu0 %4129
        %4131 = vrot.lane.b32.xlu0 %v4106, 112
        %v4132 = vpop.permute.xlu0 %4131
        %4133 = vrot.lane.b32.xlu0 %v4108, 112
        %v4134 = vpop.permute.xlu0 %4133
        %4135 = vrot.lane.b32.xlu0 %v4110, 112
        %v4136 = vpop.permute.xlu0 %4135
        %4137 = vrot.lane.b32.xlu0 %v4112, 112
        %v4138 = vpop.permute.xlu0 %4137
        %4152 = vst.msk [vmem:[#allocation4] sm:$0xfe] %vm1557, %v4114
        %4153 = vst.msk [vmem:[#allocation4 + $0x10] sm:$0xff] %vm1559, %v4116
        %4154 = vst.msk [vmem:[#allocation4 + $0x20] sm:$0xff] %vm1559, %v4118
        %4155 = vst.msk [vmem:[#allocation4 + $0x30] sm:$0xff] %vm1559, %v4120
        %4156 = vst.msk [vmem:[#allocation4 + $0x40] sm:$0xff] %vm1559, %v4122
        %4157 = vst.msk [vmem:[#allocation4 + $0x50] sm:$0xff] %vm1559, %v4124
        %4158 = vst.msk [vmem:[#allocation4 + $0x60] sm:$0xff] %vm1559, %v4126
        %4159 = vst.msk [vmem:[#allocation4 + $0x70] sm:$0xff] %vm1559, %v4128
        %4160 = vst.msk [vmem:[#allocation4 + $0x80] sm:$0xff] %vm1559, %v4130
        %4161 = vst.msk [vmem:[#allocation4 + $0x90] sm:$0xff] %vm1559, %v4132
        %4162 = vst.msk [vmem:[#allocation4 + $0xa0] sm:$0xff] %vm1559, %v4134
        %4163 = vst.msk [vmem:[#allocation4 + $0xb0] sm:$0xff] %vm1559, %v4136
        %4164 = vst.msk [vmem:[#allocation4 + $0xc0] sm:$0x1f] %vm1571, %v4138
        %4165 = vst.msk [vmem:[#allocation4 + $0x8] sm:$0xff] %vm614, %v3579
        %4166 = vst.msk [vmem:[#allocation4 + $0x18] sm:$0xff] %vm614, %v3580
        %4167 = vst.msk [vmem:[#allocation4 + $0x28] sm:$0xff] %vm614, %v3581
        %4168 = vst.msk [vmem:[#allocation4 + $0x38] sm:$0xff] %vm614, %v3582
        %4169 = vst.msk [vmem:[#allocation4 + $0x48] sm:$0xff] %vm614, %v3583
        %4170 = vst.msk [vmem:[#allocation4 + $0x58] sm:$0xff] %vm614, %v3584
        %4171 = vst.msk [vmem:[#allocation4 + $0x68] sm:$0xff] %vm614, %v3585
        %4172 = vst.msk [vmem:[#allocation4 + $0x78] sm:$0xff] %vm614, %v3586
        %4173 = vst.msk [vmem:[#allocation4 + $0x88] sm:$0xff] %vm614, %v3587
        %4174 = vst.msk [vmem:[#allocation4 + $0x98] sm:$0xff] %vm614, %v3588
        %4175 = vst.msk [vmem:[#allocation4 + $0xa8] sm:$0xff] %vm614, %v3589
        %4176 = vst.msk [vmem:[#allocation4 + $0xb8] sm:$0xff] %vm614, %v3590
        %4177 = vst.msk [vmem:[#allocation4 + $0xc8] sm:$0xf] %vm638, %v3591
        %v4178 = vld [vmem:[#allocation4 + $0x10] sm:$0xf8]
        %v4179 = vld [vmem:[#allocation4 + $0x18] sm:$0xf8]
        %v4180 = vld [vmem:[#allocation4 + $0x20] sm:$0xff]
        %v4181 = vld [vmem:[#allocation4 + $0x28] sm:$0xff]
        %v4182 = vld [vmem:[#allocation4 + $0x30] sm:$0xff]
        %v4183 = vld [vmem:[#allocation4 + $0x38] sm:$0xff]
        %v4184 = vld [vmem:[#allocation4 + $0x40] sm:$0xff]
        %v4185 = vld [vmem:[#allocation4 + $0x48] sm:$0xff]
        %v4186 = vld [vmem:[#allocation4 + $0x50] sm:$0xff]
        %v4187 = vld [vmem:[#allocation4 + $0x58] sm:$0xff]
        %v4188 = vld [vmem:[#allocation4 + $0x60] sm:$0xff]
        %v4189 = vld [vmem:[#allocation4 + $0x68] sm:$0xff]
        %v4190 = vld [vmem:[#allocation4 + $0x70] sm:$0xff]
        %v4191 = vld [vmem:[#allocation4 + $0x78] sm:$0xff]
        %v4192 = vld [vmem:[#allocation4 + $0x80] sm:$0xff]
        %v4193 = vld [vmem:[#allocation4 + $0x88] sm:$0xff]
        %v4194 = vld [vmem:[#allocation4 + $0x90] sm:$0xff]
        %v4195 = vld [vmem:[#allocation4 + $0x98] sm:$0xff]
        %v4196 = vld [vmem:[#allocation4 + $0xa0] sm:$0xff]
        %v4197 = vld [vmem:[#allocation4 + $0xa8] sm:$0xff]
        %v4198 = vld [vmem:[#allocation4 + $0xb0] sm:$0xff]
        %v4199 = vld [vmem:[#allocation4 + $0xb8] sm:$0xff]
        %v4200 = vld [vmem:[#allocation4 + $0xc0] sm:$0xff]
        %v4201 = vld [vmem:[#allocation4 + $0xc8] sm:$0xff]
        %v4202 = vld [vmem:[#allocation4 + $0xd0] sm:$0x7f]
        %v4203 = vld [vmem:[#allocation4 + $0xd8] sm:$0x7f]
        %v4204 = vpack.c.bf16 %v4180, %v4178
        %v4205 = vpack.c.bf16 %v4181, %v4179
        %v4206 = vpack.c.bf16 %v4184, %v4182
        %v4207 = vpack.c.bf16 %v4185, %v4183
        %v4208 = vpack.c.bf16 %v4188, %v4186
        %v4209 = vpack.c.bf16 %v4189, %v4187
        %v4210 = vpack.c.bf16 %v4192, %v4190
        %v4211 = vpack.c.bf16 %v4193, %v4191
        %v4212 = vpack.c.bf16 %v4196, %v4194
        %v4213 = vpack.c.bf16 %v4197, %v4195
        %v4214 = vpack.c.bf16 %v4200, %v4198
        %v4215 = vpack.c.bf16 %v4201, %v4199
        %v4216 = vpack.c.bf16 %v4202, %v4202
        %v4217 = vpack.c.bf16 %v4203, %v4203
        %v4218 = vld [vmem:[%s5] sm:$0xf]
        %v4219 = vld [vmem:[%s5 + $0x4] sm:$0xf]
        %v4220 = vld [vmem:[%s5 + $0x8] sm:$0xf]
        %v4221 = vld [vmem:[%s5 + $0xc] sm:$0xf]
        %v4222 = vld [vmem:[%s5 + $0x10] sm:$0xf]
        %v4223 = vld [vmem:[%s5 + $0x14] sm:$0xf]
        %v4224 = vld [vmem:[%s5 + $0x18] sm:$0xf]
        %v4225 = vld [vmem:[%s5 + $0x1c] sm:$0xf]
        %v4226 = vld [vmem:[%s5 + $0x20] sm:$0xf]
        %v4227 = vld [vmem:[%s5 + $0x24] sm:$0xf]
        %v4228 = vld [vmem:[%s5 + $0x28] sm:$0xf]
        %v4229 = vld [vmem:[%s5 + $0x2c] sm:$0xf]
        %v4230 = vld [vmem:[%s5 + $0x30] sm:$0xf]
        %v4231 = vld [vmem:[%s5 + $0x34] sm:$0xf]
        %v4232 = vld [vmem:[%s5 + $0x38] sm:$0xf]
        %v4233 = vld [vmem:[%s5 + $0x3c] sm:$0xf]
        %v4234 = vld [vmem:[%s5 + $0x40] sm:$0xf]
        %v4235 = vld [vmem:[%s5 + $0x44] sm:$0xf]
        %v4237 = vshrl.u32 %v4204, 16
        %v4239 = vrot.slane %v4237, 1
        %v4240 = vshll.u32 %v4204, 16
        %v4242 = vrot.slane %v4240, 2
        %v4243 = vor.u32 %v4239, %v4242
        %v4245 = vshrl.u32 %v4206, 16
        %v4247 = vrot.slane %v4245, 1
        %v4248 = vshll.u32 %v4206, 16
        %v4250 = vrot.slane %v4248, 2
        %v4251 = vor.u32 %v4247, %v4250
        %v4252 = vsel %vm1644, %v4243, %v4251
        %v4254 = vshrl.u32 %v4205, 16
        %v4256 = vrot.slane %v4254, 1
        %v4257 = vshll.u32 %v4205, 16
        %v4259 = vrot.slane %v4257, 2
        %v4260 = vor.u32 %v4256, %v4259
        %v4262 = vshrl.u32 %v4207, 16
        %v4264 = vrot.slane %v4262, 1
        %v4265 = vshll.u32 %v4207, 16
        %v4267 = vrot.slane %v4265, 2
        %v4268 = vor.u32 %v4264, %v4267
        %v4269 = vsel %vm1644, %v4260, %v4268
        %v4271 = vshrl.u32 %v4208, 16
        %v4273 = vrot.slane %v4271, 1
        %v4274 = vshll.u32 %v4208, 16
        %v4276 = vrot.slane %v4274, 2
        %v4277 = vor.u32 %v4273, %v4276
        %v4278 = vsel %vm1644, %v4251, %v4277
        %v4280 = vshrl.u32 %v4209, 16
        %v4282 = vrot.slane %v4280, 1
        %v4283 = vshll.u32 %v4209, 16
        %v4285 = vrot.slane %v4283, 2
        %v4286 = vor.u32 %v4282, %v4285
        %v4287 = vsel %vm1644, %v4268, %v4286
        %v4289 = vshrl.u32 %v4210, 16
        %v4291 = vrot.slane %v4289, 1
        %v4292 = vshll.u32 %v4210, 16
        %v4294 = vrot.slane %v4292, 2
        %v4295 = vor.u32 %v4291, %v4294
        %v4296 = vsel %vm1644, %v4277, %v4295
        %v4298 = vshrl.u32 %v4211, 16
        %v4300 = vrot.slane %v4298, 1
        %v4301 = vshll.u32 %v4211, 16
        %v4303 = vrot.slane %v4301, 2
        %v4304 = vor.u32 %v4300, %v4303
        %v4305 = vsel %vm1644, %v4286, %v4304
        %v4307 = vshrl.u32 %v4212, 16
        %v4309 = vrot.slane %v4307, 1
        %v4310 = vshll.u32 %v4212, 16
        %v4312 = vrot.slane %v4310, 2
        %v4313 = vor.u32 %v4309, %v4312
        %v4314 = vsel %vm1644, %v4295, %v4313
        %v4316 = vshrl.u32 %v4213, 16
        %v4318 = vrot.slane %v4316, 1
        %v4319 = vshll.u32 %v4213, 16
        %v4321 = vrot.slane %v4319, 2
        %v4322 = vor.u32 %v4318, %v4321
        %v4323 = vsel %vm1644, %v4304, %v4322
        %v4325 = vshrl.u32 %v4214, 16
        %v4327 = vrot.slane %v4325, 1
        %v4328 = vshll.u32 %v4214, 16
        %v4330 = vrot.slane %v4328, 2
        %v4331 = vor.u32 %v4327, %v4330
        %v4332 = vsel %vm1644, %v4313, %v4331
        %v4334 = vshrl.u32 %v4215, 16
        %v4336 = vrot.slane %v4334, 1
        %v4337 = vshll.u32 %v4215, 16
        %v4339 = vrot.slane %v4337, 2
        %v4340 = vor.u32 %v4336, %v4339
        %v4341 = vsel %vm1644, %v4322, %v4340
        %v4343 = vshrl.u32 %v4216, 16
        %v4345 = vrot.slane %v4343, 1
        %v4346 = vshll.u32 %v4216, 16
        %v4348 = vrot.slane %v4346, 2
        %v4349 = vor.u32 %v4345, %v4348
        %v4350 = vsel %vm1644, %v4331, %v4349
        %v4352 = vshrl.u32 %v4217, 16
        %v4354 = vrot.slane %v4352, 1
        %v4355 = vshll.u32 %v4217, 16
        %v4357 = vrot.slane %v4355, 2
        %v4358 = vor.u32 %v4354, %v4357
        %v4359 = vsel %vm1644, %v4340, %v4358
        %v4385 = vunpack.c.l.b16 %v4218
        %v4386 = vunpack.c.l.b16 %v4219
        %v4387 = vunpack.c.l.b16 %v4220
        %v4388 = vunpack.c.l.b16 %v4221
        %v4389 = vunpack.c.l.b16 %v4222
        %v4390 = vunpack.c.l.b16 %v4223
        %v4391 = vunpack.c.l.b16 %v4224
        %v4392 = vunpack.c.l.b16 %v4225
        %v4393 = vunpack.c.l.b16 %v4226
        %v4394 = vunpack.c.l.b16 %v4227
        %v4395 = vunpack.c.l.b16 %v4228
        %v4396 = vunpack.c.l.b16 %v4229
        %v4397 = vunpack.c.l.b16 %v4230
        %v4398 = vunpack.c.l.b16 %v4231
        %v4399 = vunpack.c.l.b16 %v4232
        %v4400 = vunpack.c.l.b16 %v4233
        %v4401 = vunpack.c.l.b16 %v4234
        %v4402 = vunpack.c.l.b16 %v4235
        %v4403 = vpack.c.b16 %v4386, %v4385
        %v4404 = vpack.c.b16 %v4388, %v4387
        %v4405 = vpack.c.b16 %v4390, %v4389
        %v4406 = vpack.c.b16 %v4392, %v4391
        %v4407 = vpack.c.b16 %v4394, %v4393
        %v4408 = vpack.c.b16 %v4396, %v4395
        %v4409 = vpack.c.b16 %v4398, %v4397
        %v4410 = vpack.c.b16 %v4400, %v4399
        %v4411 = vpack.c.b16 %v4402, %v4401
        %v4422 = vsel %vm614, %v4269, 0
        %v4425 = vsel %vm614, %v4287, 0
        %v4428 = vsel %vm614, %v4305, 0
        %v4431 = vsel %vm614, %v4323, 0
        %v4434 = vsel %vm614, %v4341, 0
        %v4437 = vsel %vm614, %v4359, 0
        %v4440 = vsel %vm614, %v4358, 0
        %4442 = vmatprep.subr.bf16.mxu0 0
        %4443 = vmatpush1.bf16.msra.mxu0 %v4410
        %4444 = vmatprep.subr.bf16.mxu0 0
        %4445 = vmatpush1.bf16.msra.mxu0 %v4409
        %4446 = vmatprep.subr.bf16.mxu0 0
        %4447 = vmatpush1.bf16.msra.mxu0 %v4408
        %4448 = vmatprep.subr.bf16.mxu0 0
        %4449 = vmatpush1.bf16.msra.mxu0 %v4407
        %4450 = vmatprep.subr.bf16.mxu0 0
        %4451 = vmatpush1.bf16.msra.mxu0 %v4406
        %4452 = vmatprep.subr.bf16.mxu0 0
        %4453 = vmatpush1.bf16.msra.mxu0 %v4405
        %4454 = vmatprep.subr.bf16.mxu0 0
        %4455 = vmatpush1.bf16.msra.mxu0 %v4404
        %4456 = vmatprep.subr.bf16.mxu0 0
        %4457 = vmatpush1.bf16.msra.mxu0 %v4403
        %4458 = vmatprep.subr.bf16.mxu0 0
        %4459 = vmatpush2.bf16.msra.mxu0 0
        %4460 = vmatprep.subr.bf16.mxu0 0
        %4461 = vmatpush2.bf16.msra.mxu0 0
        %4462 = vmatprep.subr.bf16.mxu0 0
        %4463 = vmatpush2.bf16.msra.mxu0 0
        %4464 = vmatprep.subr.bf16.mxu0 0
        %4465 = vmatpush2.bf16.msra.mxu0 0
        %4466 = vmatprep.subr.bf16.mxu0 0
        %4467 = vmatpush2.bf16.msra.mxu0 0
        %4468 = vmatprep.subr.bf16.mxu0 0
        %4469 = vmatpush2.bf16.msra.mxu0 0
        %4470 = vmatprep.subr.bf16.mxu0 0
        %4471 = vmatpush2.bf16.msra.mxu0 0
        %4472 = vmatprep.subr.bf16.mxu0 0
        %4473 = vmatpush2.bf16.msra.mxu0 %v4411
        %4474 = vmatprep.mubr.bf16.mxu0 %v4422
        %4475 = vmatmul.mubr.bf16.gmra.mxu0 %v4252
        %v4476 = vpop.f32.mrf.mxu0
        %v4477 = vadd.f32 0.0, %v4476
        %v4478 = vpop.f32.mrf.mxu0
        %v4479 = vpop.f32.mrf.mxu0
        %v4480 = vadd.f32 0.0, %v4479
        %v4481 = vpop.f32.mrf.mxu0
        %4482 = vmatprep.mubr.bf16.mxu0 %v4425
        %4483 = vmatmul.mubr.bf16.gmra.mxu0 %v4278
        %v4484 = vpop.f32.mrf.mxu0
        %v4485 = vadd.f32 0.0, %v4484
        %v4486 = vpop.f32.mrf.mxu0
        %v4487 = vpop.f32.mrf.mxu0
        %v4488 = vadd.f32 0.0, %v4487
        %v4489 = vpop.f32.mrf.mxu0
        %4490 = vmatprep.mubr.bf16.mxu0 %v4428
        %4491 = vmatmul.mubr.bf16.gmra.mxu0 %v4296
        %v4492 = vpop.f32.mrf.mxu0
        %v4493 = vadd.f32 0.0, %v4492
        %v4494 = vpop.f32.mrf.mxu0
        %v4495 = vpop.f32.mrf.mxu0
        %v4496 = vadd.f32 0.0, %v4495
        %v4497 = vpop.f32.mrf.mxu0
        %4498 = vmatprep.mubr.bf16.mxu0 %v4431
        %4499 = vmatmul.mubr.bf16.gmra.mxu0 %v4314
        %v4500 = vpop.f32.mrf.mxu0
        %v4501 = vadd.f32 0.0, %v4500
        %v4502 = vpop.f32.mrf.mxu0
        %v4503 = vpop.f32.mrf.mxu0
        %v4504 = vadd.f32 0.0, %v4503
        %v4505 = vpop.f32.mrf.mxu0
        %4506 = vmatprep.mubr.bf16.mxu0 %v4434
        %4507 = vmatmul.mubr.bf16.gmra.mxu0 %v4332
        %v4508 = vpop.f32.mrf.mxu0
        %v4509 = vadd.f32 0.0, %v4508
        %v4510 = vpop.f32.mrf.mxu0
        %v4511 = vpop.f32.mrf.mxu0
        %v4512 = vadd.f32 0.0, %v4511
        %v4513 = vpop.f32.mrf.mxu0
        %4514 = vmatprep.mubr.bf16.mxu0 %v4437
        %4515 = vmatmul.mubr.bf16.gmra.mxu0 %v4350
        %v4516 = vpop.f32.mrf.mxu0
        %v4517 = vadd.f32 0.0, %v4516
        %v4518 = vpop.f32.mrf.mxu0
        %v4519 = vpop.f32.mrf.mxu0
        %v4520 = vadd.f32 0.0, %v4519
        %v4521 = vpop.f32.mrf.mxu0
        %4522 = vmatprep.mubr.bf16.mxu0 %v4440
        %4523 = vmatmul.mubr.bf16.gmra.mxu0 %v4349
        %v4524 = vpop.f32.mrf.mxu0
        %v4525 = vadd.f32 0.0, %v4524
        %v4526 = vpop.f32.mrf.mxu0
        %v4527 = vpop.f32.mrf.mxu0
        %v4528 = vpop.f32.mrf.mxu0
        %4529 = vdwg.mxu0
        %v4530 = vld [vmem:[%s9] sm:$0xf]
        %v4531 = vld [vmem:[%s9 + $0x4] sm:$0xf]
        %v4532 = vld [vmem:[%s9 + $0x8] sm:$0xf]
        %v4533 = vld [vmem:[%s9 + $0xc] sm:$0xf]
        %v4534 = vld [vmem:[%s9 + $0x10] sm:$0x3]
        %v4535 = vpack.c.bf16 %v4480, %v4477
        %v4536 = vpack.c.bf16 %v4488, %v4485
        %v4537 = vpack.c.bf16 %v4496, %v4493
        %v4538 = vpack.c.bf16 %v4504, %v4501
        %v4539 = vpack.c.bf16 %v4512, %v4509
        %v4540 = vpack.c.bf16 %v4520, %v4517
        %v4541 = vpack.c.bf16 %v4525, %v4525
        %v4547 = vunpack.c.l.b16 %v4530
        %v4548 = vunpack.c.l.b16 %v4531
        %v4549 = vunpack.c.l.b16 %v4532
        %v4550 = vunpack.c.l.b16 %v4533
        %v4551 = vunpack.c.l.b16 %v4534
        %v4552 = vpack.c.b16 %v4548, %v4547
        %v4553 = vpack.c.b16 %v4550, %v4549
        %v4554 = vpack.c.b16 %v4551, %v4551
        %vm4555 = vcmask 818176
        %v4557 = vsel %vm4555, %v4552, 0
        %v4560 = vsel %vm4555, %v4553, 0
        %v4563 = vsel %vm4555, %v4554, 0
        %v4566 = vsel %vm520, %v4541, 0
        %4568 = vmatprep.subr.bf16.mxu0 0
        %4569 = vmatpush1.bf16.msra.mxu0 0
        %4570 = vmatprep.subr.bf16.mxu0 0
        %4571 = vmatpush1.bf16.msra.mxu0 %v4566
        %4572 = vmatprep.subr.bf16.mxu0 0
        %4573 = vmatpush1.bf16.msra.mxu0 %v4540
        %4574 = vmatprep.subr.bf16.mxu0 0
        %4575 = vmatpush1.bf16.msra.mxu0 %v4539
        %4576 = vmatprep.subr.bf16.mxu0 0
        %4577 = vmatpush1.bf16.msra.mxu0 %v4538
        %4578 = vmatprep.subr.bf16.mxu0 0
        %4579 = vmatpush1.bf16.msra.mxu0 %v4537
        %4580 = vmatprep.subr.bf16.mxu0 0
        %4581 = vmatpush1.bf16.msra.mxu0 %v4536
        %4582 = vmatprep.subr.bf16.mxu0 0
        %4583 = vmatpush1.bf16.msra.mxu0 %v4535
        %4584 = vmatprep.subr.bf16.mxu0 0
        %4585 = vmatpush2.bf16.msra.mxu0 0
        %4586 = vmatprep.subr.bf16.mxu0 0
        %4587 = vmatpush2.bf16.msra.mxu0 0
        %4588 = vmatprep.subr.bf16.mxu0 0
        %4589 = vmatpush2.bf16.msra.mxu0 0
        %4590 = vmatprep.subr.bf16.mxu0 0
        %4591 = vmatpush2.bf16.msra.mxu0 0
        %4592 = vmatprep.subr.bf16.mxu0 0
        %4593 = vmatpush2.bf16.msra.mxu0 0
        %4594 = vmatprep.subr.bf16.mxu0 0
        %4595 = vmatpush2.bf16.msra.mxu0 0
        %4596 = vmatprep.subr.bf16.mxu0 0
        %4597 = vmatpush2.bf16.msra.mxu0 0
        %4598 = vmatprep.subr.bf16.mxu0 0
        %4599 = vmatpush2.bf16.msra.mxu0 0
        %4600 = vmatprep.mubr.bf16.mxu0 0
        %4601 = vmatmul.mubr.bf16.gmra.mxu0 %v4557
        %v4602 = vpop.f32.mrf.mxu0
        %v4603 = vadd.f32 0.0, %v4602
        %v4604 = vpop.f32.mrf.mxu0
        %v4605 = vpop.f32.mrf.mxu0
        %v4606 = vadd.f32 0.0, %v4605
        %v4607 = vpop.f32.mrf.mxu0
        %4608 = vmatprep.mubr.bf16.mxu0 0
        %4609 = vmatmul.mubr.bf16.gmra.mxu0 %v4560
        %v4610 = vpop.f32.mrf.mxu0
        %v4611 = vadd.f32 0.0, %v4610
        %v4612 = vpop.f32.mrf.mxu0
        %v4613 = vpop.f32.mrf.mxu0
        %v4614 = vadd.f32 0.0, %v4613
        %v4615 = vpop.f32.mrf.mxu0
        %4616 = vmatprep.mubr.bf16.mxu0 0
        %4617 = vmatmul.mubr.bf16.gmra.mxu0 %v4563
        %v4618 = vpop.f32.mrf.mxu0
        %v4619 = vadd.f32 0.0, %v4618
        %v4620 = vpop.f32.mrf.mxu0
        %v4621 = vpop.f32.mrf.mxu0
        %v4622 = vpop.f32.mrf.mxu0
        %4623 = vdwg.mxu0
        %v4624 = vld [vmem:[%s1 + $0x6] sm:$0x1]
        %v4625 = vld [vmem:[%s1 + $0x7] sm:$0x1]
        %vm4626 = vcmask 261120
        %v4627 = vsel %vm4626, %v4603, 0.0
        %v4628 = vsel %vm4626, %v4606, 0.0
        %v4629 = vadd.f32 %v4627, %v4628
        %v4630 = vsel %vm4626, %v4611, 0.0
        %v4631 = vadd.f32 %v4629, %v4630
        %v4632 = vsel %vm4626, %v4614, 0.0
        %v4633 = vadd.f32 %v4631, %v4632
        %vm4634 = vcmask 257024
        %v4635 = vsel %vm4634, %v4619, 0.0
        %v4636 = vadd.f32 %v4633, %v4635
        %v4637 = vrot.slane %v4636, 4
        %v4638 = vadd.f32 %v4636, %v4637
        %v4639 = vrot.slane %v4638, 2
        %v4640 = vadd.f32 %v4638, %v4639
        %v4641 = vrot.slane %v4640, 1
        %v4642 = vadd.f32 %v4640, %v4641
        %v4643 = vmul.f32 %v4603, %v4603
        %v4644 = vmul.f32 %v4606, %v4606
        %v4645 = vmul.f32 %v4611, %v4611
        %v4646 = vmul.f32 %v4614, %v4614
        %v4647 = vmul.f32 %v4619, %v4619
        %v4648 = vsel %vm4626, %v4643, 0.0
        %v4649 = vsel %vm4626, %v4644, 0.0
        %v4650 = vadd.f32 %v4648, %v4649
        %v4651 = vsel %vm4626, %v4645, 0.0
        %v4652 = vadd.f32 %v4650, %v4651
        %v4653 = vsel %vm4626, %v4646, 0.0
        %v4654 = vadd.f32 %v4652, %v4653
        %v4655 = vsel %vm4634, %v4647, 0.0
        %v4656 = vadd.f32 %v4654, %v4655
        %v4657 = vrot.slane %v4656, 4
        %v4658 = vadd.f32 %v4656, %v4657
        %v4659 = vrot.slane %v4658, 2
        %v4660 = vadd.f32 %v4658, %v4659
        %v4661 = vrot.slane %v4660, 1
        %v4662 = vadd.f32 %v4660, %v4661
        %v4663 = vld [vmem:[%s8] sm:$0xff]
        %v4664 = vld [vmem:[%s8 + $0x8] sm:$0xff]
        %v4665 = vld [vmem:[%s8 + $0x10] sm:$0xff]
        %v4666 = vld [vmem:[%s8 + $0x18] sm:$0xff]
        %v4668 = vsel %vm4626, %v4642, 0
        %4670 = vmatprep.subr.mxu0 0.0
        %4671 = vmatpush1.msra.mxu0 0.0
        %4672 = vmatprep.subr.mxu0 0.0
        %4673 = vmatpush1.msra.mxu0 0.0
        %4674 = vmatprep.subr.mxu0 0.0
        %4675 = vmatpush1.msra.mxu0 0.0
        %4676 = vmatprep.subr.mxu0 0.0
        %4677 = vmatpush1.msra.mxu0 0.0
        %4678 = vmatprep.subr.mxu0 0.0
        %4679 = vmatpush1.msra.mxu0 0.0
        %4680 = vmatprep.subr.mxu0 0.0
        %4681 = vmatpush1.msra.mxu0 0.0
        %4682 = vmatprep.subr.mxu0 0.0
        %4683 = vmatpush1.msra.mxu0 0.0
        %4684 = vmatprep.subr.mxu0 0.0
        %4685 = vmatpush1.msra.mxu0 0.0
        %4686 = vmatprep.subr.mxu0 0.0
        %4687 = vmatpush1.msra.mxu0 0.0
        %4688 = vmatprep.subr.mxu0 0.0
        %4689 = vmatpush1.msra.mxu0 0.0
        %4690 = vmatprep.subr.mxu0 0.0
        %4691 = vmatpush1.msra.mxu0 0.0
        %4692 = vmatprep.subr.mxu0 0.0
        %4693 = vmatpush1.msra.mxu0 0.0
        %4694 = vmatprep.subr.mxu0 0.0
        %4695 = vmatpush1.msra.mxu0 %v4666
        %4696 = vmatprep.subr.mxu0 0.0
        %4697 = vmatpush1.msra.mxu0 %v4665
        %4698 = vmatprep.subr.mxu0 0.0
        %4699 = vmatpush1.msra.mxu0 %v4664
        %4700 = vmatprep.subr.mxu0 0.0
        %4701 = vmatpush1.msra.mxu0 %v4663
        %4702 = vmatprep.subr.mxu0 0.0
        %4703 = vmatpush2.msra.mxu0 0.0
        %4704 = vmatprep.subr.mxu0 0.0
        %4705 = vmatpush2.msra.mxu0 0.0
        %4706 = vmatprep.subr.mxu0 0.0
        %4707 = vmatpush2.msra.mxu0 0.0
        %4708 = vmatprep.subr.mxu0 0.0
        %4709 = vmatpush2.msra.mxu0 0.0
        %4710 = vmatprep.subr.mxu0 0.0
        %4711 = vmatpush2.msra.mxu0 0.0
        %4712 = vmatprep.subr.mxu0 0.0
        %4713 = vmatpush2.msra.mxu0 0.0
        %4714 = vmatprep.subr.mxu0 0.0
        %4715 = vmatpush2.msra.mxu0 0.0
        %4716 = vmatprep.subr.mxu0 0.0
        %4717 = vmatpush2.msra.mxu0 0.0
        %4718 = vmatprep.subr.mxu0 0.0
        %4719 = vmatpush2.msra.mxu0 0.0
        %4720 = vmatprep.subr.mxu0 0.0
        %4721 = vmatpush2.msra.mxu0 0.0
        %4722 = vmatprep.subr.mxu0 0.0
        %4723 = vmatpush2.msra.mxu0 0.0
        %4724 = vmatprep.subr.mxu0 0.0
        %4725 = vmatpush2.msra.mxu0 0.0
        %4726 = vmatprep.subr.mxu0 0.0
        %4727 = vmatpush2.msra.mxu0 0.0
        %4728 = vmatprep.subr.mxu0 0.0
        %4729 = vmatpush2.msra.mxu0 0.0
        %4730 = vmatprep.subr.mxu0 0.0
        %4731 = vmatpush2.msra.mxu0 0.0
        %4732 = vmatprep.subr.mxu0 0.0
        %4733 = vmatpush2.msra.mxu0 0.0
        %4734 = vmatprep.mubr.f32.mxu0 0.0
        %4735 = vmatmul.mubr.f32.gmra.mxu0 %v4668
        %v4736 = vpop.f32.mrf.mxu0
        %v4737 = vadd.f32 0.0, %v4736
        %v4738 = vpop.f32.mrf.mxu0
        %4739 = vdwg.mxu0
        %v4741 = vsel %vm4626, %v4662, 0
        %4743 = vmatprep.subr.mxu0 0.0
        %4744 = vmatpush1.msra.mxu0 0.0
        %4745 = vmatprep.subr.mxu0 0.0
        %4746 = vmatpush1.msra.mxu0 0.0
        %4747 = vmatprep.subr.mxu0 0.0
        %4748 = vmatpush1.msra.mxu0 0.0
        %4749 = vmatprep.subr.mxu0 0.0
        %4750 = vmatpush1.msra.mxu0 0.0
        %4751 = vmatprep.subr.mxu0 0.0
        %4752 = vmatpush1.msra.mxu0 0.0
        %4753 = vmatprep.subr.mxu0 0.0
        %4754 = vmatpush1.msra.mxu0 0.0
        %4755 = vmatprep.subr.mxu0 0.0
        %4756 = vmatpush1.msra.mxu0 0.0
        %4757 = vmatprep.subr.mxu0 0.0
        %4758 = vmatpush1.msra.mxu0 0.0
        %4759 = vmatprep.subr.mxu0 0.0
        %4760 = vmatpush1.msra.mxu0 0.0
        %4761 = vmatprep.subr.mxu0 0.0
        %4762 = vmatpush1.msra.mxu0 0.0
        %4763 = vmatprep.subr.mxu0 0.0
        %4764 = vmatpush1.msra.mxu0 0.0
        %4765 = vmatprep.subr.mxu0 0.0
        %4766 = vmatpush1.msra.mxu0 0.0
        %4767 = vmatprep.subr.mxu0 0.0
        %4768 = vmatpush1.msra.mxu0 %v4666
        %4769 = vmatprep.subr.mxu0 0.0
        %4770 = vmatpush1.msra.mxu0 %v4665
        %4771 = vmatprep.subr.mxu0 0.0
        %4772 = vmatpush1.msra.mxu0 %v4664
        %4773 = vmatprep.subr.mxu0 0.0
        %4774 = vmatpush1.msra.mxu0 %v4663
        %4775 = vmatprep.subr.mxu0 0.0
        %4776 = vmatpush2.msra.mxu0 0.0
        %4777 = vmatprep.subr.mxu0 0.0
        %4778 = vmatpush2.msra.mxu0 0.0
        %4779 = vmatprep.subr.mxu0 0.0
        %4780 = vmatpush2.msra.mxu0 0.0
        %4781 = vmatprep.subr.mxu0 0.0
        %4782 = vmatpush2.msra.mxu0 0.0
        %4783 = vmatprep.subr.mxu0 0.0
        %4784 = vmatpush2.msra.mxu0 0.0
        %4785 = vmatprep.subr.mxu0 0.0
        %4786 = vmatpush2.msra.mxu0 0.0
        %4787 = vmatprep.subr.mxu0 0.0
        %4788 = vmatpush2.msra.mxu0 0.0
        %4789 = vmatprep.subr.mxu0 0.0
        %4790 = vmatpush2.msra.mxu0 0.0
        %4791 = vmatprep.subr.mxu0 0.0
        %4792 = vmatpush2.msra.mxu0 0.0
        %4793 = vmatprep.subr.mxu0 0.0
        %4794 = vmatpush2.msra.mxu0 0.0
        %4795 = vmatprep.subr.mxu0 0.0
        %4796 = vmatpush2.msra.mxu0 0.0
        %4797 = vmatprep.subr.mxu0 0.0
        %4798 = vmatpush2.msra.mxu0 0.0
        %4799 = vmatprep.subr.mxu0 0.0
        %4800 = vmatpush2.msra.mxu0 0.0
        %4801 = vmatprep.subr.mxu0 0.0
        %4802 = vmatpush2.msra.mxu0 0.0
        %4803 = vmatprep.subr.mxu0 0.0
        %4804 = vmatpush2.msra.mxu0 0.0
        %4805 = vmatprep.subr.mxu0 0.0
        %4806 = vmatpush2.msra.mxu0 0.0
        %4807 = vmatprep.mubr.f32.mxu0 0.0
        %4808 = vmatmul.mubr.f32.gmra.mxu0 %v4741
        %v4809 = vpop.f32.mrf.mxu0
        %v4810 = vadd.f32 0.0, %v4809
        %v4811 = vpop.f32.mrf.mxu0
        %4812 = vdwg.mxu0
        %v4813 = vmul.f32 %v4737, %v4737
        %v4814 = vsub.f32 %v4810, %v4813
        %v4815 = vmax.f32 %v4814, 0.0
        %v4816 = vadd.f32 %v4815, 1e-05
        %v4817 = vrsqrt.pop %v4816
        %v4818 = vmul.f32 %v4817, %v4624
        %v4819 = vmul.f32 %v4737, %v4818
        %v4820 = vsub.f32 %v4625, %v4819
        %v4821 = vlaneseq
        %v4822 = vshrl.u32 %v4821, 7
        %v4823 = vsub.s32 0, %v4822
        %v4824 = vrot.slane %v4818, %v4823
        %v4825 = vmul.f32 %v4603, %v4824
        %v4826 = vmul.f32 %v4606, %v4824
        %v4827 = vmul.f32 %v4611, %v4824
        %v4828 = vmul.f32 %v4614, %v4824
        %v4829 = vmul.f32 %v4619, %v4824
        %v4830 = vlaneseq
        %v4831 = vshrl.u32 %v4830, 7
        %v4832 = vsub.s32 0, %v4831
        %v4833 = vrot.slane %v4820, %v4832
        %v4834 = vadd.f32 %v4825, %v4833
        %v4835 = vadd.f32 %v4826, %v4833
        %v4836 = vadd.f32 %v4827, %v4833
        %v4837 = vadd.f32 %v4828, %v4833
        %v4838 = vadd.f32 %v4829, %v4833
        %v4839 = vmax.f32 %v4834, 0.0
        %v4840 = vmax.f32 %v4835, 0.0
        %v4841 = vmax.f32 %v4836, 0.0
        %v4842 = vmax.f32 %v4837, 0.0
        %v4843 = vmax.f32 %v4838, 0.0
        %4845 = vset.pattern.permute.xlu0 0
        %4846 = vperm.xlu0 %4845, %v427
        %v4847 = vpop.permute.xlu0 %4846
        %4850 = vset.pattern.permute.xlu0 0
        %4851 = vperm.xlu0 %4850, %v428
        %v4852 = vpop.permute.xlu0 %4851
        %4855 = vset.pattern.permute.xlu0 0
        %4856 = vperm.xlu0 %4855, %v429
        %v4857 = vpop.permute.xlu0 %4856
        %4860 = vset.pattern.permute.xlu0 0
        %4861 = vperm.xlu0 %4860, %v430
        %v4862 = vpop.permute.xlu0 %4861
        %4865 = vset.pattern.permute.xlu0 0
        %4866 = vperm.xlu0 %4865, %v431
        %v4867 = vpop.permute.xlu0 %4866
        %v4869 = vmul.f32 %v4839, %v4847
        %v4870 = vmul.f32 %v4840, %v4852
        %v4871 = vmul.f32 %v4841, %v4857
        %v4872 = vmul.f32 %v4842, %v4862
        %v4873 = vmul.f32 %v4843, %v4867
        %4874 = vst [vmem:[#allocation5] sm:$0xff] 0.0
        %4875 = vst [vmem:[#allocation5 + $0x8] sm:$0xff] 0.0
        %4876 = vst.msk [vmem:[#allocation5 + $0x10] sm:$0xff] %vm4626, 0.0
        %4877 = vst [vmem:[#allocation5 + $0x18] sm:$0x3f] 0.0
        %4878 = vst [vmem:[#allocation5 + $0x20] sm:$0x3f] 0.0
        %vm4879 = vcmask 259072
        %4880 = vst.msk [vmem:[#allocation5 + $0x28] sm:$0x3f] %vm4879, 0.0
        %4881 = vst [vmem:[#allocation5 + $0x60] sm:$0xf0] 0.0
        %4882 = vst [vmem:[#allocation5 + $0x68] sm:$0xf0] 0.0
        %vm4883 = vcmask 261124
        %4884 = vst.msk [vmem:[#allocation5 + $0x70] sm:$0xf0] %vm4883, 0.0
        %4885 = vst [vmem:[#allocation5 + $0x78] sm:$0xff] 0.0
        %4886 = vst [vmem:[#allocation5 + $0x80] sm:$0xff] 0.0
        %4887 = vst.msk [vmem:[#allocation5 + $0x88] sm:$0xff] %vm4626, 0.0
        %4888 = vst [vmem:[#allocation5 + $0x90] sm:$0x3] 0.0
        %4889 = vst [vmem:[#allocation5 + $0x98] sm:$0x3] 0.0
        %vm4890 = vcmask 254976
        %4891 = vst.msk [vmem:[#allocation5 + $0xa0] sm:$0x3] %vm4890, 0.0
        %v4897 = vrot.slane %v4869, 2
        %v4898 = vrot.slane %v4870, 2
        %v4899 = vsel %vm1002, %v4897, %v4898
        %v4900 = vrot.slane %v4871, 2
        %v4901 = vsel %vm1002, %v4898, %v4900
        %v4902 = vrot.slane %v4872, 2
        %v4903 = vsel %vm1002, %v4900, %v4902
        %v4904 = vrot.slane %v4873, 2
        %v4905 = vsel %vm1002, %v4902, %v4904
        %vm4912 = vcmask 261126
        %4913 = vst.msk [vmem:[#allocation5 + $0x18] sm:$0xc0] %vm4912, %v4897
        %4914 = vst.msk [vmem:[#allocation5 + $0x30] sm:$0xff] %vm4626, %v4899
        %4915 = vst.msk [vmem:[#allocation5 + $0x48] sm:$0xff] %vm4626, %v4901
        %4916 = vst.msk [vmem:[#allocation5 + $0x60] sm:$0xff] %vm4626, %v4903
        %4917 = vst.msk [vmem:[#allocation5 + $0x78] sm:$0xff] %vm4626, %v4905
        %4918 = vst.msk [vmem:[#allocation5 + $0x90] sm:$0x3] %vm4890, %v4904
        %v4919 = vrot.slane %v4869, 3
        %v4920 = vrot.slane %v4870, 3
        %v4921 = vsel %vm1057, %v4919, %v4920
        %v4922 = vrot.slane %v4871, 3
        %v4923 = vsel %vm1057, %v4920, %v4922
        %v4924 = vrot.slane %v4872, 3
        %v4925 = vsel %vm1057, %v4922, %v4924
        %v4926 = vrot.slane %v4873, 3
        %v4927 = vsel %vm1057, %v4924, %v4926
        %4928 = vrot.lane.b32.xlu0 %v4919, 32
        %v4929 = vpop.permute.xlu0 %4928
        %4930 = vrot.lane.b32.xlu0 %v4921, 32
        %v4931 = vpop.permute.xlu0 %4930
        %4932 = vrot.lane.b32.xlu0 %v4923, 32
        %v4933 = vpop.permute.xlu0 %4932
        %4934 = vrot.lane.b32.xlu0 %v4925, 32
        %v4935 = vpop.permute.xlu0 %4934
        %4936 = vrot.lane.b32.xlu0 %v4927, 32
        %v4937 = vpop.permute.xlu0 %4936
        %4938 = vrot.lane.b32.xlu0 %v4926, 32
        %v4939 = vpop.permute.xlu0 %4938
        %vm4946 = vcmask 523525
        %4947 = vst.msk [vmem:[#allocation5 + $0x18] sm:$0xe0] %vm4946, %v4929
        %vm4948 = vcmask 523520
        %4949 = vst.msk [vmem:[#allocation5 + $0x30] sm:$0xff] %vm4948, %v4931
        %4950 = vst.msk [vmem:[#allocation5 + $0x48] sm:$0xff] %vm4948, %v4933
        %4951 = vst.msk [vmem:[#allocation5 + $0x60] sm:$0xff] %vm4948, %v4935
        %4952 = vst.msk [vmem:[#allocation5 + $0x78] sm:$0xff] %vm4948, %v4937
        %vm4953 = vcmask 516352
        %4954 = vst.msk [vmem:[#allocation5 + $0x90] sm:$0x1] %vm4953, %v4939
        %v4955 = vrot.slane %v4869, 4
        %v4956 = vrot.slane %v4870, 4
        %v4957 = vsel %vm1142, %v4955, %v4956
        %v4958 = vrot.slane %v4871, 4
        %v4959 = vsel %vm1142, %v4956, %v4958
        %v4960 = vrot.slane %v4872, 4
        %v4961 = vsel %vm1142, %v4958, %v4960
        %v4962 = vrot.slane %v4873, 4
        %v4963 = vsel %vm1142, %v4960, %v4962
        %4964 = vrot.lane.b32.xlu0 %v4955, 64
        %v4965 = vpop.permute.xlu0 %4964
        %4966 = vrot.lane.b32.xlu0 %v4957, 64
        %v4967 = vpop.permute.xlu0 %4966
        %4968 = vrot.lane.b32.xlu0 %v4959, 64
        %v4969 = vpop.permute.xlu0 %4968
        %4970 = vrot.lane.b32.xlu0 %v4961, 64
        %v4971 = vpop.permute.xlu0 %4970
        %4972 = vrot.lane.b32.xlu0 %v4963, 64
        %v4973 = vpop.permute.xlu0 %4972
        %vm4979 = vcmask 785924
        %4980 = vst.msk [vmem:[#allocation5 + $0x18] sm:$0xf0] %vm4979, %v4965
        %vm4981 = vcmask 785920
        %4982 = vst.msk [vmem:[#allocation5 + $0x30] sm:$0xff] %vm4981, %v4967
        %4983 = vst.msk [vmem:[#allocation5 + $0x48] sm:$0xff] %vm4981, %v4969
        %4984 = vst.msk [vmem:[#allocation5 + $0x60] sm:$0xff] %vm4981, %v4971
        %4985 = vst.msk [vmem:[#allocation5 + $0x78] sm:$0xff] %vm4981, %v4973
        %4986 = vrot.lane.b32.xlu0 %v4869, 96
        %v4987 = vpop.permute.xlu0 %4986
        %4988 = vrot.lane.b32.xlu0 %v4870, 96
        %v4989 = vpop.permute.xlu0 %4988
        %4990 = vrot.lane.b32.xlu0 %v4871, 96
        %v4991 = vpop.permute.xlu0 %4990
        %4992 = vrot.lane.b32.xlu0 %v4872, 96
        %v4993 = vpop.permute.xlu0 %4992
        %4994 = vrot.lane.b32.xlu0 %v4873, 96
        %v4995 = vpop.permute.xlu0 %4994
        %vm5001 = vcmask 1048320
        %5002 = vst.msk [vmem:[#allocation5 + $0x18] sm:$0xff] %vm5001, %v4987
        %5003 = vst.msk [vmem:[#allocation5 + $0x30] sm:$0xff] %vm5001, %v4989
        %5004 = vst.msk [vmem:[#allocation5 + $0x48] sm:$0xff] %vm5001, %v4991
        %5005 = vst.msk [vmem:[#allocation5 + $0x60] sm:$0xff] %vm5001, %v4993
        %vm5006 = vcmask 1044224
        %5007 = vst.msk [vmem:[#allocation5 + $0x78] sm:$0xf] %vm5006, %v4995
        %vm5008 = vcmask 1046528
        %v5009 = vrot.slane %v4869, 1
        %v5010 = vrot.slane %v4870, 1
        %v5011 = vsel %vm5008, %v5009, %v5010
        %v5012 = vrot.slane %v4871, 1
        %v5013 = vsel %vm5008, %v5010, %v5012
        %v5014 = vrot.slane %v4872, 1
        %v5015 = vsel %vm5008, %v5012, %v5014
        %v5016 = vrot.slane %v4873, 1
        %v5017 = vsel %vm5008, %v5014, %v5016
        %vm5024 = vcmask 261127
        %5025 = vst.msk [vmem:[#allocation5 + $0x8] sm:$0x80] %vm5024, %v5009
        %5026 = vst.msk [vmem:[#allocation5 + $0x20] sm:$0xff] %vm4626, %v5011
        %5027 = vst.msk [vmem:[#allocation5 + $0x38] sm:$0xff] %vm4626, %v5013
        %5028 = vst.msk [vmem:[#allocation5 + $0x50] sm:$0xff] %vm4626, %v5015
        %5029 = vst.msk [vmem:[#allocation5 + $0x68] sm:$0xff] %vm4626, %v5017
        %vm5030 = vcmask 256000
        %5031 = vst.msk [vmem:[#allocation5 + $0x80] sm:$0x7] %vm5030, %v5016
        %5032 = vrot.lane.b32.xlu0 %v4897, 32
        %v5033 = vpop.permute.xlu0 %5032
        %5034 = vrot.lane.b32.xlu0 %v4899, 32
        %v5035 = vpop.permute.xlu0 %5034
        %5036 = vrot.lane.b32.xlu0 %v4901, 32
        %v5037 = vpop.permute.xlu0 %5036
        %5038 = vrot.lane.b32.xlu0 %v4903, 32
        %v5039 = vpop.permute.xlu0 %5038
        %5040 = vrot.lane.b32.xlu0 %v4905, 32
        %v5041 = vpop.permute.xlu0 %5040
        %5042 = vrot.lane.b32.xlu0 %v4904, 32
        %v5043 = vpop.permute.xlu0 %5042
        %vm5050 = vcmask 523526
        %5051 = vst.msk [vmem:[#allocation5 + $0x8] sm:$0xc0] %vm5050, %v5033
        %5052 = vst.msk [vmem:[#allocation5 + $0x20] sm:$0xff] %vm4948, %v5035
        %5053 = vst.msk [vmem:[#allocation5 + $0x38] sm:$0xff] %vm4948, %v5037
        %5054 = vst.msk [vmem:[#allocation5 + $0x50] sm:$0xff] %vm4948, %v5039
        %5055 = vst.msk [vmem:[#allocation5 + $0x68] sm:$0xff] %vm4948, %v5041
        %vm5056 = vcmask 517376
        %5057 = vst.msk [vmem:[#allocation5 + $0x80] sm:$0x3] %vm5056, %v5043
        %v5058 = vrot.slane %v4869, 6
        %v5059 = vrot.slane %v4870, 6
        %v5060 = vsel %vm520, %v5058, %v5059
        %v5061 = vrot.slane %v4871, 6
        %v5062 = vsel %vm520, %v5059, %v5061
        %v5063 = vrot.slane %v4872, 6
        %v5064 = vsel %vm520, %v5061, %v5063
        %v5065 = vrot.slane %v4873, 6
        %v5066 = vsel %vm520, %v5063, %v5065
        %5067 = vrot.lane.b32.xlu0 %v5058, 64
        %v5068 = vpop.permute.xlu0 %5067
        %5069 = vrot.lane.b32.xlu0 %v5060, 64
        %v5070 = vpop.permute.xlu0 %5069
        %5071 = vrot.lane.b32.xlu0 %v5062, 64
        %v5072 = vpop.permute.xlu0 %5071
        %5073 = vrot.lane.b32.xlu0 %v5064, 64
        %v5074 = vpop.permute.xlu0 %5073
        %5075 = vrot.lane.b32.xlu0 %v5066, 64
        %v5076 = vpop.permute.xlu0 %5075
        %vm5082 = vcmask 785922
        %5083 = vst.msk [vmem:[#allocation5 + $0x8] sm:$0xfc] %vm5082, %v5068
        %5084 = vst.msk [vmem:[#allocation5 + $0x20] sm:$0xff] %vm4981, %v5070
        %5085 = vst.msk [vmem:[#allocation5 + $0x38] sm:$0xff] %vm4981, %v5072
        %5086 = vst.msk [vmem:[#allocation5 + $0x50] sm:$0xff] %vm4981, %v5074
        %vm5087 = vcmask 783872
        %5088 = vst.msk [vmem:[#allocation5 + $0x68] sm:$0x3f] %vm5087, %v5076
        %v5089 = vrot.slane %v4869, 7
        %v5090 = vrot.slane %v4870, 7
        %v5091 = vsel %vm1492, %v5089, %v5090
        %v5092 = vrot.slane %v4871, 7
        %v5093 = vsel %vm1492, %v5090, %v5092
        %v5094 = vrot.slane %v4872, 7
        %v5095 = vsel %vm1492, %v5092, %v5094
        %v5096 = vrot.slane %v4873, 7
        %v5097 = vsel %vm1492, %v5094, %v5096
        %5098 = vrot.lane.b32.xlu0 %v5089, 96
        %v5099 = vpop.permute.xlu0 %5098
        %5100 = vrot.lane.b32.xlu0 %v5091, 96
        %v5101 = vpop.permute.xlu0 %5100
        %5102 = vrot.lane.b32.xlu0 %v5093, 96
        %v5103 = vpop.permute.xlu0 %5102
        %5104 = vrot.lane.b32.xlu0 %v5095, 96
        %v5105 = vpop.permute.xlu0 %5104
        %5106 = vrot.lane.b32.xlu0 %v5097, 96
        %v5107 = vpop.permute.xlu0 %5106
        %vm5113 = vcmask 1048321
        %5114 = vst.msk [vmem:[#allocation5 + $0x8] sm:$0xfe] %vm5113, %v5099
        %5115 = vst.msk [vmem:[#allocation5 + $0x20] sm:$0xff] %vm5001, %v5101
        %5116 = vst.msk [vmem:[#allocation5 + $0x38] sm:$0xff] %vm5001, %v5103
        %5117 = vst.msk [vmem:[#allocation5 + $0x50] sm:$0xff] %vm5001, %v5105
        %vm5118 = vcmask 1045248
        %5119 = vst.msk [vmem:[#allocation5 + $0x68] sm:$0x1f] %vm5118, %v5107
        %5120 = vst.msk [vmem:[#allocation5 + $0x10] sm:$0xff] %vm4626, %v4869
        %5121 = vst.msk [vmem:[#allocation5 + $0x28] sm:$0xff] %vm4626, %v4870
        %5122 = vst.msk [vmem:[#allocation5 + $0x40] sm:$0xff] %vm4626, %v4871
        %5123 = vst.msk [vmem:[#allocation5 + $0x58] sm:$0xff] %vm4626, %v4872
        %5124 = vst.msk [vmem:[#allocation5 + $0x70] sm:$0xf] %vm4634, %v4873
        %v5125 = vld [vmem:[#allocation5] sm:$0x80]
        %v5126 = vld [vmem:[#allocation5 + $0x8] sm:$0x80]
        %v5127 = vld [vmem:[#allocation5 + $0x10] sm:$0x80]
        %v5128 = vld [vmem:[#allocation5 + $0x18] sm:$0xff]
        %v5129 = vld [vmem:[#allocation5 + $0x20] sm:$0xff]
        %v5130 = vld [vmem:[#allocation5 + $0x28] sm:$0xff]
        %v5131 = vld [vmem:[#allocation5 + $0x30] sm:$0xff]
        %v5132 = vld [vmem:[#allocation5 + $0x38] sm:$0xff]
        %v5133 = vld [vmem:[#allocation5 + $0x40] sm:$0xff]
        %v5134 = vld [vmem:[#allocation5 + $0x48] sm:$0xff]
        %v5135 = vld [vmem:[#allocation5 + $0x50] sm:$0xff]
        %v5136 = vld [vmem:[#allocation5 + $0x58] sm:$0xff]
        %v5137 = vld [vmem:[#allocation5 + $0x60] sm:$0xff]
        %v5138 = vld [vmem:[#allocation5 + $0x68] sm:$0xff]
        %v5139 = vld [vmem:[#allocation5 + $0x70] sm:$0xff]
        %v5140 = vld [vmem:[#allocation5 + $0x78] sm:$0x7]
        %v5141 = vld [vmem:[#allocation5 + $0x80] sm:$0x7]
        %v5142 = vld [vmem:[#allocation5 + $0x88] sm:$0x7]
        %v5143 = vpack.c.bf16 %v5128, %v5125
        %v5144 = vpack.c.bf16 %v5129, %v5126
        %v5145 = vpack.c.bf16 %v5130, %v5127
        %v5146 = vpack.c.bf16 %v5134, %v5131
        %v5147 = vpack.c.bf16 %v5135, %v5132
        %v5148 = vpack.c.bf16 %v5136, %v5133
        %v5149 = vpack.c.bf16 %v5140, %v5137
        %v5150 = vpack.c.bf16 %v5141, %v5138
        %v5151 = vpack.c.bf16 %v5142, %v5139
        %v5152 = vld [vmem:[%s6] sm:$0xf]
        %v5153 = vld [vmem:[%s6 + $0x4] sm:$0xf]
        %v5154 = vld [vmem:[%s6 + $0x8] sm:$0xf]
        %v5155 = vld [vmem:[%s6 + $0xc] sm:$0xf]
        %v5156 = vld [vmem:[%s6 + $0x10] sm:$0xf]
        %v5157 = vld [vmem:[%s6 + $0x14] sm:$0xf]
        %v5158 = vld [vmem:[%s6 + $0x18] sm:$0xf]
        %v5159 = vld [vmem:[%s6 + $0x1c] sm:$0xf]
        %v5160 = vld [vmem:[%s6 + $0x20] sm:$0xf]
        %v5161 = vld [vmem:[%s6 + $0x24] sm:$0xf]
        %v5162 = vld [vmem:[%s6 + $0x28] sm:$0xf]
        %v5163 = vld [vmem:[%s6 + $0x2c] sm:$0xf]
        %v5164 = vld [vmem:[%s6 + $0x30] sm:$0xf]
        %v5165 = vld [vmem:[%s6 + $0x34] sm:$0xf]
        %v5166 = vld [vmem:[%s6 + $0x38] sm:$0xf]
        %v5167 = vld [vmem:[%s6 + $0x3c] sm:$0xf]
        %v5168 = vld [vmem:[%s6 + $0x40] sm:$0xf]
        %v5169 = vld [vmem:[%s6 + $0x44] sm:$0xf]
        %v5170 = vld [vmem:[%s6 + $0x48] sm:$0xf]
        %v5171 = vld [vmem:[%s6 + $0x4c] sm:$0xf]
        %v5172 = vld [vmem:[%s6 + $0x50] sm:$0xf]
        %v5173 = vld [vmem:[%s6 + $0x54] sm:$0xf]
        %v5174 = vld [vmem:[%s6 + $0x58] sm:$0xf]
        %v5175 = vld [vmem:[%s6 + $0x5c] sm:$0xf]
        %v5176 = vld [vmem:[%s6 + $0x60] sm:$0xf]
        %v5177 = vld [vmem:[%s6 + $0x64] sm:$0xf]
        %v5178 = vld [vmem:[%s6 + $0x68] sm:$0xf]
        %v5179 = vld [vmem:[%s6 + $0x6c] sm:$0xf]
        %v5180 = vld [vmem:[%s6 + $0x70] sm:$0xf]
        %v5181 = vld [vmem:[%s6 + $0x74] sm:$0xf]
        %v5182 = vld [vmem:[%s6 + $0x78] sm:$0xf]
        %v5183 = vld [vmem:[%s6 + $0x7c] sm:$0xf]
        %v5184 = vld [vmem:[%s6 + $0x80] sm:$0xf]
        %v5185 = vld [vmem:[%s6 + $0x84] sm:$0xf]
        %v5186 = vld [vmem:[%s6 + $0x88] sm:$0xf]
        %v5187 = vld [vmem:[%s6 + $0x8c] sm:$0xf]
        %vm5188 = vsmask.f32 4352
        %v5190 = vshrl.u32 %v5143, 16
        %v5192 = vrot.slane %v5190, 3
        %v5193 = vshll.u32 %v5143, 16
        %v5195 = vrot.slane %v5193, 4
        %v5196 = vor.u32 %v5192, %v5195
        %v5198 = vshrl.u32 %v5146, 16
        %v5200 = vrot.slane %v5198, 3
        %v5201 = vshll.u32 %v5146, 16
        %v5203 = vrot.slane %v5201, 4
        %v5204 = vor.u32 %v5200, %v5203
        %v5205 = vsel %vm5188, %v5196, %v5204
        %v5207 = vshrl.u32 %v5144, 16
        %v5209 = vrot.slane %v5207, 3
        %v5210 = vshll.u32 %v5144, 16
        %v5212 = vrot.slane %v5210, 4
        %v5213 = vor.u32 %v5209, %v5212
        %v5215 = vshrl.u32 %v5147, 16
        %v5217 = vrot.slane %v5215, 3
        %v5218 = vshll.u32 %v5147, 16
        %v5220 = vrot.slane %v5218, 4
        %v5221 = vor.u32 %v5217, %v5220
        %v5222 = vsel %vm5188, %v5213, %v5221
        %v5224 = vshrl.u32 %v5145, 16
        %v5226 = vrot.slane %v5224, 3
        %v5227 = vshll.u32 %v5145, 16
        %v5229 = vrot.slane %v5227, 4
        %v5230 = vor.u32 %v5226, %v5229
        %v5232 = vshrl.u32 %v5148, 16
        %v5234 = vrot.slane %v5232, 3
        %v5235 = vshll.u32 %v5148, 16
        %v5237 = vrot.slane %v5235, 4
        %v5238 = vor.u32 %v5234, %v5237
        %v5239 = vsel %vm5188, %v5230, %v5238
        %v5241 = vshrl.u32 %v5149, 16
        %v5243 = vrot.slane %v5241, 3
        %v5244 = vshll.u32 %v5149, 16
        %v5246 = vrot.slane %v5244, 4
        %v5247 = vor.u32 %v5243, %v5246
        %v5248 = vsel %vm5188, %v5204, %v5247
        %v5250 = vshrl.u32 %v5150, 16
        %v5252 = vrot.slane %v5250, 3
        %v5253 = vshll.u32 %v5150, 16
        %v5255 = vrot.slane %v5253, 4
        %v5256 = vor.u32 %v5252, %v5255
        %v5257 = vsel %vm5188, %v5221, %v5256
        %v5259 = vshrl.u32 %v5151, 16
        %v5261 = vrot.slane %v5259, 3
        %v5262 = vshll.u32 %v5151, 16
        %v5264 = vrot.slane %v5262, 4
        %v5265 = vor.u32 %v5261, %v5264
        %v5266 = vsel %vm5188, %v5238, %v5265
        %v5309 = vunpack.c.l.b16 %v5152
        %v5310 = vunpack.c.l.b16 %v5153
        %v5311 = vunpack.c.l.b16 %v5154
        %v5312 = vunpack.c.l.b16 %v5155
        %v5313 = vunpack.c.l.b16 %v5156
        %v5314 = vunpack.c.l.b16 %v5157
        %v5315 = vunpack.c.l.b16 %v5158
        %v5316 = vunpack.c.l.b16 %v5159
        %v5317 = vunpack.c.l.b16 %v5160
        %v5318 = vunpack.c.l.b16 %v5161
        %v5319 = vunpack.c.l.b16 %v5162
        %v5320 = vunpack.c.l.b16 %v5163
        %v5321 = vunpack.c.l.b16 %v5164
        %v5322 = vunpack.c.l.b16 %v5165
        %v5323 = vunpack.c.l.b16 %v5166
        %v5324 = vunpack.c.l.b16 %v5167
        %v5325 = vunpack.c.l.b16 %v5168
        %v5326 = vunpack.c.l.b16 %v5169
        %v5327 = vunpack.c.l.b16 %v5170
        %v5328 = vunpack.c.l.b16 %v5171
        %v5329 = vunpack.c.l.b16 %v5172
        %v5330 = vunpack.c.l.b16 %v5173
        %v5331 = vunpack.c.l.b16 %v5174
        %v5332 = vunpack.c.l.b16 %v5175
        %v5333 = vunpack.c.l.b16 %v5176
        %v5334 = vunpack.c.l.b16 %v5177
        %v5335 = vunpack.c.l.b16 %v5178
        %v5336 = vunpack.c.l.b16 %v5179
        %v5337 = vunpack.c.l.b16 %v5180
        %v5338 = vunpack.c.l.b16 %v5181
        %v5339 = vunpack.c.l.b16 %v5182
        %v5340 = vunpack.c.l.b16 %v5183
        %v5341 = vunpack.c.l.b16 %v5184
        %v5342 = vunpack.c.l.b16 %v5185
        %v5343 = vunpack.c.l.b16 %v5186
        %v5344 = vunpack.c.l.b16 %v5187
        %v5345 = vpack.c.b16 %v5310, %v5309
        %v5346 = vpack.c.b16 %v5312, %v5311
        %v5347 = vpack.c.b16 %v5314, %v5313
        %v5348 = vpack.c.b16 %v5316, %v5315
        %v5349 = vpack.c.b16 %v5318, %v5317
        %v5350 = vpack.c.b16 %v5320, %v5319
        %v5351 = vpack.c.b16 %v5322, %v5321
        %v5352 = vpack.c.b16 %v5324, %v5323
        %v5353 = vpack.c.b16 %v5326, %v5325
        %v5354 = vpack.c.b16 %v5328, %v5327
        %v5355 = vpack.c.b16 %v5330, %v5329
        %v5356 = vpack.c.b16 %v5332, %v5331
        %v5357 = vpack.c.b16 %v5334, %v5333
        %v5358 = vpack.c.b16 %v5336, %v5335
        %v5359 = vpack.c.b16 %v5338, %v5337
        %v5360 = vpack.c.b16 %v5340, %v5339
        %v5361 = vpack.c.b16 %v5342, %v5341
        %v5362 = vpack.c.b16 %v5344, %v5343
        %v5382 = vsel %vm4626, %v5239, 0
        %v5385 = vsel %vm4626, %v5266, 0
        %v5388 = vsel %vm4626, %v5265, 0
        %5390 = vmatprep.subr.bf16.mxu0 0
        %5391 = vmatpush1.bf16.msra.mxu0 %v5352
        %5392 = vmatprep.subr.bf16.mxu0 0
        %5393 = vmatpush1.bf16.msra.mxu0 %v5351
        %5394 = vmatprep.subr.bf16.mxu0 0
        %5395 = vmatpush1.bf16.msra.mxu0 %v5350
        %5396 = vmatprep.subr.bf16.mxu0 0
        %5397 = vmatpush1.bf16.msra.mxu0 %v5349
        %5398 = vmatprep.subr.bf16.mxu0 0
        %5399 = vmatpush1.bf16.msra.mxu0 %v5348
        %5400 = vmatprep.subr.bf16.mxu0 0
        %5401 = vmatpush1.bf16.msra.mxu0 %v5347
        %5402 = vmatprep.subr.bf16.mxu0 0
        %5403 = vmatpush1.bf16.msra.mxu0 %v5346
        %5404 = vmatprep.subr.bf16.mxu0 0
        %5405 = vmatpush1.bf16.msra.mxu0 %v5345
        %5406 = vmatprep.subr.bf16.mxu0 0
        %5407 = vmatpush2.bf16.msra.mxu0 %v5360
        %5408 = vmatprep.subr.bf16.mxu0 0
        %5409 = vmatpush2.bf16.msra.mxu0 %v5359
        %5410 = vmatprep.subr.bf16.mxu0 0
        %5411 = vmatpush2.bf16.msra.mxu0 %v5358
        %5412 = vmatprep.subr.bf16.mxu0 0
        %5413 = vmatpush2.bf16.msra.mxu0 %v5357
        %5414 = vmatprep.subr.bf16.mxu0 0
        %5415 = vmatpush2.bf16.msra.mxu0 %v5356
        %5416 = vmatprep.subr.bf16.mxu0 0
        %5417 = vmatpush2.bf16.msra.mxu0 %v5355
        %5418 = vmatprep.subr.bf16.mxu0 0
        %5419 = vmatpush2.bf16.msra.mxu0 %v5354
        %5420 = vmatprep.subr.bf16.mxu0 0
        %5421 = vmatpush2.bf16.msra.mxu0 %v5353
        %5422 = vmatprep.mubr.bf16.mxu0 %v5222
        %5423 = vmatmul.mubr.bf16.gmra.mxu0 %v5205
        %v5424 = vpop.f32.mrf.mxu0
        %v5425 = vadd.f32 0.0, %v5424
        %v5426 = vpop.f32.mrf.mxu0
        %v5427 = vpop.f32.mrf.mxu0
        %v5428 = vadd.f32 0.0, %v5427
        %v5429 = vpop.f32.mrf.mxu0
        %5430 = vmatprep.mubr.bf16.mxu0 %v5257
        %5431 = vmatmul.mubr.bf16.gmra.mxu0 %v5248
        %v5432 = vpop.f32.mrf.mxu0
        %v5433 = vadd.f32 0.0, %v5432
        %v5434 = vpop.f32.mrf.mxu0
        %v5435 = vpop.f32.mrf.mxu0
        %v5436 = vadd.f32 0.0, %v5435
        %v5437 = vpop.f32.mrf.mxu0
        %5438 = vmatprep.mubr.bf16.mxu0 %v5256
        %5439 = vmatmul.mubr.bf16.gmra.mxu0 %v5247
        %v5440 = vpop.f32.mrf.mxu0
        %v5441 = vadd.f32 0.0, %v5440
        %v5442 = vpop.f32.mrf.mxu0
        %v5443 = vpop.f32.mrf.mxu0
        %v5444 = vpop.f32.mrf.mxu0
        %5445 = vdwg.mxu0
        %5446 = vmatprep.subr.bf16.mxu0 0
        %5447 = vmatpush1.bf16.msra.mxu0 0
        %5448 = vmatprep.subr.bf16.mxu0 0
        %5449 = vmatpush1.bf16.msra.mxu0 0
        %5450 = vmatprep.subr.bf16.mxu0 0
        %5451 = vmatpush1.bf16.msra.mxu0 0
        %5452 = vmatprep.subr.bf16.mxu0 0
        %5453 = vmatpush1.bf16.msra.mxu0 0
        %5454 = vmatprep.subr.bf16.mxu0 0
        %5455 = vmatpush1.bf16.msra.mxu0 0
        %5456 = vmatprep.subr.bf16.mxu0 0
        %5457 = vmatpush1.bf16.msra.mxu0 0
        %5458 = vmatprep.subr.bf16.mxu0 0
        %5459 = vmatpush1.bf16.msra.mxu0 %v5362
        %5460 = vmatprep.subr.bf16.mxu0 0
        %5461 = vmatpush1.bf16.msra.mxu0 %v5361
        %5462 = vmatprep.subr.bf16.mxu0 0
        %5463 = vmatpush2.bf16.msra.mxu0 0
        %5464 = vmatprep.subr.bf16.mxu0 0
        %5465 = vmatpush2.bf16.msra.mxu0 0
        %5466 = vmatprep.subr.bf16.mxu0 0
        %5467 = vmatpush2.bf16.msra.mxu0 0
        %5468 = vmatprep.subr.bf16.mxu0 0
        %5469 = vmatpush2.bf16.msra.mxu0 0
        %5470 = vmatprep.subr.bf16.mxu0 0
        %5471 = vmatpush2.bf16.msra.mxu0 0
        %5472 = vmatprep.subr.bf16.mxu0 0
        %5473 = vmatpush2.bf16.msra.mxu0 0
        %5474 = vmatprep.subr.bf16.mxu0 0
        %5475 = vmatpush2.bf16.msra.mxu0 0
        %5476 = vmatprep.subr.bf16.mxu0 0
        %5477 = vmatpush2.bf16.msra.mxu0 0
        %5478 = vmatprep.mubr.bf16.mxu0 0
        %5479 = vmatmul.mubr.bf16.gmra.mxu0 %v5382
        %v5480 = vpop.f32.mrf.mxu0
        %v5481 = vadd.f32 %v5425, %v5480
        %v5482 = vpop.f32.mrf.mxu0
        %v5483 = vpop.f32.mrf.mxu0
        %v5484 = vadd.f32 %v5428, %v5483
        %v5485 = vpop.f32.mrf.mxu0
        %5486 = vmatprep.mubr.bf16.mxu0 0
        %5487 = vmatmul.mubr.bf16.gmra.mxu0 %v5385
        %v5488 = vpop.f32.mrf.mxu0
        %v5489 = vadd.f32 %v5433, %v5488
        %v5490 = vpop.f32.mrf.mxu0
        %v5491 = vpop.f32.mrf.mxu0
        %v5492 = vadd.f32 %v5436, %v5491
        %v5493 = vpop.f32.mrf.mxu0
        %5494 = vmatprep.mubr.bf16.mxu0 0
        %5495 = vmatmul.mubr.bf16.gmra.mxu0 %v5388
        %v5496 = vpop.f32.mrf.mxu0
        %v5497 = vadd.f32 %v5441, %v5496
        %v5498 = vpop.f32.mrf.mxu0
        %v5499 = vpop.f32.mrf.mxu0
        %v5500 = vpop.f32.mrf.mxu0
        %5501 = vdwg.mxu0
        %v5502 = vmul.f32 %v5481, %v4847
        %v5503 = vmul.f32 %v5484, %v4852
        %v5504 = vmul.f32 %v5489, %v4857
        %v5505 = vmul.f32 %v5492, %v4862
        %v5506 = vmul.f32 %v5497, %v4867
        %v5507 = vadd.f32 %v5502, %v5503
        %v5508 = vadd.f32 %v5507, %v5504
        %v5509 = vadd.f32 %v5508, %v5505
        %v5510 = vsel %vm1142, %v5506, 0.0
        %v5511 = vadd.f32 %v5509, %v5510
        %v5512 = vrot.slane %v5511, 4
        %v5513 = vadd.f32 %v5511, %v5512
        %v5514 = vrot.slane %v5513, 2
        %v5515 = vadd.f32 %v5513, %v5514
        %v5516 = vrot.slane %v5515, 1
        %v5517 = vadd.f32 %v5515, %v5516
        %5518 = vadd.xlane.f32.xlu0 %v5517
        %v5519 = vpop.xlane.xlu0 %5518
        %v5520 = vmul.f32 %v5502, %v5502
        %v5521 = vmul.f32 %v5503, %v5503
        %v5522 = vmul.f32 %v5504, %v5504
        %v5523 = vmul.f32 %v5505, %v5505
        %v5524 = vmul.f32 %v5506, %v5506
        %v5525 = vadd.f32 %v5520, %v5521
        %v5526 = vadd.f32 %v5525, %v5522
        %v5527 = vadd.f32 %v5526, %v5523
        %v5528 = vsel %vm1142, %v5524, 0.0
        %v5529 = vadd.f32 %v5527, %v5528
        %v5530 = vrot.slane %v5529, 4
        %v5531 = vadd.f32 %v5529, %v5530
        %v5532 = vrot.slane %v5531, 2
        %v5533 = vadd.f32 %v5531, %v5532
        %v5534 = vrot.slane %v5533, 1
        %v5535 = vadd.f32 %v5533, %v5534
        %5536 = vadd.xlane.f32.xlu0 %v5535
        %v5537 = vpop.xlane.xlu0 %5536
        %v5538 = vrcp.pop 2048.0
        %v5539 = vmul.f32 %v5519, %v5538
        %v5540 = vmul.f32 %v5537, %v5538
        %v5541 = vmul.f32 %v5539, %v5539
        %v5542 = vsub.f32 %v5540, %v5541
        %v5543 = vmax.f32 %v5542, 0.0
        %v5544 = vadd.f32 %v5543, 1e-05
        %v5545 = vrsqrt.pop %v5544
        %v5546 = vsub.f32 %v5502, %v5539
        %v5547 = vsub.f32 %v5503, %v5539
        %v5548 = vsub.f32 %v5504, %v5539
        %v5549 = vsub.f32 %v5505, %v5539
        %v5550 = vmul.f32 %v5546, %v5545
        %v5551 = vmul.f32 %v5547, %v5545
        %v5552 = vmul.f32 %v5548, %v5545
        %v5553 = vmul.f32 %v5549, %v5545
        %v5554 = vld [vmem:[%s1 + $0x8] sm:$0x1]
        %v5555 = vlaneseq
        %v5556 = vshrl.u32 %v5555, 7
        %v5557 = vsub.s32 0, %v5556
        %v5558 = vrot.slane %v5554, %v5557
        %v5559 = vmul.f32 %v5550, %v5558
        %v5560 = vmul.f32 %v5551, %v5558
        %v5561 = vmul.f32 %v5552, %v5558
        %v5562 = vmul.f32 %v5553, %v5558
        %v5563 = vld [vmem:[%s1 + $0x9] sm:$0x1]
        %v5564 = vlaneseq
        %v5565 = vshrl.u32 %v5564, 7
        %v5566 = vsub.s32 0, %v5565
        %v5567 = vrot.slane %v5563, %v5566
        %v5568 = vadd.f32 %v5559, %v5567
        %v5569 = vadd.f32 %v5560, %v5567
        %v5570 = vadd.f32 %v5561, %v5567
        %v5571 = vadd.f32 %v5562, %v5567
        %v5572 = vmax.f32 %v5568, 0.0
        %v5573 = vmax.f32 %v5569, 0.0
        %v5574 = vmax.f32 %v5570, 0.0
        %v5575 = vmax.f32 %v5571, 0.0
        %5576 = vst [vmem:[%s406 - $0x7] sm:$0x80] %v5572
        %5577 = vst [vmem:[%s406 + $0x1] sm:$0x7] %v5573
        %5578 = vst [vmem:[%s406 - $0x1] sm:$0xe0] %v5573
        %5579 = vst [vmem:[%s406 + $0x7] sm:$0x1] %v5574
        %5580 = vst [vmem:[%s406 + $0x5] sm:$0x78] %v5574
        %5581 = vst [vmem:[%s406 + $0xb] sm:$0x1e] %v5575
        %s5582 = sand.u32 %s291, 1
        %s5583 = scalar_lea.sflag [#allocation7], %s5582
        %s5584 = sand.u32 %s291, 1
        %s5585 = smul.addr %s5584, 16
        %s5586 = scalar_lea.vmem [#allocation6], %s5585
        // Predicated region
        $region69: #{_forward.1} parent=67 // pred_check
          %p5587 = pneg %p301
        $region70: #{_forward.1} parent=67 // pred_check_branch
          %5589 = sbr.rel (%p5587) target = $region72
        $region71: #{_forward.1} parent=67 // pred_region
          %s5590 = smul.u32 2, %s26
          %s5592 = ssub.s32 256, 256
          %5593 = vsyncadd %s5583, %s5592
          %s5594 = smul.addr %s5590, 128
          %s5595 = scalar_lea.hbm %s12, %s5594
          %s5596 = sshll.u32 %s5586, 4
          %s5597 = int_to_ptr.vmem [resolvable:$true] %s5596
          %5602 = dma.vmem_to_hbm [thread:$0]  %s5597, 256, %s5595, %s5583, 128, 128, 8
        $region72: #{_forward.1} parent=67 // pred_fallthru
          _
      $region68: #{_forward.1} parent=5 // pred_fallthru
        _
      %p5603 = scmp.le.s32.totalorder 2, %s21
      // Predicated region
      $region73: #{_forward.1} parent=5 // pred_check
        %p5604 = pneg %p5603
      $region74: #{_forward.1} parent=5 // pred_check_branch
        %5606 = sbr.rel (%p5604) target = $region76
      $region75: #{_forward.1} parent=5 // pred_region
        %s5607 = ssub.s32 %s21, 2
        // Predicated region
        $region77: #{_forward.1} parent=75 // pred_check
          %p5608 = pneg %p307
        $region78: #{_forward.1} parent=75 // pred_check_branch
          %5610 = sbr.rel (%p5608) target = $region80
        $region79: #{_forward.1} parent=75 // pred_region
          %s5611 = sand.u32 %s292, 1
          %s5612 = scalar_lea.sflag [#allocation7], %s5611
          %s5613 = sand.u32 %s292, 1
          %s5614 = smul.addr %s5613, 16
          %s5615 = scalar_lea.vmem [#allocation6], %s5614
          %5616 = dma.done %s5612, 256
        $region80: #{_forward.1} parent=75 // pred_fallthru
          _
      $region76: #{_forward.1} parent=5 // pred_fallthru
        _
    $region6: #{_forward.1} parent=1 // loop_footer
      %s25 = sadd.s32 1, %s21
    $region7: #{_forward.1} parent=1 // loop_footer_branch
      %20 = sbr.rel target = $region3
    $region8: #{_forward.1} parent=1 // loop_exit
      _
    %5617 = vsyncpa [#allocation7], 1
    %s5618 = scalar_lea.sflag [#allocation7], 1
    %5619 = vsyncpa %s5618, 1

</llo_original>
